<compile_context>
chip_gen: v7x
topology: tpu7x:2x2x1
jax: 0.10.0
libtpu: 0.0.40
codegen_flags: <defaults>
</compile_context>

<pallas_src>
import functools

import jax
import jax.numpy as jnp
from jax import lax
from jax.experimental import pallas as pl
from jax.experimental.pallas import tpu as pltpu


def _vectornet_kernel(x_ref, *refs, depth_sub, depth_global, n_pad, pts, tb):
    # refs = sub[W,b]*depth_sub + glb[Wqkv,bqkv]*depth_global
    #        + [Wd, bd, attn_bias, sel] + [out]
    n_sub = 2 * depth_sub
    n_glb = 2 * depth_global
    sub_refs = refs[:n_sub]
    glb_refs = refs[n_sub:n_sub + n_glb]
    wd_ref, bd_ref, bias_ref, sel_ref = refs[n_sub + n_glb:n_sub + n_glb + 4]
    out_ref = refs[-1]

    rows = tb * n_pad

    # ---- polyline (sub-graph) encoder -------------------------------------
    # x is packed (tb, n_pad, P*C_in); sub-MLP weights were pre-expanded to
    # block-diagonal I_P (x) W in the wrapper, so each layer is one lane-dense
    # 2-D MXU matmul on (rows, P*din) x (P*din, P*dout).
    h = x_ref[...].reshape(rows, -1)
    for d in range(depth_sub):
        w = sub_refs[2 * d][...]
        b = sub_refs[2 * d + 1][...]
        h = jnp.maximum(jnp.dot(h, w, preferred_element_type=jnp.float32) + b,
                        0.0)

    # ---- max-pool over the P points of each polyline ----------------------
    # Point p occupies lane block [p*ws, (p+1)*ws); pool = P-1 pairwise VPU
    # maxes over static lane slices.
    width_sub = h.shape[-1] // pts
    g = h[:, :width_sub]
    for p in range(1, pts):
        g = jnp.maximum(g, h[:, p * width_sub:(p + 1) * width_sub])

    # ---- global interaction: one cross-sample masked self-attention -------
    # All tb samples share one (rows, rows) score matmul; the additive bias
    # (precomputed in the wrapper) is -1e30 off each sample's diagonal block
    # and for zero-padded polyline keys, so the softmax factorizes per sample.
    attn_bias = bias_ref[...]
    for d in range(depth_global):
        w_qkv = glb_refs[2 * d][...]                         # (din, 3*wg)
        b_qkv = glb_refs[2 * d + 1][...]                     # (1, 3*wg)
        wg = w_qkv.shape[-1] // 3
        qkv = jnp.dot(g, w_qkv, preferred_element_type=jnp.float32) + b_qkv
        q = qkv[:, 0 * wg:1 * wg]
        k = qkv[:, 1 * wg:2 * wg]
        v = qkv[:, 2 * wg:3 * wg]
        s = lax.dot_general(q, k, (((1,), (1,)), ((), ())),
                            preferred_element_type=jnp.float32)
        s = s * (1.0 / float(wg) ** 0.5) + attn_bias
        s = s - jnp.max(s, axis=-1, keepdims=True)
        e = jnp.exp(s)
        attn = e * pl.reciprocal(jnp.sum(e, axis=-1, keepdims=True),
                                 approx=True)
        g = jnp.maximum(jnp.dot(attn, v, preferred_element_type=jnp.float32),
                        0.0)

    # ---- decode only the trajectory row of each sample ---------------------
    # sel is a (tb, rows) one-hot selector of row i*n_pad + (N-1); keeps the
    # gather on the MXU and cuts decoder work + output HBM writeback by n_pad x.
    traj = jnp.dot(sel_ref[...], g, preferred_element_type=jnp.float32)
    y = jnp.dot(traj, wd_ref[...],
                preferred_element_type=jnp.float32) + bd_ref[...]
    out_ref[...] = y[None, :, :]                             # (1, tb, out_pad)


def _pick_tb(batch, block_b):
    """Largest tb <= block_b dividing the batch; prefer an even grid so both
    v7x TensorCores stay busy and no padded samples are computed."""
    cands = [t for t in range(min(block_b, batch), 0, -1) if batch % t == 0]
    for t in cands:
        if (batch // t) % 2 == 0:
            return t
    return cands[0]


def padding_vectornet_forward(traj, lanes, params, *, depth_sub, depth_global,
                              block_b=8):
    """traj: (B, C_in, P); lanes: (B, C_in, P, L) -> (B, 2, 30)."""
    B, C_in, P = traj.shape
    L = lanes.shape[-1]
    N = L + 1                                    # lane polylines + trajectory

    # glue: torch.unsqueeze(traj, -1) + per-polyline rearrangement, packed
    # point-major so the last dim is P*C_in (lane-dense DMA / VMEM tiles).
    x = jnp.concatenate([lanes, traj[..., None]], axis=-1)   # (B, C_in, P, N)
    x = jnp.transpose(x, (0, 3, 2, 1))                       # (B, N, P, C_in)

    n_pad = pl.cdiv(N, 8) * 8                                # tile-aligned N
    if n_pad != N:
        x = jnp.pad(x, ((0, 0), (0, n_pad - N), (0, 0), (0, 0)))
    x = x.reshape(B, n_pad, P * C_in)

    tb = _pick_tb(B, block_b)                                # samples / step
    b_pad = pl.cdiv(B, tb) * tb
    if b_pad != B:
        x = jnp.pad(x, ((0, b_pad - B), (0, 0), (0, 0)))
    num_blocks = b_pad // tb
    rows = tb * n_pad

    # --- pre-expand weights -------------------------------------------------
    # sub-graph MLP: block-diagonal I_P (x) W (bias tiled per point) so every
    # layer is one dense matmul on the packed rows (no per-point relayout).
    eye_p = jnp.eye(P, dtype=jnp.float32)
    sub_blk = []
    for d in range(depth_sub):
        w, b = params["sub"][2 * d], params["sub"][2 * d + 1]
        sub_blk += [jnp.kron(eye_p, w), jnp.tile(b, (1, P))]

    # global graph: fuse q/k/v weights per layer -> one (din, 3*wg) matmul.
    glb_fused = []
    for d in range(depth_global):
        wq, bq = params["glb"][6 * d + 0], params["glb"][6 * d + 1]
        wk, bk = params["glb"][6 * d + 2], params["glb"][6 * d + 3]
        wv, bv = params["glb"][6 * d + 4], params["glb"][6 * d + 5]
        glb_fused += [jnp.concatenate([wq, wk, wv], axis=1),
                      jnp.concatenate([bq, bk, bv], axis=1)]

    # decoder padded to 128 output lanes (unmasked full-lane stores).
    out_dim = params["wd"].shape[-1]                         # 2 * 30
    out_pad = pl.cdiv(out_dim, 128) * 128
    wd = jnp.pad(params["wd"], ((0, 0), (0, out_pad - out_dim)))
    bd = jnp.pad(params["bd"], ((0, 0), (0, out_pad - out_dim)))

    # cross-sample attention bias: 0 inside each sample's diagonal block for
    # real (non zero-padded) keys, -1e30 everywhere else.
    r = jnp.arange(rows)
    same_sample = (r[:, None] // n_pad) == (r[None, :] // n_pad)
    real_key = (r[None, :] % n_pad) < N
    attn_bias = jnp.where(same_sample & real_key, 0.0, -1e30).astype(jnp.float32)

    # one-hot selector of the trajectory row (polyline index N-1) per sample.
    sel = jnp.zeros((tb, rows), jnp.float32)
    sel = sel.at[jnp.arange(tb), jnp.arange(tb) * n_pad + (N - 1)].set(1.0)

    consts = sub_blk + glb_fused + [wd, bd, attn_bias, sel]

    kernel = functools.partial(
        _vectornet_kernel, depth_sub=depth_sub, depth_global=depth_global,
        n_pad=n_pad, pts=P, tb=tb)

    def run(single_buffer_consts):
        def const_spec(arr):
            nd = arr.ndim
            idx = lambda b, _nd=nd: (0,) * _nd
            if single_buffer_consts:
                # Constant across the grid -> single buffer (halves weight
                # VMEM, no dead per-step DMA re-issue).
                return pl.BlockSpec(arr.shape, idx,
                                    pipeline_mode=pl.Buffered(1))
            return pl.BlockSpec(arr.shape, idx)

        return pl.pallas_call(
            kernel,
            out_shape=jax.ShapeDtypeStruct((num_blocks, tb, out_pad),
                                           jnp.float32),
            grid_spec=pltpu.PrefetchScalarGridSpec(
                num_scalar_prefetch=0,
                grid=(num_blocks,),
                in_specs=[pl.BlockSpec((tb, n_pad, P * C_in),
                                       lambda b: (b, 0, 0))]
                         + [const_spec(a) for a in consts],
                out_specs=pl.BlockSpec((1, tb, out_pad),
                                       lambda b: (b, 0, 0)),
            ),
            compiler_params=pltpu.CompilerParams(
                dimension_semantics=("parallel",),
                vmem_limit_bytes=32 * 1024 * 1024),
        )(x, *consts)

    try:
        out = run(True)
    except Exception:   # pl.Buffered(1) not supported on this jax version
        out = run(False)

    out = out.reshape(b_pad, out_pad)[:B, :out_dim]
    return out.reshape(B, 2, out_dim // 2)


def _reference_forward(traj, lanes, params, *, depth_sub, depth_global):
    """Pure-JAX reference with identical semantics (sanity check)."""
    B, C_in, P = traj.shape
    L = lanes.shape[-1]
    N = L + 1
    x = jnp.concatenate([lanes, traj[..., None]], axis=-1)
    x = jnp.transpose(x, (0, 3, 2, 1)).reshape(B, N * P, C_in)
    h = x
    for d in range(depth_sub):
        w, b = params["sub"][2 * d], params["sub"][2 * d + 1]
        h = jnp.maximum(h @ w + b, 0.0)
    g = jnp.max(h.reshape(B, N, P, -1), axis=2)
    for d in range(depth_global):
        wq, bq = params["glb"][6 * d + 0], params["glb"][6 * d + 1]
        wk, bk = params["glb"][6 * d + 2], params["glb"][6 * d + 3]
        wv, bv = params["glb"][6 * d + 4], params["glb"][6 * d + 5]
        q, k, v = g @ wq + bq, g @ wk + bk, g @ wv + bv
        s = jnp.einsum("bnd,bmd->bnm", q, k) / jnp.sqrt(jnp.float32(q.shape[-1]))
        attn = jax.nn.softmax(s, axis=-1)
        g = jnp.maximum(jnp.einsum("bnm,bmd->bnd", attn, v), 0.0)
    y = g[:, -1, :] @ params["wd"] + params["bd"]
    return y.reshape(-1, 2, y.shape[-1] // 2)


def init_params(key, *, c_in, depth_sub, width_sub, depth_global, width_global):
    keys = iter(jax.random.split(key, 32))

    def lin(k, din, dout):
        ku, kb = jax.random.split(k)
        s = 1.0 / jnp.sqrt(jnp.float32(din))
        w = jax.random.uniform(ku, (din, dout), jnp.float32, -s, s)
        b = jax.random.uniform(kb, (1, dout), jnp.float32, -s, s)
        return w, b

    sub, din = [], c_in
    for _ in range(depth_sub):
        w, b = lin(next(keys), din, width_sub)
        sub += [w, b]
        din = width_sub

    glb, din = [], width_sub
    for _ in range(depth_global):
        for _ in range(3):                      # q, k, v
            w, b = lin(next(keys), din, width_global)
            glb += [w, b]
        din = width_global

    wd, bd = lin(next(keys), width_global, 2 * 30)
    return {"sub": sub, "glb": glb, "wd": wd, "bd": bd[0:1, :].reshape(1, -1)}


if __name__ == "__main__":
    B, C_in, P, L = 12, 4, 8, 6
    depth_sub, width_sub = 2, 32
    depth_global, width_global = 2, 32

    key = jax.random.PRNGKey(0)
    k1, k2, k3 = jax.random.split(key, 3)
    traj = jax.random.normal(k1, (B, C_in, P), jnp.float32)
    lanes = jax.random.normal(k2, (B, C_in, P, L), jnp.float32)
    params = init_params(k3, c_in=C_in, depth_sub=depth_sub,
                         width_sub=width_sub, depth_global=depth_global,
                         width_global=width_global)

    out = padding_vectornet_forward(traj, lanes, params,
                                    depth_sub=depth_sub,
                                    depth_global=depth_global,
                                    block_b=8)
    out = jax.block_until_ready(out)
    assert out.shape == (B, 2, 30), out.shape

    ref = _reference_forward(traj, lanes, params,
                             depth_sub=depth_sub, depth_global=depth_global)
    assert jnp.allclose(out, ref, rtol=5e-3, atol=5e-3), (
        float(jnp.max(jnp.abs(out - ref))))

    print("KERNEL_OK")
</pallas_src>

<mosaic_0001>
module attributes {stable_mosaic.version = 11 : i64} {
  func.func @_vectornet_kernel(%arg0: i32, %arg1: memref<6x8x32xf32, #tpu.memory_space<vmem>>, %arg2: memref<32x256xf32, #tpu.memory_space<vmem>>, %arg3: memref<1x256xf32, #tpu.memory_space<vmem>>, %arg4: memref<256x256xf32, #tpu.memory_space<vmem>>, %arg5: memref<1x256xf32, #tpu.memory_space<vmem>>, %arg6: memref<32x96xf32, #tpu.memory_space<vmem>>, %arg7: memref<1x96xf32, #tpu.memory_space<vmem>>, %arg8: memref<32x96xf32, #tpu.memory_space<vmem>>, %arg9: memref<1x96xf32, #tpu.memory_space<vmem>>, %arg10: memref<32x128xf32, #tpu.memory_space<vmem>>, %arg11: memref<1x128xf32, #tpu.memory_space<vmem>>, %arg12: memref<48x48xf32, #tpu.memory_space<vmem>>, %arg13: memref<6x48xf32, #tpu.memory_space<vmem>>, %arg14: memref<1x6x128xf32, #tpu.memory_space<vmem>>) attributes {dimension_semantics = [#tpu.dimension_semantics<parallel>], iteration_bounds = array<i64: 2>, scalar_prefetch = 0 : i64, scratch_operands = 0 : i64, tpu.core_type = #tpu.core_type<tc>, window_params = [{transform_indices = @transform_0, window_bounds = array<i64: 6, 8, 32>}, {pipeline_mode = #tpu.pipeline_mode<synchronous>, transform_indices = @transform_1, window_bounds = array<i64: 32, 256>}, {pipeline_mode = #tpu.pipeline_mode<synchronous>, transform_indices = @transform_2, window_bounds = array<i64: 1, 256>}, {pipeline_mode = #tpu.pipeline_mode<synchronous>, transform_indices = @transform_3, window_bounds = array<i64: 256, 256>}, {pipeline_mode = #tpu.pipeline_mode<synchronous>, transform_indices = @transform_4, window_bounds = array<i64: 1, 256>}, {pipeline_mode = #tpu.pipeline_mode<synchronous>, transform_indices = @transform_5, window_bounds = array<i64: 32, 96>}, {pipeline_mode = #tpu.pipeline_mode<synchronous>, transform_indices = @transform_6, window_bounds = array<i64: 1, 96>}, {pipeline_mode = #tpu.pipeline_mode<synchronous>, transform_indices = @transform_7, window_bounds = array<i64: 32, 96>}, {pipeline_mode = #tpu.pipeline_mode<synchronous>, transform_indices = @transform_8, window_bounds = array<i64: 1, 96>}, {pipeline_mode = #tpu.pipeline_mode<synchronous>, transform_indices = @transform_9, window_bounds = array<i64: 32, 128>}, {pipeline_mode = #tpu.pipeline_mode<synchronous>, transform_indices = @transform_10, window_bounds = array<i64: 1, 128>}, {pipeline_mode = #tpu.pipeline_mode<synchronous>, transform_indices = @transform_11, window_bounds = array<i64: 48, 48>}, {pipeline_mode = #tpu.pipeline_mode<synchronous>, transform_indices = @transform_12, window_bounds = array<i64: 6, 48>}, {transform_indices = @transform_13, window_bounds = array<i64: 1, 6, 128>}]} {
    %c0 = arith.constant 0 : index
    %c0_0 = arith.constant 0 : index
    %c0_1 = arith.constant 0 : index
    %0 = vector.load %arg1[%c0, %c0_0, %c0_1] : memref<6x8x32xf32, #tpu.memory_space<vmem>>, vector<6x8x32xf32>
    %1 = vector.shape_cast %0 : vector<6x8x32xf32> to vector<48x32xf32>
    %c0_2 = arith.constant 0 : index
    %c0_3 = arith.constant 0 : index
    %2 = vector.load %arg2[%c0_2, %c0_3] : memref<32x256xf32, #tpu.memory_space<vmem>>, vector<32x256xf32>
    %c0_4 = arith.constant 0 : index
    %c0_5 = arith.constant 0 : index
    %3 = vector.load %arg3[%c0_4, %c0_5] : memref<1x256xf32, #tpu.memory_space<vmem>>, vector<1x256xf32>
    %cst = arith.constant dense<0.000000e+00> : vector<48x256xf32>
    %4 = tpu.matmul %1, %2, %cst {dimension_numbers = #tpu.dot_dimension_numbers<[1], [0], [0], [1], [0, 0, 1, 1], [], []>} : vector<48x32xf32>, vector<32x256xf32>, vector<48x256xf32> -> vector<48x256xf32>
    %5 = vector.broadcast %3 : vector<1x256xf32> to vector<48x256xf32>
    %6 = arith.addf %4, %5 : vector<48x256xf32>
    %cst_6 = arith.constant 0.000000e+00 : f32
    %7 = vector.broadcast %cst_6 : f32 to vector<48x256xf32>
    %8 = arith.maximumf %6, %7 : vector<48x256xf32>
    %c0_7 = arith.constant 0 : index
    %c0_8 = arith.constant 0 : index
    %9 = vector.load %arg4[%c0_7, %c0_8] : memref<256x256xf32, #tpu.memory_space<vmem>>, vector<256x256xf32>
    %c0_9 = arith.constant 0 : index
    %c0_10 = arith.constant 0 : index
    %10 = vector.load %arg5[%c0_9, %c0_10] : memref<1x256xf32, #tpu.memory_space<vmem>>, vector<1x256xf32>
    %cst_11 = arith.constant dense<0.000000e+00> : vector<48x256xf32>
    %11 = tpu.matmul %8, %9, %cst_11 {dimension_numbers = #tpu.dot_dimension_numbers<[1], [0], [0], [1], [0, 0, 1, 1], [], []>} : vector<48x256xf32>, vector<256x256xf32>, vector<48x256xf32> -> vector<48x256xf32>
    %12 = vector.broadcast %10 : vector<1x256xf32> to vector<48x256xf32>
    %13 = arith.addf %11, %12 : vector<48x256xf32>
    %cst_12 = arith.constant 0.000000e+00 : f32
    %14 = vector.broadcast %cst_12 : f32 to vector<48x256xf32>
    %15 = arith.maximumf %13, %14 : vector<48x256xf32>
    %16 = vector.extract_strided_slice %15 {offsets = [0, 0], sizes = [48, 32], strides = [1, 1]} : vector<48x256xf32> to vector<48x32xf32>
    %17 = vector.extract_strided_slice %15 {offsets = [0, 32], sizes = [48, 32], strides = [1, 1]} : vector<48x256xf32> to vector<48x32xf32>
    %18 = arith.maximumf %16, %17 : vector<48x32xf32>
    %19 = vector.extract_strided_slice %15 {offsets = [0, 64], sizes = [48, 32], strides = [1, 1]} : vector<48x256xf32> to vector<48x32xf32>
    %20 = arith.maximumf %18, %19 : vector<48x32xf32>
    %21 = vector.extract_strided_slice %15 {offsets = [0, 96], sizes = [48, 32], strides = [1, 1]} : vector<48x256xf32> to vector<48x32xf32>
    %22 = arith.maximumf %20, %21 : vector<48x32xf32>
    %23 = vector.extract_strided_slice %15 {offsets = [0, 128], sizes = [48, 32], strides = [1, 1]} : vector<48x256xf32> to vector<48x32xf32>
    %24 = arith.maximumf %22, %23 : vector<48x32xf32>
    %25 = vector.extract_strided_slice %15 {offsets = [0, 160], sizes = [48, 32], strides = [1, 1]} : vector<48x256xf32> to vector<48x32xf32>
    %26 = arith.maximumf %24, %25 : vector<48x32xf32>
    %27 = vector.extract_strided_slice %15 {offsets = [0, 192], sizes = [48, 32], strides = [1, 1]} : vector<48x256xf32> to vector<48x32xf32>
    %28 = arith.maximumf %26, %27 : vector<48x32xf32>
    %29 = vector.extract_strided_slice %15 {offsets = [0, 224], sizes = [48, 32], strides = [1, 1]} : vector<48x256xf32> to vector<48x32xf32>
    %30 = arith.maximumf %28, %29 : vector<48x32xf32>
    %c0_13 = arith.constant 0 : index
    %c0_14 = arith.constant 0 : index
    %31 = vector.load %arg12[%c0_13, %c0_14] : memref<48x48xf32, #tpu.memory_space<vmem>>, vector<48x48xf32>
    %c0_15 = arith.constant 0 : index
    %c0_16 = arith.constant 0 : index
    %32 = vector.load %arg6[%c0_15, %c0_16] : memref<32x96xf32, #tpu.memory_space<vmem>>, vector<32x96xf32>
    %c0_17 = arith.constant 0 : index
    %c0_18 = arith.constant 0 : index
    %33 = vector.load %arg7[%c0_17, %c0_18] : memref<1x96xf32, #tpu.memory_space<vmem>>, vector<1x96xf32>
    %cst_19 = arith.constant dense<0.000000e+00> : vector<48x96xf32>
    %34 = tpu.matmul %30, %32, %cst_19 {dimension_numbers = #tpu.dot_dimension_numbers<[1], [0], [0], [1], [0, 0, 1, 1], [], []>} : vector<48x32xf32>, vector<32x96xf32>, vector<48x96xf32> -> vector<48x96xf32>
    %35 = vector.broadcast %33 : vector<1x96xf32> to vector<48x96xf32>
    %36 = arith.addf %34, %35 : vector<48x96xf32>
    %37 = vector.extract_strided_slice %36 {offsets = [0, 0], sizes = [48, 32], strides = [1, 1]} : vector<48x96xf32> to vector<48x32xf32>
    %38 = vector.extract_strided_slice %36 {offsets = [0, 32], sizes = [48, 32], strides = [1, 1]} : vector<48x96xf32> to vector<48x32xf32>
    %39 = vector.extract_strided_slice %36 {offsets = [0, 64], sizes = [48, 32], strides = [1, 1]} : vector<48x96xf32> to vector<48x32xf32>
    %cst_20 = arith.constant dense<0.000000e+00> : vector<48x48xf32>
    %40 = tpu.matmul %37, %38, %cst_20 {dimension_numbers = #tpu.dot_dimension_numbers<[1], [1], [0], [0], [0, 0, 1, 0], [], []>} : vector<48x32xf32>, vector<48x32xf32>, vector<48x48xf32> -> vector<48x48xf32>
    %cst_21 = arith.constant 0.176776692 : f32
    %41 = vector.broadcast %cst_21 : f32 to vector<48x48xf32>
    %42 = arith.mulf %40, %41 : vector<48x48xf32>
    %43 = arith.addf %42, %31 : vector<48x48xf32>
    %cst_22 = arith.constant dense<0xFF800000> : vector<48xf32>
    %44 = vector.multi_reduction <maximumf>, %43, %cst_22 [1] : vector<48x48xf32> to vector<48xf32>
    %45 = vector.shape_cast %44 : vector<48xf32> to vector<48x1xf32>
    %46 = vector.broadcast %45 : vector<48x1xf32> to vector<48x48xf32>
    %47 = arith.subf %43, %46 : vector<48x48xf32>
    %48 = math.exp %47 : vector<48x48xf32>
    %cst_23 = arith.constant dense<0.000000e+00> : vector<48xf32>
    %49 = vector.multi_reduction <add>, %48, %cst_23 [1] : vector<48x48xf32> to vector<48xf32>
    %50 = vector.shape_cast %49 : vector<48xf32> to vector<48x1xf32>
    %51 = tpu.reciprocal %50 {approx = true} : vector<48x1xf32> -> vector<48x1xf32>
    %52 = vector.broadcast %51 : vector<48x1xf32> to vector<48x48xf32>
    %53 = arith.mulf %48, %52 : vector<48x48xf32>
    %cst_24 = arith.constant dense<0.000000e+00> : vector<48x32xf32>
    %54 = tpu.matmul %53, %39, %cst_24 {dimension_numbers = #tpu.dot_dimension_numbers<[1], [0], [0], [1], [0, 0, 1, 1], [], []>} : vector<48x48xf32>, vector<48x32xf32>, vector<48x32xf32> -> vector<48x32xf32>
    %cst_25 = arith.constant 0.000000e+00 : f32
    %55 = vector.broadcast %cst_25 : f32 to vector<48x32xf32>
    %56 = arith.maximumf %54, %55 : vector<48x32xf32>
    %c0_26 = arith.constant 0 : index
    %c0_27 = arith.constant 0 : index
    %57 = vector.load %arg8[%c0_26, %c0_27] : memref<32x96xf32, #tpu.memory_space<vmem>>, vector<32x96xf32>
    %c0_28 = arith.constant 0 : index
    %c0_29 = arith.constant 0 : index
    %58 = vector.load %arg9[%c0_28, %c0_29] : memref<1x96xf32, #tpu.memory_space<vmem>>, vector<1x96xf32>
    %cst_30 = arith.constant dense<0.000000e+00> : vector<48x96xf32>
    %59 = tpu.matmul %56, %57, %cst_30 {dimension_numbers = #tpu.dot_dimension_numbers<[1], [0], [0], [1], [0, 0, 1, 1], [], []>} : vector<48x32xf32>, vector<32x96xf32>, vector<48x96xf32> -> vector<48x96xf32>
    %60 = vector.broadcast %58 : vector<1x96xf32> to vector<48x96xf32>
    %61 = arith.addf %59, %60 : vector<48x96xf32>
    %62 = vector.extract_strided_slice %61 {offsets = [0, 0], sizes = [48, 32], strides = [1, 1]} : vector<48x96xf32> to vector<48x32xf32>
    %63 = vector.extract_strided_slice %61 {offsets = [0, 32], sizes = [48, 32], strides = [1, 1]} : vector<48x96xf32> to vector<48x32xf32>
    %64 = vector.extract_strided_slice %61 {offsets = [0, 64], sizes = [48, 32], strides = [1, 1]} : vector<48x96xf32> to vector<48x32xf32>
    %cst_31 = arith.constant dense<0.000000e+00> : vector<48x48xf32>
    %65 = tpu.matmul %62, %63, %cst_31 {dimension_numbers = #tpu.dot_dimension_numbers<[1], [1], [0], [0], [0, 0, 1, 0], [], []>} : vector<48x32xf32>, vector<48x32xf32>, vector<48x48xf32> -> vector<48x48xf32>
    %cst_32 = arith.constant 0.176776692 : f32
    %66 = vector.broadcast %cst_32 : f32 to vector<48x48xf32>
    %67 = arith.mulf %65, %66 : vector<48x48xf32>
    %68 = arith.addf %67, %31 : vector<48x48xf32>
    %cst_33 = arith.constant dense<0xFF800000> : vector<48xf32>
    %69 = vector.multi_reduction <maximumf>, %68, %cst_33 [1] : vector<48x48xf32> to vector<48xf32>
    %70 = vector.shape_cast %69 : vector<48xf32> to vector<48x1xf32>
    %71 = vector.broadcast %70 : vector<48x1xf32> to vector<48x48xf32>
    %72 = arith.subf %68, %71 : vector<48x48xf32>
    %73 = math.exp %72 : vector<48x48xf32>
    %cst_34 = arith.constant dense<0.000000e+00> : vector<48xf32>
    %74 = vector.multi_reduction <add>, %73, %cst_34 [1] : vector<48x48xf32> to vector<48xf32>
    %75 = vector.shape_cast %74 : vector<48xf32> to vector<48x1xf32>
    %76 = tpu.reciprocal %75 {approx = true} : vector<48x1xf32> -> vector<48x1xf32>
    %77 = vector.broadcast %76 : vector<48x1xf32> to vector<48x48xf32>
    %78 = arith.mulf %73, %77 : vector<48x48xf32>
    %cst_35 = arith.constant dense<0.000000e+00> : vector<48x32xf32>
    %79 = tpu.matmul %78, %64, %cst_35 {dimension_numbers = #tpu.dot_dimension_numbers<[1], [0], [0], [1], [0, 0, 1, 1], [], []>} : vector<48x48xf32>, vector<48x32xf32>, vector<48x32xf32> -> vector<48x32xf32>
    %cst_36 = arith.constant 0.000000e+00 : f32
    %80 = vector.broadcast %cst_36 : f32 to vector<48x32xf32>
    %81 = arith.maximumf %79, %80 : vector<48x32xf32>
    %c0_37 = arith.constant 0 : index
    %c0_38 = arith.constant 0 : index
    %82 = vector.load %arg13[%c0_37, %c0_38] : memref<6x48xf32, #tpu.memory_space<vmem>>, vector<6x48xf32>
    %cst_39 = arith.constant dense<0.000000e+00> : vector<6x32xf32>
    %83 = tpu.matmul %82, %81, %cst_39 {dimension_numbers = #tpu.dot_dimension_numbers<[1], [0], [0], [1], [0, 0, 1, 1], [], []>} : vector<6x48xf32>, vector<48x32xf32>, vector<6x32xf32> -> vector<6x32xf32>
    %c0_40 = arith.constant 0 : index
    %c0_41 = arith.constant 0 : index
    %84 = vector.load %arg10[%c0_40, %c0_41] : memref<32x128xf32, #tpu.memory_space<vmem>>, vector<32x128xf32>
    %cst_42 = arith.constant dense<0.000000e+00> : vector<6x128xf32>
    %85 = tpu.matmul %83, %84, %cst_42 {dimension_numbers = #tpu.dot_dimension_numbers<[1], [0], [0], [1], [0, 0, 1, 1], [], []>} : vector<6x32xf32>, vector<32x128xf32>, vector<6x128xf32> -> vector<6x128xf32>
    %c0_43 = arith.constant 0 : index
    %c0_44 = arith.constant 0 : index
    %86 = vector.load %arg11[%c0_43, %c0_44] : memref<1x128xf32, #tpu.memory_space<vmem>>, vector<1x128xf32>
    %87 = vector.broadcast %86 : vector<1x128xf32> to vector<6x128xf32>
    %88 = arith.addf %85, %87 : vector<6x128xf32>
    %89 = vector.shape_cast %88 : vector<6x128xf32> to vector<1x6x128xf32>
    %c0_45 = arith.constant 0 : index
    %c0_46 = arith.constant 0 : index
    %c0_47 = arith.constant 0 : index
    %90 = vector.load %arg14[%c0_45, %c0_46, %c0_47] : memref<1x6x128xf32, #tpu.memory_space<vmem>>, vector<1x6x128xf32>
    tpu.vector_store %arg14[%c0_45, %c0_46, %c0_47], %89 {strides = array<i32>} : memref<1x6x128xf32, #tpu.memory_space<vmem>>, vector<1x6x128xf32>,
    return
  }
  func.func @transform_0(%arg0: i32) -> (i32, i32, i32) {
    %c0_i32 = arith.constant 0 : i32
    %c0_i32_0 = arith.constant 0 : i32
    %c0_i32_1 = arith.constant 0 : i32
    return %arg0, %c0_i32, %c0_i32_0 : i32, i32, i32
  }
  func.func @transform_1(%arg0: i32) -> (i32, i32) {
    %c0_i32 = arith.constant 0 : i32
    %c0_i32_0 = arith.constant 0 : i32
    %c0_i32_1 = arith.constant 0 : i32
    return %c0_i32, %c0_i32_0 : i32, i32
  }
  func.func @transform_2(%arg0: i32) -> (i32, i32) {
    %c0_i32 = arith.constant 0 : i32
    %c0_i32_0 = arith.constant 0 : i32
    %c0_i32_1 = arith.constant 0 : i32
    return %c0_i32, %c0_i32_0 : i32, i32
  }
  func.func @transform_3(%arg0: i32) -> (i32, i32) {
    %c0_i32 = arith.constant 0 : i32
    %c0_i32_0 = arith.constant 0 : i32
    %c0_i32_1 = arith.constant 0 : i32
    return %c0_i32, %c0_i32_0 : i32, i32
  }
  func.func @transform_4(%arg0: i32) -> (i32, i32) {
    %c0_i32 = arith.constant 0 : i32
    %c0_i32_0 = arith.constant 0 : i32
    %c0_i32_1 = arith.constant 0 : i32
    return %c0_i32, %c0_i32_0 : i32, i32
  }
  func.func @transform_5(%arg0: i32) -> (i32, i32) {
    %c0_i32 = arith.constant 0 : i32
    %c0_i32_0 = arith.constant 0 : i32
    %c0_i32_1 = arith.constant 0 : i32
    return %c0_i32, %c0_i32_0 : i32, i32
  }
  func.func @transform_6(%arg0: i32) -> (i32, i32) {
    %c0_i32 = arith.constant 0 : i32
    %c0_i32_0 = arith.constant 0 : i32
    %c0_i32_1 = arith.constant 0 : i32
    return %c0_i32, %c0_i32_0 : i32, i32
  }
  func.func @transform_7(%arg0: i32) -> (i32, i32) {
    %c0_i32 = arith.constant 0 : i32
    %c0_i32_0 = arith.constant 0 : i32
    %c0_i32_1 = arith.constant 0 : i32
    return %c0_i32, %c0_i32_0 : i32, i32
  }
  func.func @transform_8(%arg0: i32) -> (i32, i32) {
    %c0_i32 = arith.constant 0 : i32
    %c0_i32_0 = arith.constant 0 : i32
    %c0_i32_1 = arith.constant 0 : i32
    return %c0_i32, %c0_i32_0 : i32, i32
  }
  func.func @transform_9(%arg0: i32) -> (i32, i32) {
    %c0_i32 = arith.constant 0 : i32
    %c0_i32_0 = arith.constant 0 : i32
    %c0_i32_1 = arith.constant 0 : i32
    return %c0_i32, %c0_i32_0 : i32, i32
  }
  func.func @transform_10(%arg0: i32) -> (i32, i32) {
    %c0_i32 = arith.constant 0 : i32
    %c0_i32_0 = arith.constant 0 : i32
    %c0_i32_1 = arith.constant 0 : i32
    return %c0_i32, %c0_i32_0 : i32, i32
  }
  func.func @transform_11(%arg0: i32) -> (i32, i32) {
    %c0_i32 = arith.constant 0 : i32
    %c0_i32_0 = arith.constant 0 : i32
    %c0_i32_1 = arith.constant 0 : i32
    return %c0_i32, %c0_i32_0 : i32, i32
  }
  func.func @transform_12(%arg0: i32) -> (i32, i32) {
    %c0_i32 = arith.constant 0 : i32
    %c0_i32_0 = arith.constant 0 : i32
    %c0_i32_1 = arith.constant 0 : i32
    return %c0_i32, %c0_i32_0 : i32, i32
  }
  func.func @transform_13(%arg0: i32) -> (i32, i32, i32) {
    %c0_i32 = arith.constant 0 : i32
    %c0_i32_0 = arith.constant 0 : i32
    %c0_i32_1 = arith.constant 0 : i32
    return %arg0, %c0_i32, %c0_i32_0 : i32, i32, i32
  }
}

module attributes {stable_mosaic.version = 11 : i64} {
  func.func @_vectornet_kernel(%arg0: i32, %arg1: memref<6x8x32xf32, #tpu.memory_space<vmem>>, %arg2: memref<32x256xf32, #tpu.memory_space<vmem>>, %arg3: memref<1x256xf32, #tpu.memory_space<vmem>>, %arg4: memref<256x256xf32, #tpu.memory_space<vmem>>, %arg5: memref<1x256xf32, #tpu.memory_space<vmem>>, %arg6: memref<32x96xf32, #tpu.memory_space<vmem>>, %arg7: memref<1x96xf32, #tpu.memory_space<vmem>>, %arg8: memref<32x96xf32, #tpu.memory_space<vmem>>, %arg9: memref<1x96xf32, #tpu.memory_space<vmem>>, %arg10: memref<32x128xf32, #tpu.memory_space<vmem>>, %arg11: memref<1x128xf32, #tpu.memory_space<vmem>>, %arg12: memref<48x48xf32, #tpu.memory_space<vmem>>, %arg13: memref<6x48xf32, #tpu.memory_space<vmem>>, %arg14: memref<1x6x128xf32, #tpu.memory_space<vmem>>) attributes {dimension_semantics = [#tpu.dimension_semantics<parallel>], iteration_bounds = array<i64: 2>, scalar_prefetch = 0 : i64, scratch_operands = 0 : i64, tpu.core_type = #tpu.core_type<tc>, window_params = [{transform_indices = @transform_0, window_bounds = array<i64: 6, 8, 32>}, {pipeline_mode = #tpu.pipeline_mode<synchronous>, transform_indices = @transform_1, window_bounds = array<i64: 32, 256>}, {pipeline_mode = #tpu.pipeline_mode<synchronous>, transform_indices = @transform_2, window_bounds = array<i64: 1, 256>}, {pipeline_mode = #tpu.pipeline_mode<synchronous>, transform_indices = @transform_3, window_bounds = array<i64: 256, 256>}, {pipeline_mode = #tpu.pipeline_mode<synchronous>, transform_indices = @transform_4, window_bounds = array<i64: 1, 256>}, {pipeline_mode = #tpu.pipeline_mode<synchronous>, transform_indices = @transform_5, window_bounds = array<i64: 32, 96>}, {pipeline_mode = #tpu.pipeline_mode<synchronous>, transform_indices = @transform_6, window_bounds = array<i64: 1, 96>}, {pipeline_mode = #tpu.pipeline_mode<synchronous>, transform_indices = @transform_7, window_bounds = array<i64: 32, 96>}, {pipeline_mode = #tpu.pipeline_mode<synchronous>, transform_indices = @transform_8, window_bounds = array<i64: 1, 96>}, {pipeline_mode = #tpu.pipeline_mode<synchronous>, transform_indices = @transform_9, window_bounds = array<i64: 32, 128>}, {pipeline_mode = #tpu.pipeline_mode<synchronous>, transform_indices = @transform_10, window_bounds = array<i64: 1, 128>}, {pipeline_mode = #tpu.pipeline_mode<synchronous>, transform_indices = @transform_11, window_bounds = array<i64: 48, 48>}, {pipeline_mode = #tpu.pipeline_mode<synchronous>, transform_indices = @transform_12, window_bounds = array<i64: 6, 48>}, {transform_indices = @transform_13, window_bounds = array<i64: 1, 6, 128>}]} {
    %c0 = arith.constant 0 : index
    %c0_0 = arith.constant 0 : index
    %c0_1 = arith.constant 0 : index
    %0 = vector.load %arg1[%c0, %c0_0, %c0_1] : memref<6x8x32xf32, #tpu.memory_space<vmem>>, vector<6x8x32xf32>
    %1 = vector.shape_cast %0 : vector<6x8x32xf32> to vector<48x32xf32>
    %c0_2 = arith.constant 0 : index
    %c0_3 = arith.constant 0 : index
    %2 = vector.load %arg2[%c0_2, %c0_3] : memref<32x256xf32, #tpu.memory_space<vmem>>, vector<32x256xf32>
    %c0_4 = arith.constant 0 : index
    %c0_5 = arith.constant 0 : index
    %3 = vector.load %arg3[%c0_4, %c0_5] : memref<1x256xf32, #tpu.memory_space<vmem>>, vector<1x256xf32>
    %cst = arith.constant dense<0.000000e+00> : vector<48x256xf32>
    %4 = tpu.matmul %1, %2, %cst {dimension_numbers = #tpu.dot_dimension_numbers<[1], [0], [0], [1], [0, 0, 1, 1], [], []>} : vector<48x32xf32>, vector<32x256xf32>, vector<48x256xf32> -> vector<48x256xf32>
    %5 = vector.broadcast %3 : vector<1x256xf32> to vector<48x256xf32>
    %6 = arith.addf %4, %5 : vector<48x256xf32>
    %cst_6 = arith.constant 0.000000e+00 : f32
    %7 = vector.broadcast %cst_6 : f32 to vector<48x256xf32>
    %8 = arith.maximumf %6, %7 : vector<48x256xf32>
    %c0_7 = arith.constant 0 : index
    %c0_8 = arith.constant 0 : index
    %9 = vector.load %arg4[%c0_7, %c0_8] : memref<256x256xf32, #tpu.memory_space<vmem>>, vector<256x256xf32>
    %c0_9 = arith.constant 0 : index
    %c0_10 = arith.constant 0 : index
    %10 = vector.load %arg5[%c0_9, %c0_10] : memref<1x256xf32, #tpu.memory_space<vmem>>, vector<1x256xf32>
    %cst_11 = arith.constant dense<0.000000e+00> : vector<48x256xf32>
    %11 = tpu.matmul %8, %9, %cst_11 {dimension_numbers = #tpu.dot_dimension_numbers<[1], [0], [0], [1], [0, 0, 1, 1], [], []>} : vector<48x256xf32>, vector<256x256xf32>, vector<48x256xf32> -> vector<48x256xf32>
    %12 = vector.broadcast %10 : vector<1x256xf32> to vector<48x256xf32>
    %13 = arith.addf %11, %12 : vector<48x256xf32>
    %cst_12 = arith.constant 0.000000e+00 : f32
    %14 = vector.broadcast %cst_12 : f32 to vector<48x256xf32>
    %15 = arith.maximumf %13, %14 : vector<48x256xf32>
    %16 = vector.extract_strided_slice %15 {offsets = [0, 0], sizes = [48, 32], strides = [1, 1]} : vector<48x256xf32> to vector<48x32xf32>
    %17 = vector.extract_strided_slice %15 {offsets = [0, 32], sizes = [48, 32], strides = [1, 1]} : vector<48x256xf32> to vector<48x32xf32>
    %18 = arith.maximumf %16, %17 : vector<48x32xf32>
    %19 = vector.extract_strided_slice %15 {offsets = [0, 64], sizes = [48, 32], strides = [1, 1]} : vector<48x256xf32> to vector<48x32xf32>
    %20 = arith.maximumf %18, %19 : vector<48x32xf32>
    %21 = vector.extract_strided_slice %15 {offsets = [0, 96], sizes = [48, 32], strides = [1, 1]} : vector<48x256xf32> to vector<48x32xf32>
    %22 = arith.maximumf %20, %21 : vector<48x32xf32>
    %23 = vector.extract_strided_slice %15 {offsets = [0, 128], sizes = [48, 32], strides = [1, 1]} : vector<48x256xf32> to vector<48x32xf32>
    %24 = arith.maximumf %22, %23 : vector<48x32xf32>
    %25 = vector.extract_strided_slice %15 {offsets = [0, 160], sizes = [48, 32], strides = [1, 1]} : vector<48x256xf32> to vector<48x32xf32>
    %26 = arith.maximumf %24, %25 : vector<48x32xf32>
    %27 = vector.extract_strided_slice %15 {offsets = [0, 192], sizes = [48, 32], strides = [1, 1]} : vector<48x256xf32> to vector<48x32xf32>
    %28 = arith.maximumf %26, %27 : vector<48x32xf32>
    %29 = vector.extract_strided_slice %15 {offsets = [0, 224], sizes = [48, 32], strides = [1, 1]} : vector<48x256xf32> to vector<48x32xf32>
    %30 = arith.maximumf %28, %29 : vector<48x32xf32>
    %c0_13 = arith.constant 0 : index
    %c0_14 = arith.constant 0 : index
    %31 = vector.load %arg12[%c0_13, %c0_14] : memref<48x48xf32, #tpu.memory_space<vmem>>, vector<48x48xf32>
    %c0_15 = arith.constant 0 : index
    %c0_16 = arith.constant 0 : index
    %32 = vector.load %arg6[%c0_15, %c0_16] : memref<32x96xf32, #tpu.memory_space<vmem>>, vector<32x96xf32>
    %c0_17 = arith.constant 0 : index
    %c0_18 = arith.constant 0 : index
    %33 = vector.load %arg7[%c0_17, %c0_18] : memref<1x96xf32, #tpu.memory_space<vmem>>, vector<1x96xf32>
    %cst_19 = arith.constant dense<0.000000e+00> : vector<48x96xf32>
    %34 = tpu.matmul %30, %32, %cst_19 {dimension_numbers = #tpu.dot_dimension_numbers<[1], [0], [0], [1], [0, 0, 1, 1], [], []>} : vector<48x32xf32>, vector<32x96xf32>, vector<48x96xf32> -> vector<48x96xf32>
    %35 = vector.broadcast %33 : vector<1x96xf32> to vector<48x96xf32>
    %36 = arith.addf %34, %35 : vector<48x96xf32>
    %37 = vector.extract_strided_slice %36 {offsets = [0, 0], sizes = [48, 32], strides = [1, 1]} : vector<48x96xf32> to vector<48x32xf32>
    %38 = vector.extract_strided_slice %36 {offsets = [0, 32], sizes = [48, 32], strides = [1, 1]} : vector<48x96xf32> to vector<48x32xf32>
    %39 = vector.extract_strided_slice %36 {offsets = [0, 64], sizes = [48, 32], strides = [1, 1]} : vector<48x96xf32> to vector<48x32xf32>
    %cst_20 = arith.constant dense<0.000000e+00> : vector<48x48xf32>
    %40 = tpu.matmul %37, %38, %cst_20 {dimension_numbers = #tpu.dot_dimension_numbers<[1], [1], [0], [0], [0, 0, 1, 0], [], []>} : vector<48x32xf32>, vector<48x32xf32>, vector<48x48xf32> -> vector<48x48xf32>
    %cst_21 = arith.constant 0.176776692 : f32
    %41 = vector.broadcast %cst_21 : f32 to vector<48x48xf32>
    %42 = arith.mulf %40, %41 : vector<48x48xf32>
    %43 = arith.addf %42, %31 : vector<48x48xf32>
    %cst_22 = arith.constant dense<0xFF800000> : vector<48xf32>
    %44 = vector.multi_reduction <maximumf>, %43, %cst_22 [1] : vector<48x48xf32> to vector<48xf32>
    %45 = vector.shape_cast %44 : vector<48xf32> to vector<48x1xf32>
    %46 = vector.broadcast %45 : vector<48x1xf32> to vector<48x48xf32>
    %47 = arith.subf %43, %46 : vector<48x48xf32>
    %48 = math.exp %47 : vector<48x48xf32>
    %cst_23 = arith.constant dense<0.000000e+00> : vector<48xf32>
    %49 = vector.multi_reduction <add>, %48, %cst_23 [1] : vector<48x48xf32> to vector<48xf32>
    %50 = vector.shape_cast %49 : vector<48xf32> to vector<48x1xf32>
    %51 = tpu.reciprocal %50 {approx = true} : vector<48x1xf32> -> vector<48x1xf32>
    %52 = vector.broadcast %51 : vector<48x1xf32> to vector<48x48xf32>
    %53 = arith.mulf %48, %52 : vector<48x48xf32>
    %cst_24 = arith.constant dense<0.000000e+00> : vector<48x32xf32>
    %54 = tpu.matmul %53, %39, %cst_24 {dimension_numbers = #tpu.dot_dimension_numbers<[1], [0], [0], [1], [0, 0, 1, 1], [], []>} : vector<48x48xf32>, vector<48x32xf32>, vector<48x32xf32> -> vector<48x32xf32>
    %cst_25 = arith.constant 0.000000e+00 : f32
    %55 = vector.broadcast %cst_25 : f32 to vector<48x32xf32>
    %56 = arith.maximumf %54, %55 : vector<48x32xf32>
    %c0_26 = arith.constant 0 : index
    %c0_27 = arith.constant 0 : index
    %57 = vector.load %arg8[%c0_26, %c0_27] : memref<32x96xf32, #tpu.memory_space<vmem>>, vector<32x96xf32>
    %c0_28 = arith.constant 0 : index
    %c0_29 = arith.constant 0 : index
    %58 = vector.load %arg9[%c0_28, %c0_29] : memref<1x96xf32, #tpu.memory_space<vmem>>, vector<1x96xf32>
    %cst_30 = arith.constant dense<0.000000e+00> : vector<48x96xf32>
    %59 = tpu.matmul %56, %57, %cst_30 {dimension_numbers = #tpu.dot_dimension_numbers<[1], [0], [0], [1], [0, 0, 1, 1], [], []>} : vector<48x32xf32>, vector<32x96xf32>, vector<48x96xf32> -> vector<48x96xf32>
    %60 = vector.broadcast %58 : vector<1x96xf32> to vector<48x96xf32>
    %61 = arith.addf %59, %60 : vector<48x96xf32>
    %62 = vector.extract_strided_slice %61 {offsets = [0, 0], sizes = [48, 32], strides = [1, 1]} : vector<48x96xf32> to vector<48x32xf32>
    %63 = vector.extract_strided_slice %61 {offsets = [0, 32], sizes = [48, 32], strides = [1, 1]} : vector<48x96xf32> to vector<48x32xf32>
    %64 = vector.extract_strided_slice %61 {offsets = [0, 64], sizes = [48, 32], strides = [1, 1]} : vector<48x96xf32> to vector<48x32xf32>
    %cst_31 = arith.constant dense<0.000000e+00> : vector<48x48xf32>
    %65 = tpu.matmul %62, %63, %cst_31 {dimension_numbers = #tpu.dot_dimension_numbers<[1], [1], [0], [0], [0, 0, 1, 0], [], []>} : vector<48x32xf32>, vector<48x32xf32>, vector<48x48xf32> -> vector<48x48xf32>
    %cst_32 = arith.constant 0.176776692 : f32
    %66 = vector.broadcast %cst_32 : f32 to vector<48x48xf32>
    %67 = arith.mulf %65, %66 : vector<48x48xf32>
    %68 = arith.addf %67, %31 : vector<48x48xf32>
    %cst_33 = arith.constant dense<0xFF800000> : vector<48xf32>
    %69 = vector.multi_reduction <maximumf>, %68, %cst_33 [1] : vector<48x48xf32> to vector<48xf32>
    %70 = vector.shape_cast %69 : vector<48xf32> to vector<48x1xf32>
    %71 = vector.broadcast %70 : vector<48x1xf32> to vector<48x48xf32>
    %72 = arith.subf %68, %71 : vector<48x48xf32>
    %73 = math.exp %72 : vector<48x48xf32>
    %cst_34 = arith.constant dense<0.000000e+00> : vector<48xf32>
    %74 = vector.multi_reduction <add>, %73, %cst_34 [1] : vector<48x48xf32> to vector<48xf32>
    %75 = vector.shape_cast %74 : vector<48xf32> to vector<48x1xf32>
    %76 = tpu.reciprocal %75 {approx = true} : vector<48x1xf32> -> vector<48x1xf32>
    %77 = vector.broadcast %76 : vector<48x1xf32> to vector<48x48xf32>
    %78 = arith.mulf %73, %77 : vector<48x48xf32>
    %cst_35 = arith.constant dense<0.000000e+00> : vector<48x32xf32>
    %79 = tpu.matmul %78, %64, %cst_35 {dimension_numbers = #tpu.dot_dimension_numbers<[1], [0], [0], [1], [0, 0, 1, 1], [], []>} : vector<48x48xf32>, vector<48x32xf32>, vector<48x32xf32> -> vector<48x32xf32>
    %cst_36 = arith.constant 0.000000e+00 : f32
    %80 = vector.broadcast %cst_36 : f32 to vector<48x32xf32>
    %81 = arith.maximumf %79, %80 : vector<48x32xf32>
    %c0_37 = arith.constant 0 : index
    %c0_38 = arith.constant 0 : index
    %82 = vector.load %arg13[%c0_37, %c0_38] : memref<6x48xf32, #tpu.memory_space<vmem>>, vector<6x48xf32>
    %cst_39 = arith.constant dense<0.000000e+00> : vector<6x32xf32>
    %83 = tpu.matmul %82, %81, %cst_39 {dimension_numbers = #tpu.dot_dimension_numbers<[1], [0], [0], [1], [0, 0, 1, 1], [], []>} : vector<6x48xf32>, vector<48x32xf32>, vector<6x32xf32> -> vector<6x32xf32>
    %c0_40 = arith.constant 0 : index
    %c0_41 = arith.constant 0 : index
    %84 = vector.load %arg10[%c0_40, %c0_41] : memref<32x128xf32, #tpu.memory_space<vmem>>, vector<32x128xf32>
    %cst_42 = arith.constant dense<0.000000e+00> : vector<6x128xf32>
    %85 = tpu.matmul %83, %84, %cst_42 {dimension_numbers = #tpu.dot_dimension_numbers<[1], [0], [0], [1], [0, 0, 1, 1], [], []>} : vector<6x32xf32>, vector<32x128xf32>, vector<6x128xf32> -> vector<6x128xf32>
    %c0_43 = arith.constant 0 : index
    %c0_44 = arith.constant 0 : index
    %86 = vector.load %arg11[%c0_43, %c0_44] : memref<1x128xf32, #tpu.memory_space<vmem>>, vector<1x128xf32>
    %87 = vector.broadcast %86 : vector<1x128xf32> to vector<6x128xf32>
    %88 = arith.addf %85, %87 : vector<6x128xf32>
    %89 = vector.shape_cast %88 : vector<6x128xf32> to vector<1x6x128xf32>
    %c0_45 = arith.constant 0 : index
    %c0_46 = arith.constant 0 : index
    %c0_47 = arith.constant 0 : index
    %90 = vector.load %arg14[%c0_45, %c0_46, %c0_47] : memref<1x6x128xf32, #tpu.memory_space<vmem>>, vector<1x6x128xf32>
    tpu.vector_store %arg14[%c0_45, %c0_46, %c0_47], %89 {strides = array<i32>} : memref<1x6x128xf32, #tpu.memory_space<vmem>>, vector<1x6x128xf32>,
    return
  }
  func.func @transform_0(%arg0: i32) -> (i32, i32, i32) {
    %c0_i32 = arith.constant 0 : i32
    %c0_i32_0 = arith.constant 0 : i32
    %c0_i32_1 = arith.constant 0 : i32
    return %arg0, %c0_i32, %c0_i32_0 : i32, i32, i32
  }
  func.func @transform_1(%arg0: i32) -> (i32, i32) {
    %c0_i32 = arith.constant 0 : i32
    %c0_i32_0 = arith.constant 0 : i32
    %c0_i32_1 = arith.constant 0 : i32
    return %c0_i32, %c0_i32_0 : i32, i32
  }
  func.func @transform_2(%arg0: i32) -> (i32, i32) {
    %c0_i32 = arith.constant 0 : i32
    %c0_i32_0 = arith.constant 0 : i32
    %c0_i32_1 = arith.constant 0 : i32
    return %c0_i32, %c0_i32_0 : i32, i32
  }
  func.func @transform_3(%arg0: i32) -> (i32, i32) {
    %c0_i32 = arith.constant 0 : i32
    %c0_i32_0 = arith.constant 0 : i32
    %c0_i32_1 = arith.constant 0 : i32
    return %c0_i32, %c0_i32_0 : i32, i32
  }
  func.func @transform_4(%arg0: i32) -> (i32, i32) {
    %c0_i32 = arith.constant 0 : i32
    %c0_i32_0 = arith.constant 0 : i32
    %c0_i32_1 = arith.constant 0 : i32
    return %c0_i32, %c0_i32_0 : i32, i32
  }
  func.func @transform_5(%arg0: i32) -> (i32, i32) {
    %c0_i32 = arith.constant 0 : i32
    %c0_i32_0 = arith.constant 0 : i32
    %c0_i32_1 = arith.constant 0 : i32
    return %c0_i32, %c0_i32_0 : i32, i32
  }
  func.func @transform_6(%arg0: i32) -> (i32, i32) {
    %c0_i32 = arith.constant 0 : i32
    %c0_i32_0 = arith.constant 0 : i32
    %c0_i32_1 = arith.constant 0 : i32
    return %c0_i32, %c0_i32_0 : i32, i32
  }
  func.func @transform_7(%arg0: i32) -> (i32, i32) {
    %c0_i32 = arith.constant 0 : i32
    %c0_i32_0 = arith.constant 0 : i32
    %c0_i32_1 = arith.constant 0 : i32
    return %c0_i32, %c0_i32_0 : i32, i32
  }
  func.func @transform_8(%arg0: i32) -> (i32, i32) {
    %c0_i32 = arith.constant 0 : i32
    %c0_i32_0 = arith.constant 0 : i32
    %c0_i32_1 = arith.constant 0 : i32
    return %c0_i32, %c0_i32_0 : i32, i32
  }
  func.func @transform_9(%arg0: i32) -> (i32, i32) {
    %c0_i32 = arith.constant 0 : i32
    %c0_i32_0 = arith.constant 0 : i32
    %c0_i32_1 = arith.constant 0 : i32
    return %c0_i32, %c0_i32_0 : i32, i32
  }
  func.func @transform_10(%arg0: i32) -> (i32, i32) {
    %c0_i32 = arith.constant 0 : i32
    %c0_i32_0 = arith.constant 0 : i32
    %c0_i32_1 = arith.constant 0 : i32
    return %c0_i32, %c0_i32_0 : i32, i32
  }
  func.func @transform_11(%arg0: i32) -> (i32, i32) {
    %c0_i32 = arith.constant 0 : i32
    %c0_i32_0 = arith.constant 0 : i32
    %c0_i32_1 = arith.constant 0 : i32
    return %c0_i32, %c0_i32_0 : i32, i32
  }
  func.func @transform_12(%arg0: i32) -> (i32, i32) {
    %c0_i32 = arith.constant 0 : i32
    %c0_i32_0 = arith.constant 0 : i32
    %c0_i32_1 = arith.constant 0 : i32
    return %c0_i32, %c0_i32_0 : i32, i32
  }
  func.func @transform_13(%arg0: i32) -> (i32, i32, i32) {
    %c0_i32 = arith.constant 0 : i32
    %c0_i32_0 = arith.constant 0 : i32
    %c0_i32_1 = arith.constant 0 : i32
    return %arg0, %c0_i32, %c0_i32_0 : i32, i32, i32
  }
}

</mosaic_0001>

<llo_original>
// kernel: tpu_custom_call.1
$region0: #{tpu_custom_call.1}
  #allocation0 [shape = 'u32[]', space=smem, size = 0x4, offset = 0x4, fixed_abs, tag = 'smem constant byte address 0x4 - core index']
  #allocation1 [shape = 'u32[144,128]{1,0:T(1,128)}', space=vmem, size = 0x12000, scoped, tag = 'internal scratch']
  %s0 = inlined_call_operand.hbm [shape: f32[12,8,32], index: 0, kind: input, shape index: {}]
  %s1 = inlined_call_operand.hbm [shape: f32[32,256], index: 1, kind: input, shape index: {}]
  %s2 = inlined_call_operand.hbm [shape: f32[1,256], index: 2, kind: input, shape index: {}]
  %s3 = inlined_call_operand.hbm [shape: f32[256,256], index: 3, kind: input, shape index: {}]
  %s4 = inlined_call_operand.hbm [shape: f32[1,256], index: 4, kind: input, shape index: {}]
  %s5 = inlined_call_operand.hbm [shape: f32[32,96], index: 5, kind: input, shape index: {}]
  %s6 = inlined_call_operand.vmem [shape: f32[1,96], index: 6, kind: input, shape index: {}]
  %s7 = inlined_call_operand.hbm [shape: f32[32,96], index: 7, kind: input, shape index: {}]
  %s8 = inlined_call_operand.hbm [shape: f32[1,96], index: 8, kind: input, shape index: {}]
  %s9 = inlined_call_operand.vmem [shape: f32[32,128], index: 9, kind: input, shape index: {}]
  %s10 = inlined_call_operand.hbm [shape: f32[1,128], index: 10, kind: input, shape index: {}]
  %s11 = inlined_call_operand.hbm [shape: f32[48,48], index: 11, kind: input, shape index: {}]
  %s12 = inlined_call_operand.vmem [shape: f32[6,48], index: 12, kind: input, shape index: {}]
  %s13 = inlined_call_operand.vmem [shape: f32[2,6,128], index: 13, kind: output, shape index: {}]
  %s14 = sld [smem:[#allocation0]]
  $region125: #{tpu_custom_call.1} parent=0
    _
  %s16 = ssub.s32 1, %s14
  %s17 = scalar_select 0, %s16, %s14
  $region1: #{tpu_custom_call.1} parent=0
    #allocation2 [shape = 'u8[49152]{0}', space=vmem, size = 0xc000, scoped, tag = 'input window, operand 0']
    #allocation3 [shape = 's32[2]{0}', space=sflag, size = 0x8, scoped, tag = 'scoped memory for tpu_custom_call.1']
    #allocation4 [shape = 'u8[32768]{0}', space=vmem, size = 0x8000, scoped, tag = 'input window, operand 1, single buffered']
    #allocation5 [shape = 's32[1]{0}', space=sflag, size = 0x4, scoped, tag = 'scoped memory for tpu_custom_call.1']
    #allocation6 [shape = 'u8[1024]{0}', space=vmem, size = 0x400, scoped, tag = 'input window, operand 2, single buffered']
    #allocation7 [shape = 'u8[262144]{0}', space=vmem, size = 0x40000, scoped, tag = 'input window, operand 3, single buffered']
    #allocation8 [shape = 's32[1]{0}', space=sflag, size = 0x4, scoped, tag = 'scoped memory for tpu_custom_call.1']
    #allocation9 [shape = 'u8[1024]{0}', space=vmem, size = 0x400, scoped, tag = 'input window, operand 4, single buffered']
    #allocation10 [shape = 'u8[16384]{0}', space=vmem, size = 0x4000, scoped, tag = 'input window, operand 5, single buffered']
    #allocation11 [shape = 's32[1]{0}', space=sflag, size = 0x4, scoped, tag = 'scoped memory for tpu_custom_call.1']
    #allocation12 [shape = 'u8[16384]{0}', space=vmem, size = 0x4000, scoped, tag = 'input window, operand 7, single buffered']
    #allocation13 [shape = 'u8[512]{0}', space=vmem, size = 0x400, scoped, tag = 'input window, operand 8, single buffered']
    #allocation14 [shape = 's32[1]{0}', space=sflag, size = 0x4, scoped, tag = 'scoped memory for tpu_custom_call.1']
    #allocation15 [shape = 'u8[512]{0}', space=vmem, size = 0x400, scoped, tag = 'input window, operand 10, single buffered']
    #allocation16 [shape = 'u8[24576]{0}', space=vmem, size = 0x6000, scoped, tag = 'input window, operand 11, single buffered']
    #allocation17 [shape = 's32[1]{0}', space=sflag, size = 0x4, scoped, tag = 'scoped memory for tpu_custom_call.1']
    %18 = vsyncpa [#allocation3], 0
    %s19 = scalar_lea.sflag [#allocation3], 1
    %20 = vsyncpa %s19, 0
    %21 = vsyncpa [#allocation5], 0
    %22 = vsyncpa [#allocation8], 0
    %23 = vsyncpa [#allocation11], 0
    %24 = vsyncpa [#allocation14], 0
    %25 = vsyncpa [#allocation17], 0
    loop: start=0, step=1, limit=4
    $region2: #{tpu_custom_call.1} parent=1 // loop_pre_header
      _
    $region3: #{tpu_custom_call.1} parent=1 // loop_header
      %s27 = sphi 0, %s31
      %p28 = scmp.ge.s32.totalorder %s27, 4
      %s37 = sphi 0, %s39
      %s40 = sphi 0, %s37
      %s41 = sphi 0, %s40
      %s57 = sphi 0, %s41
      %s61 = sphi 0, %s61
      %s63 = sphi 0, %s61
      %s64 = sphi 0, %s63
      %s78 = sphi 0, %s64
      %s82 = sphi 0, %s82
      %s84 = sphi 0, %s82
      %s85 = sphi 0, %s84
      %s99 = sphi 0, %s85
      %s103 = sphi 0, %s103
      %s105 = sphi 0, %s103
      %s106 = sphi 0, %s105
      %s120 = sphi 0, %s106
      %s124 = sphi 0, %s124
      %s126 = sphi 0, %s124
      %s127 = sphi 0, %s126
      %s141 = sphi 0, %s127
      %s145 = sphi 0, %s145
      %s147 = sphi 0, %s145
      %s148 = sphi 0, %s147
      %s162 = sphi 0, %s148
      %s166 = sphi 0, %s166
      %s168 = sphi 0, %s166
      %s169 = sphi 0, %s168
      %s183 = sphi 0, %s169
      %s187 = sphi 0, %s187
      %s189 = sphi 0, %s187
      %s190 = sphi 0, %s189
      %s204 = sphi 0, %s190
      %s208 = sphi 0, %s208
      %s210 = sphi 0, %s208
      %s211 = sphi 0, %s210
      %s225 = sphi 0, %s211
      %s229 = sphi 0, %s229
      %s231 = sphi 0, %s229
      %s232 = sphi 0, %s231
      %s246 = sphi 0, %s232
      %s250 = sphi 0, %s250
      %s252 = sphi 0, %s250
      %s253 = sphi 0, %s252
      %s267 = sphi 0, %s253
      %s271 = sphi 0, %s271
      %s273 = sphi 0, %s271
      %s274 = sphi 0, %s273
      %s288 = sphi 0, %s274
      %s292 = sphi 0, %s292
      %s294 = sphi 0, %s292
      %s295 = sphi 0, %s294
      %s309 = sphi 0, %s295
      %s315 = sphi 0, %s317
      %s318 = sphi 0, %s315
      %s319 = sphi 0, %s318
      %s335 = sphi 0, %s319
    $region4: #{tpu_custom_call.1} parent=1 // loop_header_branch
      %30 = sbr.rel (%p28) target = $region8
    $region5: #{tpu_custom_call.1} parent=1 // loop_body
      %s32 = ssub.s32 %s27, 1
      %s33 = ssub.s32 %s27, 2
      %s34 = sadd.s32 %s27, 1
      %s35 = ssub.s32 %s27, %s34
      %p36 = scmp.eq.s32.totalorder %s35, 0
      %s38 = sadd.s32 %s37, 1
      %s39 = scalar_select %p36, %s37, %s38
      %p42 = pneg %p36
      %p43 = scmp.eq.s32.totalorder %s27, 1
      %p44 = por %p42, %p43
      %p45 = scmp.ne.s32.totalorder %s37, %s40
      %p46 = scmp.eq.s32.totalorder %s27, 0
      %p47 = por %p45, %p46
      %p48 = scmp.ne.s32.totalorder %s37, %s40
      %p49 = scmp.eq.s32.totalorder %s32, 1
      %p50 = por %p48, %p49
      %p51 = scmp.ne.s32.totalorder %s40, %s41
      %p52 = scmp.eq.s32.totalorder %s32, 0
      %p53 = por %p51, %p52
      %p54 = scmp.ne.s32.totalorder %s40, %s41
      %p55 = scmp.eq.s32.totalorder %s33, 1
      %p56 = por %p54, %p55
      %p58 = scmp.ne.s32.totalorder %s41, %s57
      %p59 = scmp.eq.s32.totalorder %s33, 0
      %p60 = por %p58, %p59
      %s62 = sadd.s32 %s61, 1
      %p65 = scmp.eq.s32.totalorder %s27, 1
      %p66 = scmp.ne.s32.totalorder %s61, %s63
      %p67 = scmp.eq.s32.totalorder %s27, 0
      %p68 = por %p66, %p67
      %p69 = scmp.ne.s32.totalorder %s61, %s63
      %p70 = scmp.eq.s32.totalorder %s32, 1
      %p71 = por %p69, %p70
      %p72 = scmp.ne.s32.totalorder %s63, %s64
      %p73 = scmp.eq.s32.totalorder %s32, 0
      %p74 = por %p72, %p73
      %p75 = scmp.ne.s32.totalorder %s63, %s64
      %p76 = scmp.eq.s32.totalorder %s33, 1
      %p77 = por %p75, %p76
      %p79 = scmp.ne.s32.totalorder %s64, %s78
      %p80 = scmp.eq.s32.totalorder %s33, 0
      %p81 = por %p79, %p80
      %s83 = sadd.s32 %s82, 1
      %p86 = scmp.eq.s32.totalorder %s27, 1
      %p87 = scmp.ne.s32.totalorder %s82, %s84
      %p88 = scmp.eq.s32.totalorder %s27, 0
      %p89 = por %p87, %p88
      %p90 = scmp.ne.s32.totalorder %s82, %s84
      %p91 = scmp.eq.s32.totalorder %s32, 1
      %p92 = por %p90, %p91
      %p93 = scmp.ne.s32.totalorder %s84, %s85
      %p94 = scmp.eq.s32.totalorder %s32, 0
      %p95 = por %p93, %p94
      %p96 = scmp.ne.s32.totalorder %s84, %s85
      %p97 = scmp.eq.s32.totalorder %s33, 1
      %p98 = por %p96, %p97
      %p100 = scmp.ne.s32.totalorder %s85, %s99
      %p101 = scmp.eq.s32.totalorder %s33, 0
      %p102 = por %p100, %p101
      %s104 = sadd.s32 %s103, 1
      %p107 = scmp.eq.s32.totalorder %s27, 1
      %p108 = scmp.ne.s32.totalorder %s103, %s105
      %p109 = scmp.eq.s32.totalorder %s27, 0
      %p110 = por %p108, %p109
      %p111 = scmp.ne.s32.totalorder %s103, %s105
      %p112 = scmp.eq.s32.totalorder %s32, 1
      %p113 = por %p111, %p112
      %p114 = scmp.ne.s32.totalorder %s105, %s106
      %p115 = scmp.eq.s32.totalorder %s32, 0
      %p116 = por %p114, %p115
      %p117 = scmp.ne.s32.totalorder %s105, %s106
      %p118 = scmp.eq.s32.totalorder %s33, 1
      %p119 = por %p117, %p118
      %p121 = scmp.ne.s32.totalorder %s106, %s120
      %p122 = scmp.eq.s32.totalorder %s33, 0
      %p123 = por %p121, %p122
      %s125 = sadd.s32 %s124, 1
      %p128 = scmp.eq.s32.totalorder %s27, 1
      %p129 = scmp.ne.s32.totalorder %s124, %s126
      %p130 = scmp.eq.s32.totalorder %s27, 0
      %p131 = por %p129, %p130
      %p132 = scmp.ne.s32.totalorder %s124, %s126
      %p133 = scmp.eq.s32.totalorder %s32, 1
      %p134 = por %p132, %p133
      %p135 = scmp.ne.s32.totalorder %s126, %s127
      %p136 = scmp.eq.s32.totalorder %s32, 0
      %p137 = por %p135, %p136
      %p138 = scmp.ne.s32.totalorder %s126, %s127
      %p139 = scmp.eq.s32.totalorder %s33, 1
      %p140 = por %p138, %p139
      %p142 = scmp.ne.s32.totalorder %s127, %s141
      %p143 = scmp.eq.s32.totalorder %s33, 0
      %p144 = por %p142, %p143
      %s146 = sadd.s32 %s145, 1
      %p149 = scmp.eq.s32.totalorder %s27, 1
      %p150 = scmp.ne.s32.totalorder %s145, %s147
      %p151 = scmp.eq.s32.totalorder %s27, 0
      %p152 = por %p150, %p151
      %p153 = scmp.ne.s32.totalorder %s145, %s147
      %p154 = scmp.eq.s32.totalorder %s32, 1
      %p155 = por %p153, %p154
      %p156 = scmp.ne.s32.totalorder %s147, %s148
      %p157 = scmp.eq.s32.totalorder %s32, 0
      %p158 = por %p156, %p157
      %p159 = scmp.ne.s32.totalorder %s147, %s148
      %p160 = scmp.eq.s32.totalorder %s33, 1
      %p161 = por %p159, %p160
      %p163 = scmp.ne.s32.totalorder %s148, %s162
      %p164 = scmp.eq.s32.totalorder %s33, 0
      %p165 = por %p163, %p164
      %s167 = sadd.s32 %s166, 1
      %p170 = scmp.eq.s32.totalorder %s27, 1
      %p171 = scmp.ne.s32.totalorder %s166, %s168
      %p172 = scmp.eq.s32.totalorder %s27, 0
      %p173 = por %p171, %p172
      %p174 = scmp.ne.s32.totalorder %s166, %s168
      %p175 = scmp.eq.s32.totalorder %s32, 1
      %p176 = por %p174, %p175
      %p177 = scmp.ne.s32.totalorder %s168, %s169
      %p178 = scmp.eq.s32.totalorder %s32, 0
      %p179 = por %p177, %p178
      %p180 = scmp.ne.s32.totalorder %s168, %s169
      %p181 = scmp.eq.s32.totalorder %s33, 1
      %p182 = por %p180, %p181
      %p184 = scmp.ne.s32.totalorder %s169, %s183
      %p185 = scmp.eq.s32.totalorder %s33, 0
      %p186 = por %p184, %p185
      %s188 = sadd.s32 %s187, 1
      %p191 = scmp.eq.s32.totalorder %s27, 1
      %p192 = scmp.ne.s32.totalorder %s187, %s189
      %p193 = scmp.eq.s32.totalorder %s27, 0
      %p194 = por %p192, %p193
      %p195 = scmp.ne.s32.totalorder %s187, %s189
      %p196 = scmp.eq.s32.totalorder %s32, 1
      %p197 = por %p195, %p196
      %p198 = scmp.ne.s32.totalorder %s189, %s190
      %p199 = scmp.eq.s32.totalorder %s32, 0
      %p200 = por %p198, %p199
      %p201 = scmp.ne.s32.totalorder %s189, %s190
      %p202 = scmp.eq.s32.totalorder %s33, 1
      %p203 = por %p201, %p202
      %p205 = scmp.ne.s32.totalorder %s190, %s204
      %p206 = scmp.eq.s32.totalorder %s33, 0
      %p207 = por %p205, %p206
      %s209 = sadd.s32 %s208, 1
      %p212 = scmp.eq.s32.totalorder %s27, 1
      %p213 = scmp.ne.s32.totalorder %s208, %s210
      %p214 = scmp.eq.s32.totalorder %s27, 0
      %p215 = por %p213, %p214
      %p216 = scmp.ne.s32.totalorder %s208, %s210
      %p217 = scmp.eq.s32.totalorder %s32, 1
      %p218 = por %p216, %p217
      %p219 = scmp.ne.s32.totalorder %s210, %s211
      %p220 = scmp.eq.s32.totalorder %s32, 0
      %p221 = por %p219, %p220
      %p222 = scmp.ne.s32.totalorder %s210, %s211
      %p223 = scmp.eq.s32.totalorder %s33, 1
      %p224 = por %p222, %p223
      %p226 = scmp.ne.s32.totalorder %s211, %s225
      %p227 = scmp.eq.s32.totalorder %s33, 0
      %p228 = por %p226, %p227
      %s230 = sadd.s32 %s229, 1
      %p233 = scmp.eq.s32.totalorder %s27, 1
      %p234 = scmp.ne.s32.totalorder %s229, %s231
      %p235 = scmp.eq.s32.totalorder %s27, 0
      %p236 = por %p234, %p235
      %p237 = scmp.ne.s32.totalorder %s229, %s231
      %p238 = scmp.eq.s32.totalorder %s32, 1
      %p239 = por %p237, %p238
      %p240 = scmp.ne.s32.totalorder %s231, %s232
      %p241 = scmp.eq.s32.totalorder %s32, 0
      %p242 = por %p240, %p241
      %p243 = scmp.ne.s32.totalorder %s231, %s232
      %p244 = scmp.eq.s32.totalorder %s33, 1
      %p245 = por %p243, %p244
      %p247 = scmp.ne.s32.totalorder %s232, %s246
      %p248 = scmp.eq.s32.totalorder %s33, 0
      %p249 = por %p247, %p248
      %s251 = sadd.s32 %s250, 1
      %p254 = scmp.eq.s32.totalorder %s27, 1
      %p255 = scmp.ne.s32.totalorder %s250, %s252
      %p256 = scmp.eq.s32.totalorder %s27, 0
      %p257 = por %p255, %p256
      %p258 = scmp.ne.s32.totalorder %s250, %s252
      %p259 = scmp.eq.s32.totalorder %s32, 1
      %p260 = por %p258, %p259
      %p261 = scmp.ne.s32.totalorder %s252, %s253
      %p262 = scmp.eq.s32.totalorder %s32, 0
      %p263 = por %p261, %p262
      %p264 = scmp.ne.s32.totalorder %s252, %s253
      %p265 = scmp.eq.s32.totalorder %s33, 1
      %p266 = por %p264, %p265
      %p268 = scmp.ne.s32.totalorder %s253, %s267
      %p269 = scmp.eq.s32.totalorder %s33, 0
      %p270 = por %p268, %p269
      %s272 = sadd.s32 %s271, 1
      %p275 = scmp.eq.s32.totalorder %s27, 1
      %p276 = scmp.ne.s32.totalorder %s271, %s273
      %p277 = scmp.eq.s32.totalorder %s27, 0
      %p278 = por %p276, %p277
      %p279 = scmp.ne.s32.totalorder %s271, %s273
      %p280 = scmp.eq.s32.totalorder %s32, 1
      %p281 = por %p279, %p280
      %p282 = scmp.ne.s32.totalorder %s273, %s274
      %p283 = scmp.eq.s32.totalorder %s32, 0
      %p284 = por %p282, %p283
      %p285 = scmp.ne.s32.totalorder %s273, %s274
      %p286 = scmp.eq.s32.totalorder %s33, 1
      %p287 = por %p285, %p286
      %p289 = scmp.ne.s32.totalorder %s274, %s288
      %p290 = scmp.eq.s32.totalorder %s33, 0
      %p291 = por %p289, %p290
      %s293 = sadd.s32 %s292, 1
      %p296 = scmp.eq.s32.totalorder %s27, 1
      %p297 = scmp.ne.s32.totalorder %s292, %s294
      %p298 = scmp.eq.s32.totalorder %s27, 0
      %p299 = por %p297, %p298
      %p300 = scmp.ne.s32.totalorder %s292, %s294
      %p301 = scmp.eq.s32.totalorder %s32, 1
      %p302 = por %p300, %p301
      %p303 = scmp.ne.s32.totalorder %s294, %s295
      %p304 = scmp.eq.s32.totalorder %s32, 0
      %p305 = por %p303, %p304
      %p306 = scmp.ne.s32.totalorder %s294, %s295
      %p307 = scmp.eq.s32.totalorder %s33, 1
      %p308 = por %p306, %p307
      %p310 = scmp.ne.s32.totalorder %s295, %s309
      %p311 = scmp.eq.s32.totalorder %s33, 0
      %p312 = por %p310, %p311
      %s313 = ssub.s32 %s27, %s34
      %p314 = scmp.eq.s32.totalorder %s313, 0
      %s316 = sadd.s32 %s315, 1
      %s317 = scalar_select %p314, %s315, %s316
      %p320 = pneg %p314
      %p321 = scmp.eq.s32.totalorder %s27, 1
      %p322 = por %p320, %p321
      %p323 = scmp.ne.s32.totalorder %s315, %s318
      %p324 = scmp.eq.s32.totalorder %s27, 0
      %p325 = por %p323, %p324
      %p326 = scmp.ne.s32.totalorder %s315, %s318
      %p327 = scmp.eq.s32.totalorder %s32, 1
      %p328 = por %p326, %p327
      %p329 = scmp.ne.s32.totalorder %s318, %s319
      %p330 = scmp.eq.s32.totalorder %s32, 0
      %p331 = por %p329, %p330
      %p332 = scmp.ne.s32.totalorder %s318, %s319
      %p333 = scmp.eq.s32.totalorder %s33, 1
      %p334 = por %p332, %p333
      %p336 = scmp.ne.s32.totalorder %s319, %s335
      %p337 = scmp.eq.s32.totalorder %s33, 0
      %p338 = por %p336, %p337
      %p339 = scmp.le.s32.totalorder 1, %s27
      %p340 = scmp.lt.s32.totalorder %s27, 3
      %p341 = pnand %p339, %p340
      %p342 = pneg %p341
      // Predicated region
      $region9: #{tpu_custom_call.1} parent=5 // pred_check
        _
      $region10: #{tpu_custom_call.1} parent=5 // pred_check_branch
        %344 = sbr.rel (%p341) target = $region12
      $region11: #{tpu_custom_call.1} parent=5 // pred_region
        %s345 = ssub.s32 %s27, 1
        // Predicated region
        $region13: #{tpu_custom_call.1} parent=11 // pred_check
          %p346 = pneg %p74
        $region14: #{tpu_custom_call.1} parent=11 // pred_check_branch
          %348 = sbr.rel (%p346) target = $region16
        $region15: #{tpu_custom_call.1} parent=11 // pred_region
          %s350 = ssub.s32 1024, 1024
          %351 = vsyncadd [#allocation5], %s350
          %s352 = sshll.u32 [#allocation4], 4
          %s353 = int_to_ptr.vmem [resolvable:$true] %s352
          %358 = dma.hbm_to_vmem [thread:$0]  %s1, 1024, %s353, [#allocation5], 256, 256, 16
        $region16: #{tpu_custom_call.1} parent=11 // pred_fallthru
          _
        // Predicated region
        $region17: #{tpu_custom_call.1} parent=11 // pred_check
          %p359 = pneg %p95
        $region18: #{tpu_custom_call.1} parent=11 // pred_check_branch
          %361 = sbr.rel (%p359) target = $region20
        $region19: #{tpu_custom_call.1} parent=11 // pred_region
          %s363 = ssub.s32 32, 32
          %364 = vsyncadd [#allocation5], %s363
          %s366 = sshll.u32 [#allocation6], 4
          %s367 = int_to_ptr.vmem [resolvable:$true] %s366
          %369 = dma.hbm_to_vmem [thread:$0]  %s2, 32, %s367, [#allocation5]
        $region20: #{tpu_custom_call.1} parent=11 // pred_fallthru
          _
        // Predicated region
        $region21: #{tpu_custom_call.1} parent=11 // pred_check
          %p370 = pneg %p116
        $region22: #{tpu_custom_call.1} parent=11 // pred_check_branch
          %372 = sbr.rel (%p370) target = $region24
        $region23: #{tpu_custom_call.1} parent=11 // pred_region
          %s374 = ssub.s32 8192, 8192
          %375 = vsyncadd [#allocation8], %s374
          %s376 = sshll.u32 [#allocation7], 4
          %s377 = int_to_ptr.vmem [resolvable:$true] %s376
          %382 = dma.hbm_to_vmem [thread:$0]  %s3, 8192, %s377, [#allocation8], 256, 256, 16
        $region24: #{tpu_custom_call.1} parent=11 // pred_fallthru
          _
        // Predicated region
        $region25: #{tpu_custom_call.1} parent=11 // pred_check
          %p383 = pneg %p137
        $region26: #{tpu_custom_call.1} parent=11 // pred_check_branch
          %385 = sbr.rel (%p383) target = $region28
        $region27: #{tpu_custom_call.1} parent=11 // pred_region
          %s387 = ssub.s32 32, 32
          %388 = vsyncadd [#allocation8], %s387
          %s390 = sshll.u32 [#allocation9], 4
          %s391 = int_to_ptr.vmem [resolvable:$true] %s390
          %393 = dma.hbm_to_vmem [thread:$0]  %s4, 32, %s391, [#allocation8]
        $region28: #{tpu_custom_call.1} parent=11 // pred_fallthru
          _
        // Predicated region
        $region29: #{tpu_custom_call.1} parent=11 // pred_check
          %p394 = pneg %p158
        $region30: #{tpu_custom_call.1} parent=11 // pred_check_branch
          %396 = sbr.rel (%p394) target = $region32
        $region31: #{tpu_custom_call.1} parent=11 // pred_region
          %s398 = ssub.s32 512, 512
          %399 = vsyncadd [#allocation11], %s398
          %s400 = sshll.u32 [#allocation10], 4
          %s401 = int_to_ptr.vmem [resolvable:$true] %s400
          %406 = dma.hbm_to_vmem [thread:$0]  %s5, 512, %s401, [#allocation11], 128, 128, 8
        $region32: #{tpu_custom_call.1} parent=11 // pred_fallthru
          _
        // Predicated region
        $region33: #{tpu_custom_call.1} parent=11 // pred_check
          %p407 = pneg %p179
        $region34: #{tpu_custom_call.1} parent=11 // pred_check_branch
          %409 = sbr.rel (%p407) target = $region36
        $region35: #{tpu_custom_call.1} parent=11 // pred_region
          _
        $region36: #{tpu_custom_call.1} parent=11 // pred_fallthru
          _
        // Predicated region
        $region37: #{tpu_custom_call.1} parent=11 // pred_check
          %p410 = pneg %p200
        $region38: #{tpu_custom_call.1} parent=11 // pred_check_branch
          %412 = sbr.rel (%p410) target = $region40
        $region39: #{tpu_custom_call.1} parent=11 // pred_region
          %s414 = ssub.s32 512, 512
          %415 = vsyncadd [#allocation11], %s414
          %s416 = sshll.u32 [#allocation12], 4
          %s417 = int_to_ptr.vmem [resolvable:$true] %s416
          %422 = dma.hbm_to_vmem [thread:$0]  %s7, 512, %s417, [#allocation11], 128, 128, 8
        $region40: #{tpu_custom_call.1} parent=11 // pred_fallthru
          _
        // Predicated region
        $region41: #{tpu_custom_call.1} parent=11 // pred_check
          %p423 = pneg %p221
        $region42: #{tpu_custom_call.1} parent=11 // pred_check_branch
          %425 = sbr.rel (%p423) target = $region44
        $region43: #{tpu_custom_call.1} parent=11 // pred_region
          %s427 = ssub.s32 16, 16
          %428 = vsyncadd [#allocation14], %s427
          %s430 = sshll.u32 [#allocation13], 4
          %s431 = int_to_ptr.vmem [resolvable:$true] %s430
          %433 = dma.hbm_to_vmem [thread:$0]  %s8, 16, %s431, [#allocation14]
        $region44: #{tpu_custom_call.1} parent=11 // pred_fallthru
          _
        // Predicated region
        $region45: #{tpu_custom_call.1} parent=11 // pred_check
          %p434 = pneg %p242
        $region46: #{tpu_custom_call.1} parent=11 // pred_check_branch
          %436 = sbr.rel (%p434) target = $region48
        $region47: #{tpu_custom_call.1} parent=11 // pred_region
          _
        $region48: #{tpu_custom_call.1} parent=11 // pred_fallthru
          _
        // Predicated region
        $region49: #{tpu_custom_call.1} parent=11 // pred_check
          %p437 = pneg %p263
        $region50: #{tpu_custom_call.1} parent=11 // pred_check_branch
          %439 = sbr.rel (%p437) target = $region52
        $region51: #{tpu_custom_call.1} parent=11 // pred_region
          %s441 = ssub.s32 16, 16
          %442 = vsyncadd [#allocation14], %s441
          %s444 = sshll.u32 [#allocation15], 4
          %s445 = int_to_ptr.vmem [resolvable:$true] %s444
          %447 = dma.hbm_to_vmem [thread:$0]  %s10, 16, %s445, [#allocation14]
        $region52: #{tpu_custom_call.1} parent=11 // pred_fallthru
          _
        // Predicated region
        $region53: #{tpu_custom_call.1} parent=11 // pred_check
          %p448 = pneg %p284
        $region54: #{tpu_custom_call.1} parent=11 // pred_check_branch
          %450 = sbr.rel (%p448) target = $region56
        $region55: #{tpu_custom_call.1} parent=11 // pred_region
          %s452 = ssub.s32 768, 768
          %453 = vsyncadd [#allocation17], %s452
          %s454 = sshll.u32 [#allocation16], 4
          %s455 = int_to_ptr.vmem [resolvable:$true] %s454
          %460 = dma.hbm_to_vmem [thread:$0]  %s11, 768, %s455, [#allocation17], 128, 128, 8
        $region56: #{tpu_custom_call.1} parent=11 // pred_fallthru
          _
        // Predicated region
        $region57: #{tpu_custom_call.1} parent=11 // pred_check
          %p461 = pneg %p305
        $region58: #{tpu_custom_call.1} parent=11 // pred_check_branch
          %463 = sbr.rel (%p461) target = $region60
        $region59: #{tpu_custom_call.1} parent=11 // pred_region
          _
        $region60: #{tpu_custom_call.1} parent=11 // pred_fallthru
          _
      $region12: #{tpu_custom_call.1} parent=5 // pred_fallthru
        _
      %p464 = scmp.lt.s32.totalorder %s27, 2
      // Predicated region
      $region61: #{tpu_custom_call.1} parent=5 // pred_check
        %p465 = pneg %p464
      $region62: #{tpu_custom_call.1} parent=5 // pred_check_branch
        %467 = sbr.rel (%p465) target = $region64
      $region63: #{tpu_custom_call.1} parent=5 // pred_region
        // Predicated region
        $region65: #{tpu_custom_call.1} parent=63 // pred_check
          %p468 = pneg %p47
        $region66: #{tpu_custom_call.1} parent=63 // pred_check_branch
          %470 = sbr.rel (%p468) target = $region68
        $region67: #{tpu_custom_call.1} parent=63 // pred_region
          %s471 = sand.u32 %s37, 1
          %s472 = scalar_lea.sflag [#allocation3], %s471
          %s473 = sand.u32 %s37, 1
          %s474 = smul.addr %s473, 48
          %s475 = scalar_lea.vmem [#allocation2], %s474
          %s476 = smul.u32 6, %s27
          %s478 = ssub.s32 768, 768
          %479 = vsyncadd %s472, %s478
          %s480 = smul.addr %s476, 128
          %s481 = scalar_lea.hbm %s0, %s480
          %s482 = sshll.u32 %s475, 4
          %s483 = int_to_ptr.vmem [resolvable:$true] %s482
          %488 = dma.hbm_to_vmem [thread:$0]  %s481, 768, %s483, %s472, 128, 128, 8
        $region68: #{tpu_custom_call.1} parent=63 // pred_fallthru
          _
      $region64: #{tpu_custom_call.1} parent=5 // pred_fallthru
        _
      %p489 = scmp.le.s32.totalorder 1, %s27
      %p490 = scmp.lt.s32.totalorder %s27, 3
      %p491 = pnand %p489, %p490
      %p492 = pneg %p491
      // Predicated region
      $region69: #{tpu_custom_call.1} parent=5 // pred_check
        _
      $region70: #{tpu_custom_call.1} parent=5 // pred_check_branch
        %494 = sbr.rel (%p491) target = $region72
      $region71: #{tpu_custom_call.1} parent=5 // pred_region
        %s495 = ssub.s32 %s27, 1
        %s496 = sand.u32 %s40, 1
        %s497 = scalar_lea.sflag [#allocation3], %s496
        %s498 = sand.u32 %s40, 1
        %s499 = smul.addr %s498, 48
        %s500 = scalar_lea.vmem [#allocation2], %s499
        // Predicated region
        $region73: #{tpu_custom_call.1} parent=71 // pred_check
          %p501 = pneg %p53
        $region74: #{tpu_custom_call.1} parent=71 // pred_check_branch
          %503 = sbr.rel (%p501) target = $region76
        $region75: #{tpu_custom_call.1} parent=71 // pred_region
          %504 = dma.done %s497, 768
        $region76: #{tpu_custom_call.1} parent=71 // pred_fallthru
          _
        // Predicated region
        $region77: #{tpu_custom_call.1} parent=71 // pred_check
          %p505 = pneg %p74
        $region78: #{tpu_custom_call.1} parent=71 // pred_check_branch
          %507 = sbr.rel (%p505) target = $region80
        $region79: #{tpu_custom_call.1} parent=71 // pred_region
          %508 = dma.done [#allocation5], 1024
        $region80: #{tpu_custom_call.1} parent=71 // pred_fallthru
          _
        // Predicated region
        $region81: #{tpu_custom_call.1} parent=71 // pred_check
          %p509 = pneg %p95
        $region82: #{tpu_custom_call.1} parent=71 // pred_check_branch
          %511 = sbr.rel (%p509) target = $region84
        $region83: #{tpu_custom_call.1} parent=71 // pred_region
          %512 = dma.done [#allocation5], 32
        $region84: #{tpu_custom_call.1} parent=71 // pred_fallthru
          _
        // Predicated region
        $region85: #{tpu_custom_call.1} parent=71 // pred_check
          %p513 = pneg %p116
        $region86: #{tpu_custom_call.1} parent=71 // pred_check_branch
          %515 = sbr.rel (%p513) target = $region88
        $region87: #{tpu_custom_call.1} parent=71 // pred_region
          %516 = dma.done [#allocation8], 8192
        $region88: #{tpu_custom_call.1} parent=71 // pred_fallthru
          _
        // Predicated region
        $region89: #{tpu_custom_call.1} parent=71 // pred_check
          %p517 = pneg %p137
        $region90: #{tpu_custom_call.1} parent=71 // pred_check_branch
          %519 = sbr.rel (%p517) target = $region92
        $region91: #{tpu_custom_call.1} parent=71 // pred_region
          %520 = dma.done [#allocation8], 32
        $region92: #{tpu_custom_call.1} parent=71 // pred_fallthru
          _
        // Predicated region
        $region93: #{tpu_custom_call.1} parent=71 // pred_check
          %p521 = pneg %p158
        $region94: #{tpu_custom_call.1} parent=71 // pred_check_branch
          %523 = sbr.rel (%p521) target = $region96
        $region95: #{tpu_custom_call.1} parent=71 // pred_region
          %524 = dma.done [#allocation11], 512
        $region96: #{tpu_custom_call.1} parent=71 // pred_fallthru
          _
        // Predicated region
        $region97: #{tpu_custom_call.1} parent=71 // pred_check
          %p525 = pneg %p200
        $region98: #{tpu_custom_call.1} parent=71 // pred_check_branch
          %527 = sbr.rel (%p525) target = $region100
        $region99: #{tpu_custom_call.1} parent=71 // pred_region
          %528 = dma.done [#allocation11], 512
        $region100: #{tpu_custom_call.1} parent=71 // pred_fallthru
          _
        // Predicated region
        $region101: #{tpu_custom_call.1} parent=71 // pred_check
          %p529 = pneg %p221
        $region102: #{tpu_custom_call.1} parent=71 // pred_check_branch
          %531 = sbr.rel (%p529) target = $region104
        $region103: #{tpu_custom_call.1} parent=71 // pred_region
          %532 = dma.done [#allocation14], 16
        $region104: #{tpu_custom_call.1} parent=71 // pred_fallthru
          _
        // Predicated region
        $region105: #{tpu_custom_call.1} parent=71 // pred_check
          %p533 = pneg %p263
        $region106: #{tpu_custom_call.1} parent=71 // pred_check_branch
          %535 = sbr.rel (%p533) target = $region108
        $region107: #{tpu_custom_call.1} parent=71 // pred_region
          %536 = dma.done [#allocation14], 16
        $region108: #{tpu_custom_call.1} parent=71 // pred_fallthru
          _
        // Predicated region
        $region109: #{tpu_custom_call.1} parent=71 // pred_check
          %p537 = pneg %p284
        $region110: #{tpu_custom_call.1} parent=71 // pred_check_branch
          %539 = sbr.rel (%p537) target = $region112
        $region111: #{tpu_custom_call.1} parent=71 // pred_region
          %540 = dma.done [#allocation17], 768
        $region112: #{tpu_custom_call.1} parent=71 // pred_fallthru
          _
        %s541 = sand.u32 %s40, 1
        %s542 = scalar_lea.sflag [#allocation3], %s541
        %s543 = sand.u32 %s40, 1
        %s544 = smul.addr %s543, 48
        %s545 = scalar_lea.vmem [#allocation2], %s544
        %p546 = pneg %p53
        %p547 = pneg %p50
        %p548 = pneg %p74
        %p549 = pneg %p71
        %p550 = pneg %p95
        %p551 = pneg %p92
        %p552 = pneg %p116
        %p553 = pneg %p113
        %p554 = pneg %p137
        %p555 = pneg %p134
        %p556 = pneg %p158
        %p557 = pneg %p155
        %p558 = pneg %p179
        %p559 = pneg %p176
        %p560 = pneg %p200
        %p561 = pneg %p197
        %p562 = pneg %p221
        %p563 = pneg %p218
        %p564 = pneg %p242
        %p565 = pneg %p239
        %p566 = pneg %p263
        %p567 = pneg %p260
        %p568 = pneg %p284
        %p569 = pneg %p281
        %p570 = pneg %p305
        %p571 = pneg %p302
        %p572 = pneg %p331
        %p573 = pneg %p328
        %p574 = scmp.lt.s32.totalorder %s32, 1
        %s575 = scalar_select %p574, %s32, 1
        %s576 = smul.addr %s575, 8
        %s577 = scalar_lea.vmem %s13, %s576
        %s578 = smul.u32 6, %s32
        %p579 = scmp.lt.s32.totalorder %s32, 1
        %s580 = scalar_select %p579, %s32, 1
        %s581 = smul.addr %s580, 8
        %s582 = scalar_lea.vmem %s13, %s581
        %v583 = vld [vmem:[%s500] sm:$0xff]
        %v584 = vld [vmem:[%s500 + $0x8] sm:$0xff]
        %v585 = vld [vmem:[%s500 + $0x10] sm:$0xff]
        %v586 = vld [vmem:[%s500 + $0x18] sm:$0xff]
        %v587 = vld [vmem:[%s500 + $0x20] sm:$0xff]
        %v588 = vld [vmem:[%s500 + $0x28] sm:$0xff]
        %v589 = vld [vmem:[#allocation4] sm:$0xff]
        %v590 = vld [vmem:[#allocation4 + $0x8] sm:$0xff]
        %v591 = vld [vmem:[#allocation4 + $0x10] sm:$0xff]
        %v592 = vld [vmem:[#allocation4 + $0x18] sm:$0xff]
        %v593 = vld [vmem:[#allocation4 + $0x20] sm:$0xff]
        %v594 = vld [vmem:[#allocation4 + $0x28] sm:$0xff]
        %v595 = vld [vmem:[#allocation4 + $0x30] sm:$0xff]
        %v596 = vld [vmem:[#allocation4 + $0x38] sm:$0xff]
        %v597 = vld [vmem:[#allocation6] sm:$0x3]
        %v599 = vlaneseq
        %v600 = vshrl.u32 %v599, 7
        %v601 = vsub.s32 0, %v600
        %v602 = vrot.slane %v597, %v601
        %v603 = vlaneseq
        %v604 = vshrl.u32 %v603, 7
        %v605 = vsub.s32 1, %v604
        %v606 = vrot.slane %v597, %v605
        %vm609 = vcmask 261120
        %v611 = vsel %vm609, %v583, 0
        %v614 = vsel %vm609, %v584, 0
        %v617 = vsel %vm609, %v585, 0
        %v620 = vsel %vm609, %v586, 0
        %v623 = vsel %vm609, %v587, 0
        %v626 = vsel %vm609, %v588, 0
        %628 = vmatprep.subr.mxu0 %v590
        %629 = vmatpush1.msra.mxu0 %v589
        %630 = vmatprep.subr.mxu0 %v592
        %631 = vmatpush1.msra.mxu0 %v591
        %632 = vmatprep.subr.mxu0 %v594
        %633 = vmatpush1.msra.mxu0 %v593
        %634 = vmatprep.subr.mxu0 %v596
        %635 = vmatpush1.msra.mxu0 %v595
        %636 = vmatprep.subr.mxu0 0.0
        %637 = vmatpush1.msra.mxu0 0.0
        %638 = vmatprep.subr.mxu0 0.0
        %639 = vmatpush1.msra.mxu0 0.0
        %640 = vmatprep.subr.mxu0 0.0
        %641 = vmatpush1.msra.mxu0 0.0
        %642 = vmatprep.subr.mxu0 0.0
        %643 = vmatpush1.msra.mxu0 0.0
        %644 = vmatprep.subr.mxu0 0.0
        %645 = vmatpush1.msra.mxu0 0.0
        %646 = vmatprep.subr.mxu0 0.0
        %647 = vmatpush1.msra.mxu0 0.0
        %648 = vmatprep.subr.mxu0 0.0
        %649 = vmatpush1.msra.mxu0 0.0
        %650 = vmatprep.subr.mxu0 0.0
        %651 = vmatpush1.msra.mxu0 0.0
        %652 = vmatprep.subr.mxu0 0.0
        %653 = vmatpush1.msra.mxu0 0.0
        %654 = vmatprep.subr.mxu0 0.0
        %655 = vmatpush1.msra.mxu0 0.0
        %656 = vmatprep.subr.mxu0 0.0
        %657 = vmatpush1.msra.mxu0 0.0
        %658 = vmatprep.subr.mxu0 0.0
        %659 = vmatpush1.msra.mxu0 0.0
        %660 = vmatprep.subr.mxu0 0.0
        %661 = vmatpush1.msra.mxu0 0.0
        %662 = vmatprep.subr.mxu0 0.0
        %663 = vmatpush1.msra.mxu0 0.0
        %664 = vmatprep.subr.mxu0 0.0
        %665 = vmatpush1.msra.mxu0 0.0
        %666 = vmatprep.subr.mxu0 0.0
        %667 = vmatpush1.msra.mxu0 0.0
        %668 = vmatprep.subr.mxu0 0.0
        %669 = vmatpush1.msra.mxu0 0.0
        %670 = vmatprep.subr.mxu0 0.0
        %671 = vmatpush1.msra.mxu0 0.0
        %672 = vmatprep.subr.mxu0 0.0
        %673 = vmatpush1.msra.mxu0 0.0
        %674 = vmatprep.subr.mxu0 0.0
        %675 = vmatpush1.msra.mxu0 0.0
        %676 = vmatprep.subr.mxu0 0.0
        %677 = vmatpush1.msra.mxu0 0.0
        %678 = vmatprep.subr.mxu0 0.0
        %679 = vmatpush1.msra.mxu0 0.0
        %680 = vmatprep.subr.mxu0 0.0
        %681 = vmatpush1.msra.mxu0 0.0
        %682 = vmatprep.subr.mxu0 0.0
        %683 = vmatpush1.msra.mxu0 0.0
        %684 = vmatprep.subr.mxu0 0.0
        %685 = vmatpush1.msra.mxu0 0.0
        %686 = vmatprep.subr.mxu0 0.0
        %687 = vmatpush1.msra.mxu0 0.0
        %688 = vmatprep.subr.mxu0 0.0
        %689 = vmatpush1.msra.mxu0 0.0
        %690 = vmatprep.subr.mxu0 0.0
        %691 = vmatpush1.msra.mxu0 0.0
        %692 = vmatprep.mubr.f32.mxu0 0.0
        %693 = vmatmul.mubr.f32.gmra.mrb[0].mxu0 %v611
        %v694 = vpop.f32.mrb[0].mxu0
        %v695 = vadd.f32 %v602, %v694
        %v696 = vpop.f32.mrb[0].mxu0
        %v697 = vadd.f32 %v606, %v696
        %698 = vmatprep.mubr.f32.mxu0 0.0
        %699 = vmatmul.mubr.f32.gmra.mrb[0].mxu0 %v614
        %v700 = vpop.f32.mrb[0].mxu0
        %v701 = vadd.f32 %v602, %v700
        %v702 = vpop.f32.mrb[0].mxu0
        %v703 = vadd.f32 %v606, %v702
        %704 = vmatprep.mubr.f32.mxu0 0.0
        %705 = vmatmul.mubr.f32.gmra.mrb[0].mxu0 %v617
        %v706 = vpop.f32.mrb[0].mxu0
        %v707 = vadd.f32 %v602, %v706
        %v708 = vpop.f32.mrb[0].mxu0
        %v709 = vadd.f32 %v606, %v708
        %710 = vmatprep.mubr.f32.mxu0 0.0
        %711 = vmatmul.mubr.f32.gmra.mrb[0].mxu0 %v620
        %v712 = vpop.f32.mrb[0].mxu0
        %v713 = vadd.f32 %v602, %v712
        %v714 = vpop.f32.mrb[0].mxu0
        %v715 = vadd.f32 %v606, %v714
        %716 = vmatprep.mubr.f32.mxu0 0.0
        %717 = vmatmul.mubr.f32.gmra.mrb[0].mxu0 %v623
        %v718 = vpop.f32.mrb[0].mxu0
        %v719 = vadd.f32 %v602, %v718
        %v720 = vpop.f32.mrb[0].mxu0
        %v721 = vadd.f32 %v606, %v720
        %722 = vmatprep.mubr.f32.mxu0 0.0
        %723 = vmatmul.mubr.f32.gmra.mrb[0].mxu0 %v626
        %v724 = vpop.f32.mrb[0].mxu0
        %v725 = vadd.f32 %v602, %v724
        %v726 = vpop.f32.mrb[0].mxu0
        %v727 = vadd.f32 %v606, %v726
        %728 = vdwg.mxu0
        %v729 = vmax.f32 %v695, 0.0
        %v730 = vmax.f32 %v697, 0.0
        %v731 = vmax.f32 %v701, 0.0
        %v732 = vmax.f32 %v703, 0.0
        %v733 = vmax.f32 %v707, 0.0
        %v734 = vmax.f32 %v709, 0.0
        %v735 = vmax.f32 %v713, 0.0
        %v736 = vmax.f32 %v715, 0.0
        %v737 = vmax.f32 %v719, 0.0
        %v738 = vmax.f32 %v721, 0.0
        %v739 = vmax.f32 %v725, 0.0
        %v740 = vmax.f32 %v727, 0.0
        %v741 = vld [vmem:[#allocation7] sm:$0xff]
        %v742 = vld [vmem:[#allocation7 + $0x8] sm:$0xff]
        %v743 = vld [vmem:[#allocation7 + $0x10] sm:$0xff]
        %v744 = vld [vmem:[#allocation7 + $0x18] sm:$0xff]
        %v745 = vld [vmem:[#allocation7 + $0x20] sm:$0xff]
        %v746 = vld [vmem:[#allocation7 + $0x28] sm:$0xff]
        %v747 = vld [vmem:[#allocation7 + $0x30] sm:$0xff]
        %v748 = vld [vmem:[#allocation7 + $0x38] sm:$0xff]
        %v749 = vld [vmem:[#allocation7 + $0x40] sm:$0xff]
        %v750 = vld [vmem:[#allocation7 + $0x48] sm:$0xff]
        %v751 = vld [vmem:[#allocation7 + $0x50] sm:$0xff]
        %v752 = vld [vmem:[#allocation7 + $0x58] sm:$0xff]
        %v753 = vld [vmem:[#allocation7 + $0x60] sm:$0xff]
        %v754 = vld [vmem:[#allocation7 + $0x68] sm:$0xff]
        %v755 = vld [vmem:[#allocation7 + $0x70] sm:$0xff]
        %v756 = vld [vmem:[#allocation7 + $0x78] sm:$0xff]
        %v757 = vld [vmem:[#allocation7 + $0x80] sm:$0xff]
        %v758 = vld [vmem:[#allocation7 + $0x88] sm:$0xff]
        %v759 = vld [vmem:[#allocation7 + $0x90] sm:$0xff]
        %v760 = vld [vmem:[#allocation7 + $0x98] sm:$0xff]
        %v761 = vld [vmem:[#allocation7 + $0xa0] sm:$0xff]
        %v762 = vld [vmem:[#allocation7 + $0xa8] sm:$0xff]
        %v763 = vld [vmem:[#allocation7 + $0xb0] sm:$0xff]
        %v764 = vld [vmem:[#allocation7 + $0xb8] sm:$0xff]
        %v765 = vld [vmem:[#allocation7 + $0xc0] sm:$0xff]
        %v766 = vld [vmem:[#allocation7 + $0xc8] sm:$0xff]
        %v767 = vld [vmem:[#allocation7 + $0xd0] sm:$0xff]
        %v768 = vld [vmem:[#allocation7 + $0xd8] sm:$0xff]
        %v769 = vld [vmem:[#allocation7 + $0xe0] sm:$0xff]
        %v770 = vld [vmem:[#allocation7 + $0xe8] sm:$0xff]
        %v771 = vld [vmem:[#allocation7 + $0xf0] sm:$0xff]
        %v772 = vld [vmem:[#allocation7 + $0xf8] sm:$0xff]
        %v773 = vld [vmem:[#allocation7 + $0x100] sm:$0xff]
        %v774 = vld [vmem:[#allocation7 + $0x108] sm:$0xff]
        %v775 = vld [vmem:[#allocation7 + $0x110] sm:$0xff]
        %v776 = vld [vmem:[#allocation7 + $0x118] sm:$0xff]
        %v777 = vld [vmem:[#allocation7 + $0x120] sm:$0xff]
        %v778 = vld [vmem:[#allocation7 + $0x128] sm:$0xff]
        %v779 = vld [vmem:[#allocation7 + $0x130] sm:$0xff]
        %v780 = vld [vmem:[#allocation7 + $0x138] sm:$0xff]
        %v781 = vld [vmem:[#allocation7 + $0x140] sm:$0xff]
        %v782 = vld [vmem:[#allocation7 + $0x148] sm:$0xff]
        %v783 = vld [vmem:[#allocation7 + $0x150] sm:$0xff]
        %v784 = vld [vmem:[#allocation7 + $0x158] sm:$0xff]
        %v785 = vld [vmem:[#allocation7 + $0x160] sm:$0xff]
        %v786 = vld [vmem:[#allocation7 + $0x168] sm:$0xff]
        %v787 = vld [vmem:[#allocation7 + $0x170] sm:$0xff]
        %v788 = vld [vmem:[#allocation7 + $0x178] sm:$0xff]
        %v789 = vld [vmem:[#allocation7 + $0x180] sm:$0xff]
        %v790 = vld [vmem:[#allocation7 + $0x188] sm:$0xff]
        %v791 = vld [vmem:[#allocation7 + $0x190] sm:$0xff]
        %v792 = vld [vmem:[#allocation7 + $0x198] sm:$0xff]
        %v793 = vld [vmem:[#allocation7 + $0x1a0] sm:$0xff]
        %v794 = vld [vmem:[#allocation7 + $0x1a8] sm:$0xff]
        %v795 = vld [vmem:[#allocation7 + $0x1b0] sm:$0xff]
        %v796 = vld [vmem:[#allocation7 + $0x1b8] sm:$0xff]
        %v797 = vld [vmem:[#allocation7 + $0x1c0] sm:$0xff]
        %v798 = vld [vmem:[#allocation7 + $0x1c8] sm:$0xff]
        %v799 = vld [vmem:[#allocation7 + $0x1d0] sm:$0xff]
        %v800 = vld [vmem:[#allocation7 + $0x1d8] sm:$0xff]
        %v801 = vld [vmem:[#allocation7 + $0x1e0] sm:$0xff]
        %v802 = vld [vmem:[#allocation7 + $0x1e8] sm:$0xff]
        %v803 = vld [vmem:[#allocation7 + $0x1f0] sm:$0xff]
        %v804 = vld [vmem:[#allocation7 + $0x1f8] sm:$0xff]
        %v805 = vld [vmem:[#allocation9] sm:$0x3]
        %v807 = vlaneseq
        %v808 = vshrl.u32 %v807, 7
        %v809 = vsub.s32 0, %v808
        %v810 = vrot.slane %v805, %v809
        %v811 = vlaneseq
        %v812 = vshrl.u32 %v811, 7
        %v813 = vsub.s32 1, %v812
        %v814 = vrot.slane %v805, %v813
        %817 = vmatprep.subr.mxu0 %v742
        %818 = vmatpush1.msra.mxu0 %v741
        %819 = vmatprep.subr.mxu0 %v744
        %820 = vmatpush1.msra.mxu0 %v743
        %821 = vmatprep.subr.mxu0 %v746
        %822 = vmatpush1.msra.mxu0 %v745
        %823 = vmatprep.subr.mxu0 %v748
        %824 = vmatpush1.msra.mxu0 %v747
        %825 = vmatprep.subr.mxu0 %v750
        %826 = vmatpush1.msra.mxu0 %v749
        %827 = vmatprep.subr.mxu0 %v752
        %828 = vmatpush1.msra.mxu0 %v751
        %829 = vmatprep.subr.mxu0 %v754
        %830 = vmatpush1.msra.mxu0 %v753
        %831 = vmatprep.subr.mxu0 %v756
        %832 = vmatpush1.msra.mxu0 %v755
        %833 = vmatprep.subr.mxu0 %v758
        %834 = vmatpush1.msra.mxu0 %v757
        %835 = vmatprep.subr.mxu0 %v760
        %836 = vmatpush1.msra.mxu0 %v759
        %837 = vmatprep.subr.mxu0 %v762
        %838 = vmatpush1.msra.mxu0 %v761
        %839 = vmatprep.subr.mxu0 %v764
        %840 = vmatpush1.msra.mxu0 %v763
        %841 = vmatprep.subr.mxu0 %v766
        %842 = vmatpush1.msra.mxu0 %v765
        %843 = vmatprep.subr.mxu0 %v768
        %844 = vmatpush1.msra.mxu0 %v767
        %845 = vmatprep.subr.mxu0 %v770
        %846 = vmatpush1.msra.mxu0 %v769
        %847 = vmatprep.subr.mxu0 %v772
        %848 = vmatpush1.msra.mxu0 %v771
        %849 = vmatprep.subr.mxu0 %v774
        %850 = vmatpush1.msra.mxu0 %v773
        %851 = vmatprep.subr.mxu0 %v776
        %852 = vmatpush1.msra.mxu0 %v775
        %853 = vmatprep.subr.mxu0 %v778
        %854 = vmatpush1.msra.mxu0 %v777
        %855 = vmatprep.subr.mxu0 %v780
        %856 = vmatpush1.msra.mxu0 %v779
        %857 = vmatprep.subr.mxu0 %v782
        %858 = vmatpush1.msra.mxu0 %v781
        %859 = vmatprep.subr.mxu0 %v784
        %860 = vmatpush1.msra.mxu0 %v783
        %861 = vmatprep.subr.mxu0 %v786
        %862 = vmatpush1.msra.mxu0 %v785
        %863 = vmatprep.subr.mxu0 %v788
        %864 = vmatpush1.msra.mxu0 %v787
        %865 = vmatprep.subr.mxu0 %v790
        %866 = vmatpush1.msra.mxu0 %v789
        %867 = vmatprep.subr.mxu0 %v792
        %868 = vmatpush1.msra.mxu0 %v791
        %869 = vmatprep.subr.mxu0 %v794
        %870 = vmatpush1.msra.mxu0 %v793
        %871 = vmatprep.subr.mxu0 %v796
        %872 = vmatpush1.msra.mxu0 %v795
        %873 = vmatprep.subr.mxu0 %v798
        %874 = vmatpush1.msra.mxu0 %v797
        %875 = vmatprep.subr.mxu0 %v800
        %876 = vmatpush1.msra.mxu0 %v799
        %877 = vmatprep.subr.mxu0 %v802
        %878 = vmatpush1.msra.mxu0 %v801
        %879 = vmatprep.subr.mxu0 %v804
        %880 = vmatpush1.msra.mxu0 %v803
        %881 = vmatprep.mubr.f32.mxu0 %v730
        %882 = vmatmul.mubr.f32.gmra.mrb[0].mxu0 %v729
        %v883 = vpop.f32.mrb[0].mxu0
        %v884 = vadd.f32 %v810, %v883
        %v885 = vpop.f32.mrb[0].mxu0
        %v886 = vadd.f32 %v814, %v885
        %887 = vmatprep.mubr.f32.mxu0 %v732
        %888 = vmatmul.mubr.f32.gmra.mrb[0].mxu0 %v731
        %v889 = vpop.f32.mrb[0].mxu0
        %v890 = vadd.f32 %v810, %v889
        %v891 = vpop.f32.mrb[0].mxu0
        %v892 = vadd.f32 %v814, %v891
        %893 = vmatprep.mubr.f32.mxu0 %v734
        %894 = vmatmul.mubr.f32.gmra.mrb[0].mxu0 %v733
        %v895 = vpop.f32.mrb[0].mxu0
        %v896 = vadd.f32 %v810, %v895
        %v897 = vpop.f32.mrb[0].mxu0
        %v898 = vadd.f32 %v814, %v897
        %899 = vmatprep.mubr.f32.mxu0 %v736
        %900 = vmatmul.mubr.f32.gmra.mrb[0].mxu0 %v735
        %v901 = vpop.f32.mrb[0].mxu0
        %v902 = vadd.f32 %v810, %v901
        %v903 = vpop.f32.mrb[0].mxu0
        %v904 = vadd.f32 %v814, %v903
        %905 = vmatprep.mubr.f32.mxu0 %v738
        %906 = vmatmul.mubr.f32.gmra.mrb[0].mxu0 %v737
        %v907 = vpop.f32.mrb[0].mxu0
        %v908 = vadd.f32 %v810, %v907
        %v909 = vpop.f32.mrb[0].mxu0
        %v910 = vadd.f32 %v814, %v909
        %911 = vmatprep.mubr.f32.mxu0 %v740
        %912 = vmatmul.mubr.f32.gmra.mrb[0].mxu0 %v739
        %v913 = vpop.f32.mrb[0].mxu0
        %v914 = vadd.f32 %v810, %v913
        %v915 = vpop.f32.mrb[0].mxu0
        %v916 = vadd.f32 %v814, %v915
        %917 = vdwg.mxu0
        %v918 = vmax.f32 %v884, 0.0
        %v919 = vmax.f32 %v886, 0.0
        %v920 = vmax.f32 %v890, 0.0
        %v921 = vmax.f32 %v892, 0.0
        %v922 = vmax.f32 %v896, 0.0
        %v923 = vmax.f32 %v898, 0.0
        %v924 = vmax.f32 %v902, 0.0
        %v925 = vmax.f32 %v904, 0.0
        %v926 = vmax.f32 %v908, 0.0
        %v927 = vmax.f32 %v910, 0.0
        %v928 = vmax.f32 %v914, 0.0
        %v929 = vmax.f32 %v916, 0.0
        %936 = vrot.lane.b32.xlu0 %v918, 96
        %v937 = vpop.permute.xlu0 %936
        %938 = vrot.lane.b32.xlu0 %v920, 96
        %v939 = vpop.permute.xlu0 %938
        %940 = vrot.lane.b32.xlu0 %v922, 96
        %v941 = vpop.permute.xlu0 %940
        %942 = vrot.lane.b32.xlu0 %v924, 96
        %v943 = vpop.permute.xlu0 %942
        %944 = vrot.lane.b32.xlu0 %v926, 96
        %v945 = vpop.permute.xlu0 %944
        %946 = vrot.lane.b32.xlu0 %v928, 96
        %v947 = vpop.permute.xlu0 %946
        %v954 = vmax.f32 %v918, %v937
        %v955 = vmax.f32 %v920, %v939
        %v956 = vmax.f32 %v922, %v941
        %v957 = vmax.f32 %v924, %v943
        %v958 = vmax.f32 %v926, %v945
        %v959 = vmax.f32 %v928, %v947
        %960 = vrot.lane.b32.xlu0 %v918, 64
        %v961 = vpop.permute.xlu0 %960
        %962 = vrot.lane.b32.xlu0 %v920, 64
        %v963 = vpop.permute.xlu0 %962
        %964 = vrot.lane.b32.xlu0 %v922, 64
        %v965 = vpop.permute.xlu0 %964
        %966 = vrot.lane.b32.xlu0 %v924, 64
        %v967 = vpop.permute.xlu0 %966
        %968 = vrot.lane.b32.xlu0 %v926, 64
        %v969 = vpop.permute.xlu0 %968
        %970 = vrot.lane.b32.xlu0 %v928, 64
        %v971 = vpop.permute.xlu0 %970
        %v978 = vmax.f32 %v954, %v961
        %v979 = vmax.f32 %v955, %v963
        %v980 = vmax.f32 %v956, %v965
        %v981 = vmax.f32 %v957, %v967
        %v982 = vmax.f32 %v958, %v969
        %v983 = vmax.f32 %v959, %v971
        %984 = vrot.lane.b32.xlu0 %v918, 32
        %v985 = vpop.permute.xlu0 %984
        %986 = vrot.lane.b32.xlu0 %v920, 32
        %v987 = vpop.permute.xlu0 %986
        %988 = vrot.lane.b32.xlu0 %v922, 32
        %v989 = vpop.permute.xlu0 %988
        %990 = vrot.lane.b32.xlu0 %v924, 32
        %v991 = vpop.permute.xlu0 %990
        %992 = vrot.lane.b32.xlu0 %v926, 32
        %v993 = vpop.permute.xlu0 %992
        %994 = vrot.lane.b32.xlu0 %v928, 32
        %v995 = vpop.permute.xlu0 %994
        %v1002 = vmax.f32 %v978, %v985
        %v1003 = vmax.f32 %v979, %v987
        %v1004 = vmax.f32 %v980, %v989
        %v1005 = vmax.f32 %v981, %v991
        %v1006 = vmax.f32 %v982, %v993
        %v1007 = vmax.f32 %v983, %v995
        %v1008 = vmax.f32 %v1002, %v919
        %v1009 = vmax.f32 %v1003, %v921
        %v1010 = vmax.f32 %v1004, %v923
        %v1011 = vmax.f32 %v1005, %v925
        %v1012 = vmax.f32 %v1006, %v927
        %v1013 = vmax.f32 %v1007, %v929
        %1020 = vrot.lane.b32.xlu0 %v919, 96
        %v1021 = vpop.permute.xlu0 %1020
        %1022 = vrot.lane.b32.xlu0 %v921, 96
        %v1023 = vpop.permute.xlu0 %1022
        %1024 = vrot.lane.b32.xlu0 %v923, 96
        %v1025 = vpop.permute.xlu0 %1024
        %1026 = vrot.lane.b32.xlu0 %v925, 96
        %v1027 = vpop.permute.xlu0 %1026
        %1028 = vrot.lane.b32.xlu0 %v927, 96
        %v1029 = vpop.permute.xlu0 %1028
        %1030 = vrot.lane.b32.xlu0 %v929, 96
        %v1031 = vpop.permute.xlu0 %1030
        %v1038 = vmax.f32 %v1008, %v1021
        %v1039 = vmax.f32 %v1009, %v1023
        %v1040 = vmax.f32 %v1010, %v1025
        %v1041 = vmax.f32 %v1011, %v1027
        %v1042 = vmax.f32 %v1012, %v1029
        %v1043 = vmax.f32 %v1013, %v1031
        %1044 = vrot.lane.b32.xlu0 %v919, 64
        %v1045 = vpop.permute.xlu0 %1044
        %1046 = vrot.lane.b32.xlu0 %v921, 64
        %v1047 = vpop.permute.xlu0 %1046
        %1048 = vrot.lane.b32.xlu0 %v923, 64
        %v1049 = vpop.permute.xlu0 %1048
        %1050 = vrot.lane.b32.xlu0 %v925, 64
        %v1051 = vpop.permute.xlu0 %1050
        %1052 = vrot.lane.b32.xlu0 %v927, 64
        %v1053 = vpop.permute.xlu0 %1052
        %1054 = vrot.lane.b32.xlu0 %v929, 64
        %v1055 = vpop.permute.xlu0 %1054
        %v1062 = vmax.f32 %v1038, %v1045
        %v1063 = vmax.f32 %v1039, %v1047
        %v1064 = vmax.f32 %v1040, %v1049
        %v1065 = vmax.f32 %v1041, %v1051
        %v1066 = vmax.f32 %v1042, %v1053
        %v1067 = vmax.f32 %v1043, %v1055
        %1068 = vrot.lane.b32.xlu0 %v919, 32
        %v1069 = vpop.permute.xlu0 %1068
        %1070 = vrot.lane.b32.xlu0 %v921, 32
        %v1071 = vpop.permute.xlu0 %1070
        %1072 = vrot.lane.b32.xlu0 %v923, 32
        %v1073 = vpop.permute.xlu0 %1072
        %1074 = vrot.lane.b32.xlu0 %v925, 32
        %v1075 = vpop.permute.xlu0 %1074
        %1076 = vrot.lane.b32.xlu0 %v927, 32
        %v1077 = vpop.permute.xlu0 %1076
        %1078 = vrot.lane.b32.xlu0 %v929, 32
        %v1079 = vpop.permute.xlu0 %1078
        %v1086 = vmax.f32 %v1062, %v1069
        %v1087 = vmax.f32 %v1063, %v1071
        %v1088 = vmax.f32 %v1064, %v1073
        %v1089 = vmax.f32 %v1065, %v1075
        %v1090 = vmax.f32 %v1066, %v1077
        %v1091 = vmax.f32 %v1067, %v1079
        %v1092 = vld [vmem:[#allocation16] sm:$0xff]
        %v1093 = vld [vmem:[#allocation16 + $0x8] sm:$0xff]
        %v1094 = vld [vmem:[#allocation16 + $0x10] sm:$0xff]
        %v1095 = vld [vmem:[#allocation16 + $0x18] sm:$0xff]
        %v1096 = vld [vmem:[#allocation16 + $0x20] sm:$0xff]
        %v1097 = vld [vmem:[#allocation16 + $0x28] sm:$0xff]
        %v1098 = vld [vmem:[#allocation10] sm:$0xff]
        %v1099 = vld [vmem:[#allocation10 + $0x8] sm:$0xff]
        %v1100 = vld [vmem:[#allocation10 + $0x10] sm:$0xff]
        %v1101 = vld [vmem:[#allocation10 + $0x18] sm:$0xff]
        %v1102 = vld [vmem:[%s6] sm:$0x1]
        %v1104 = vlaneseq
        %v1105 = vshrl.u32 %v1104, 7
        %v1106 = vsub.s32 0, %v1105
        %v1107 = vrot.slane %v1102, %v1106
        %v1110 = vsel %vm609, %v1086, 0
        %v1113 = vsel %vm609, %v1087, 0
        %v1116 = vsel %vm609, %v1088, 0
        %v1119 = vsel %vm609, %v1089, 0
        %v1122 = vsel %vm609, %v1090, 0
        %v1125 = vsel %vm609, %v1091, 0
        %1127 = vmatprep.subr.mxu0 0.0
        %1128 = vmatpush1.msra.mxu0 %v1098
        %1129 = vmatprep.subr.mxu0 0.0
        %1130 = vmatpush1.msra.mxu0 %v1099
        %1131 = vmatprep.subr.mxu0 0.0
        %1132 = vmatpush1.msra.mxu0 %v1100
        %1133 = vmatprep.subr.mxu0 0.0
        %1134 = vmatpush1.msra.mxu0 %v1101
        %1135 = vmatprep.subr.mxu0 0.0
        %1136 = vmatpush1.msra.mxu0 0.0
        %1137 = vmatprep.subr.mxu0 0.0
        %1138 = vmatpush1.msra.mxu0 0.0
        %1139 = vmatprep.subr.mxu0 0.0
        %1140 = vmatpush1.msra.mxu0 0.0
        %1141 = vmatprep.subr.mxu0 0.0
        %1142 = vmatpush1.msra.mxu0 0.0
        %1143 = vmatprep.subr.mxu0 0.0
        %1144 = vmatpush1.msra.mxu0 0.0
        %1145 = vmatprep.subr.mxu0 0.0
        %1146 = vmatpush1.msra.mxu0 0.0
        %1147 = vmatprep.subr.mxu0 0.0
        %1148 = vmatpush1.msra.mxu0 0.0
        %1149 = vmatprep.subr.mxu0 0.0
        %1150 = vmatpush1.msra.mxu0 0.0
        %1151 = vmatprep.subr.mxu0 0.0
        %1152 = vmatpush1.msra.mxu0 0.0
        %1153 = vmatprep.subr.mxu0 0.0
        %1154 = vmatpush1.msra.mxu0 0.0
        %1155 = vmatprep.subr.mxu0 0.0
        %1156 = vmatpush1.msra.mxu0 0.0
        %1157 = vmatprep.subr.mxu0 0.0
        %1158 = vmatpush1.msra.mxu0 0.0
        %1159 = vmatprep.subr.mxu0 0.0
        %1160 = vmatpush1.msra.mxu0 0.0
        %1161 = vmatprep.subr.mxu0 0.0
        %1162 = vmatpush1.msra.mxu0 0.0
        %1163 = vmatprep.subr.mxu0 0.0
        %1164 = vmatpush1.msra.mxu0 0.0
        %1165 = vmatprep.subr.mxu0 0.0
        %1166 = vmatpush1.msra.mxu0 0.0
        %1167 = vmatprep.subr.mxu0 0.0
        %1168 = vmatpush1.msra.mxu0 0.0
        %1169 = vmatprep.subr.mxu0 0.0
        %1170 = vmatpush1.msra.mxu0 0.0
        %1171 = vmatprep.subr.mxu0 0.0
        %1172 = vmatpush1.msra.mxu0 0.0
        %1173 = vmatprep.subr.mxu0 0.0
        %1174 = vmatpush1.msra.mxu0 0.0
        %1175 = vmatprep.subr.mxu0 0.0
        %1176 = vmatpush1.msra.mxu0 0.0
        %1177 = vmatprep.subr.mxu0 0.0
        %1178 = vmatpush1.msra.mxu0 0.0
        %1179 = vmatprep.subr.mxu0 0.0
        %1180 = vmatpush1.msra.mxu0 0.0
        %1181 = vmatprep.subr.mxu0 0.0
        %1182 = vmatpush1.msra.mxu0 0.0
        %1183 = vmatprep.subr.mxu0 0.0
        %1184 = vmatpush1.msra.mxu0 0.0
        %1185 = vmatprep.subr.mxu0 0.0
        %1186 = vmatpush1.msra.mxu0 0.0
        %1187 = vmatprep.subr.mxu0 0.0
        %1188 = vmatpush1.msra.mxu0 0.0
        %1189 = vmatprep.subr.mxu0 0.0
        %1190 = vmatpush1.msra.mxu0 0.0
        %1191 = vmatprep.mubr.f32.mxu0 0.0
        %1192 = vmatmul.mubr.f32.gmra.mrb[0].mxu0 %v1110
        %v1193 = vpop.f32.mrb[0].mxu0
        %v1194 = vadd.f32 %v1107, %v1193
        %v1195 = vpop.f32.mrb[0].mxu0
        %1196 = vmatprep.mubr.f32.mxu0 0.0
        %1197 = vmatmul.mubr.f32.gmra.mrb[0].mxu0 %v1113
        %v1198 = vpop.f32.mrb[0].mxu0
        %v1199 = vadd.f32 %v1107, %v1198
        %v1200 = vpop.f32.mrb[0].mxu0
        %1201 = vmatprep.mubr.f32.mxu0 0.0
        %1202 = vmatmul.mubr.f32.gmra.mrb[0].mxu0 %v1116
        %v1203 = vpop.f32.mrb[0].mxu0
        %v1204 = vadd.f32 %v1107, %v1203
        %v1205 = vpop.f32.mrb[0].mxu0
        %1206 = vmatprep.mubr.f32.mxu0 0.0
        %1207 = vmatmul.mubr.f32.gmra.mrb[0].mxu0 %v1119
        %v1208 = vpop.f32.mrb[0].mxu0
        %v1209 = vadd.f32 %v1107, %v1208
        %v1210 = vpop.f32.mrb[0].mxu0
        %1211 = vmatprep.mubr.f32.mxu0 0.0
        %1212 = vmatmul.mubr.f32.gmra.mrb[0].mxu0 %v1122
        %v1213 = vpop.f32.mrb[0].mxu0
        %v1214 = vadd.f32 %v1107, %v1213
        %v1215 = vpop.f32.mrb[0].mxu0
        %1216 = vmatprep.mubr.f32.mxu0 0.0
        %1217 = vmatmul.mubr.f32.gmra.mrb[0].mxu0 %v1125
        %v1218 = vpop.f32.mrb[0].mxu0
        %v1219 = vadd.f32 %v1107, %v1218
        %v1220 = vpop.f32.mrb[0].mxu0
        %1221 = vdwg.mxu0
        %1228 = vrot.lane.b32.xlu0 %v1194, 96
        %v1229 = vpop.permute.xlu0 %1228
        %1230 = vrot.lane.b32.xlu0 %v1199, 96
        %v1231 = vpop.permute.xlu0 %1230
        %1232 = vrot.lane.b32.xlu0 %v1204, 96
        %v1233 = vpop.permute.xlu0 %1232
        %1234 = vrot.lane.b32.xlu0 %v1209, 96
        %v1235 = vpop.permute.xlu0 %1234
        %1236 = vrot.lane.b32.xlu0 %v1214, 96
        %v1237 = vpop.permute.xlu0 %1236
        %1238 = vrot.lane.b32.xlu0 %v1219, 96
        %v1239 = vpop.permute.xlu0 %1238
        %v1240 = vsel %vm609, %v1194, 0
        %v1242 = vsel %vm609, %v1199, 0
        %v1244 = vsel %vm609, %v1204, 0
        %v1246 = vsel %vm609, %v1209, 0
        %v1248 = vsel %vm609, %v1214, 0
        %v1250 = vsel %vm609, %v1219, 0
        %v1252 = vsel %vm609, %v1229, 0
        %v1254 = vsel %vm609, %v1231, 0
        %v1256 = vsel %vm609, %v1233, 0
        %v1258 = vsel %vm609, %v1235, 0
        %v1260 = vsel %vm609, %v1237, 0
        %v1262 = vsel %vm609, %v1239, 0
        %1264 = vmatprep.subr.mxu0 0.0
        %1265 = vmatpush1.xpose.msra.mxu0 %v1252
        %1266 = vmatprep.subr.mxu0 0.0
        %1267 = vmatpush1.xpose.msra.mxu0 %v1254
        %1268 = vmatprep.subr.mxu0 0.0
        %1269 = vmatpush1.xpose.msra.mxu0 %v1256
        %1270 = vmatprep.subr.mxu0 0.0
        %1271 = vmatpush1.xpose.msra.mxu0 %v1258
        %1272 = vmatprep.subr.mxu0 0.0
        %1273 = vmatpush1.xpose.msra.mxu0 %v1260
        %1274 = vmatprep.subr.mxu0 0.0
        %1275 = vmatpush1.xpose.msra.mxu0 %v1262
        %1276 = vmatprep.subr.mxu0 0.0
        %1277 = vmatpush1.xpose.msra.mxu0 0.0
        %1278 = vmatprep.subr.mxu0 0.0
        %1279 = vmatpush1.xpose.msra.mxu0 0.0
        %1280 = vmatprep.subr.mxu0 0.0
        %1281 = vmatpush1.xpose.msra.mxu0 0.0
        %1282 = vmatprep.subr.mxu0 0.0
        %1283 = vmatpush1.xpose.msra.mxu0 0.0
        %1284 = vmatprep.subr.mxu0 0.0
        %1285 = vmatpush1.xpose.msra.mxu0 0.0
        %1286 = vmatprep.subr.mxu0 0.0
        %1287 = vmatpush1.xpose.msra.mxu0 0.0
        %1288 = vmatprep.subr.mxu0 0.0
        %1289 = vmatpush1.xpose.msra.mxu0 0.0
        %1290 = vmatprep.subr.mxu0 0.0
        %1291 = vmatpush1.xpose.msra.mxu0 0.0
        %1292 = vmatprep.subr.mxu0 0.0
        %1293 = vmatpush1.xpose.msra.mxu0 0.0
        %1294 = vmatprep.subr.mxu0 0.0
        %1295 = vmatpush1.xpose.msra.mxu0 0.0
        %1296 = vmatprep.subr.mxu0 0.0
        %1297 = vmatpush1.xpose.msra.mxu0 0.0
        %1298 = vmatprep.subr.mxu0 0.0
        %1299 = vmatpush1.xpose.msra.mxu0 0.0
        %1300 = vmatprep.subr.mxu0 0.0
        %1301 = vmatpush1.xpose.msra.mxu0 0.0
        %1302 = vmatprep.subr.mxu0 0.0
        %1303 = vmatpush1.xpose.msra.mxu0 0.0
        %1304 = vmatprep.subr.mxu0 0.0
        %1305 = vmatpush1.xpose.msra.mxu0 0.0
        %1306 = vmatprep.subr.mxu0 0.0
        %1307 = vmatpush1.xpose.msra.mxu0 0.0
        %1308 = vmatprep.subr.mxu0 0.0
        %1309 = vmatpush1.xpose.msra.mxu0 0.0
        %1310 = vmatprep.subr.mxu0 0.0
        %1311 = vmatpush1.xpose.msra.mxu0 0.0
        %1312 = vmatprep.subr.mxu0 0.0
        %1313 = vmatpush1.xpose.msra.mxu0 0.0
        %1314 = vmatprep.subr.mxu0 0.0
        %1315 = vmatpush1.xpose.msra.mxu0 0.0
        %1316 = vmatprep.subr.mxu0 0.0
        %1317 = vmatpush1.xpose.msra.mxu0 0.0
        %1318 = vmatprep.subr.mxu0 0.0
        %1319 = vmatpush1.xpose.msra.mxu0 0.0
        %1320 = vmatprep.subr.mxu0 0.0
        %1321 = vmatpush1.xpose.msra.mxu0 0.0
        %1322 = vmatprep.subr.mxu0 0.0
        %1323 = vmatpush1.xpose.msra.mxu0 0.0
        %1324 = vmatprep.subr.mxu0 0.0
        %1325 = vmatpush1.xpose.msra.mxu0 0.0
        %1326 = vmatprep.subr.mxu0 0.0
        %1327 = vmatpush1.xpose.msra.mxu0 0.0
        %1328 = vmatprep.mubr.f32.mxu0 0.0
        %1329 = vmatmul.mubr.f32.gmra.mrb[0].mxu0 %v1240
        %v1330 = vpop.f32.mrb[0].mxu0
        %v1331 = vadd.f32 0.0, %v1330
        %v1332 = vpop.f32.mrb[0].mxu0
        %1333 = vmatprep.mubr.f32.mxu0 0.0
        %1334 = vmatmul.mubr.f32.gmra.mrb[0].mxu0 %v1242
        %v1335 = vpop.f32.mrb[0].mxu0
        %v1336 = vadd.f32 0.0, %v1335
        %v1337 = vpop.f32.mrb[0].mxu0
        %1338 = vmatprep.mubr.f32.mxu0 0.0
        %1339 = vmatmul.mubr.f32.gmra.mrb[0].mxu0 %v1244
        %v1340 = vpop.f32.mrb[0].mxu0
        %v1341 = vadd.f32 0.0, %v1340
        %v1342 = vpop.f32.mrb[0].mxu0
        %1343 = vmatprep.mubr.f32.mxu0 0.0
        %1344 = vmatmul.mubr.f32.gmra.mrb[0].mxu0 %v1246
        %v1345 = vpop.f32.mrb[0].mxu0
        %v1346 = vadd.f32 0.0, %v1345
        %v1347 = vpop.f32.mrb[0].mxu0
        %1348 = vmatprep.mubr.f32.mxu0 0.0
        %1349 = vmatmul.mubr.f32.gmra.mrb[0].mxu0 %v1248
        %v1350 = vpop.f32.mrb[0].mxu0
        %v1351 = vadd.f32 0.0, %v1350
        %v1352 = vpop.f32.mrb[0].mxu0
        %1353 = vmatprep.mubr.f32.mxu0 0.0
        %1354 = vmatmul.mubr.f32.gmra.mrb[0].mxu0 %v1250
        %v1355 = vpop.f32.mrb[0].mxu0
        %v1356 = vadd.f32 0.0, %v1355
        %v1357 = vpop.f32.mrb[0].mxu0
        %1358 = vdwg.mxu0
        %v1359 = vmul.f32 %v1331, 0.17677669
        %v1360 = vmul.f32 %v1336, 0.17677669
        %v1361 = vmul.f32 %v1341, 0.17677669
        %v1362 = vmul.f32 %v1346, 0.17677669
        %v1363 = vmul.f32 %v1351, 0.17677669
        %v1364 = vmul.f32 %v1356, 0.17677669
        %v1365 = vadd.f32 %v1359, %v1092
        %v1366 = vadd.f32 %v1360, %v1093
        %v1367 = vadd.f32 %v1361, %v1094
        %v1368 = vadd.f32 %v1362, %v1095
        %v1369 = vadd.f32 %v1363, %v1096
        %v1370 = vadd.f32 %v1364, %v1097
        %vm1371 = vcmask 392192
        %v1372 = vsel %vm1371, %v1365, -inf
        %1373 = vmax.xlane.f32.xlu0 %v1372
        %v1374 = vpop.xlane.xlu0 %1373
        %v1375 = vsel %vm1371, %v1366, -inf
        %1376 = vmax.xlane.f32.xlu0 %v1375
        %v1377 = vpop.xlane.xlu0 %1376
        %v1378 = vsel %vm1371, %v1367, -inf
        %1379 = vmax.xlane.f32.xlu0 %v1378
        %v1380 = vpop.xlane.xlu0 %1379
        %v1381 = vsel %vm1371, %v1368, -inf
        %1382 = vmax.xlane.f32.xlu0 %v1381
        %v1383 = vpop.xlane.xlu0 %1382
        %v1384 = vsel %vm1371, %v1369, -inf
        %1385 = vmax.xlane.f32.xlu0 %v1384
        %v1386 = vpop.xlane.xlu0 %1385
        %v1387 = vsel %vm1371, %v1370, -inf
        %1388 = vmax.xlane.f32.xlu0 %v1387
        %v1389 = vpop.xlane.xlu0 %1388
        %v1390 = vsub.f32 %v1365, %v1374
        %v1391 = vsub.f32 %v1366, %v1377
        %v1392 = vsub.f32 %v1367, %v1380
        %v1393 = vsub.f32 %v1368, %v1383
        %v1394 = vsub.f32 %v1369, %v1386
        %v1395 = vsub.f32 %v1370, %v1389
        %v1396 = vmul.f32 %v1390, 1.442695
        %v1397 = vpow.pop %v1396
        %v1398 = vmul.f32 %v1391, 1.442695
        %v1399 = vpow.pop %v1398
        %v1400 = vmul.f32 %v1392, 1.442695
        %v1401 = vpow.pop %v1400
        %v1402 = vmul.f32 %v1393, 1.442695
        %v1403 = vpow.pop %v1402
        %v1404 = vmul.f32 %v1394, 1.442695
        %v1405 = vpow.pop %v1404
        %v1406 = vmul.f32 %v1395, 1.442695
        %v1407 = vpow.pop %v1406
        %v1408 = vsel %vm1371, %v1397, 0.0
        %1409 = vadd.xlane.f32.xlu0 %v1408
        %v1410 = vpop.xlane.xlu0 %1409
        %v1411 = vsel %vm1371, %v1399, 0.0
        %1412 = vadd.xlane.f32.xlu0 %v1411
        %v1413 = vpop.xlane.xlu0 %1412
        %v1414 = vsel %vm1371, %v1401, 0.0
        %1415 = vadd.xlane.f32.xlu0 %v1414
        %v1416 = vpop.xlane.xlu0 %1415
        %v1417 = vsel %vm1371, %v1403, 0.0
        %1418 = vadd.xlane.f32.xlu0 %v1417
        %v1419 = vpop.xlane.xlu0 %1418
        %v1420 = vsel %vm1371, %v1405, 0.0
        %1421 = vadd.xlane.f32.xlu0 %v1420
        %v1422 = vpop.xlane.xlu0 %1421
        %v1423 = vsel %vm1371, %v1407, 0.0
        %1424 = vadd.xlane.f32.xlu0 %v1423
        %v1425 = vpop.xlane.xlu0 %1424
        %v1426 = vrcp.pop %v1410
        %v1427 = vrcp.pop %v1413
        %v1428 = vrcp.pop %v1416
        %v1429 = vrcp.pop %v1419
        %v1430 = vrcp.pop %v1422
        %v1431 = vrcp.pop %v1425
        %v1432 = vmul.f32 %v1397, %v1426
        %v1433 = vmul.f32 %v1399, %v1427
        %v1434 = vmul.f32 %v1401, %v1428
        %v1435 = vmul.f32 %v1403, %v1429
        %v1436 = vmul.f32 %v1405, %v1430
        %v1437 = vmul.f32 %v1407, %v1431
        %1438 = vrot.lane.b32.xlu0 %v1194, 64
        %v1439 = vpop.permute.xlu0 %1438
        %1440 = vrot.lane.b32.xlu0 %v1199, 64
        %v1441 = vpop.permute.xlu0 %1440
        %1442 = vrot.lane.b32.xlu0 %v1204, 64
        %v1443 = vpop.permute.xlu0 %1442
        %1444 = vrot.lane.b32.xlu0 %v1209, 64
        %v1445 = vpop.permute.xlu0 %1444
        %1446 = vrot.lane.b32.xlu0 %v1214, 64
        %v1447 = vpop.permute.xlu0 %1446
        %1448 = vrot.lane.b32.xlu0 %v1219, 64
        %v1449 = vpop.permute.xlu0 %1448
        %v1457 = vsel %vm1371, %v1432, 0
        %v1460 = vsel %vm1371, %v1433, 0
        %v1463 = vsel %vm1371, %v1434, 0
        %v1466 = vsel %vm1371, %v1435, 0
        %v1469 = vsel %vm1371, %v1436, 0
        %v1472 = vsel %vm1371, %v1437, 0
        %1474 = vmatprep.subr.mxu0 0.0
        %1475 = vmatpush1.msra.mxu0 %v1439
        %1476 = vmatprep.subr.mxu0 0.0
        %1477 = vmatpush1.msra.mxu0 %v1441
        %1478 = vmatprep.subr.mxu0 0.0
        %1479 = vmatpush1.msra.mxu0 %v1443
        %1480 = vmatprep.subr.mxu0 0.0
        %1481 = vmatpush1.msra.mxu0 %v1445
        %1482 = vmatprep.subr.mxu0 0.0
        %1483 = vmatpush1.msra.mxu0 %v1447
        %1484 = vmatprep.subr.mxu0 0.0
        %1485 = vmatpush1.msra.mxu0 %v1449
        %1486 = vmatprep.subr.mxu0 0.0
        %1487 = vmatpush1.msra.mxu0 0.0
        %1488 = vmatprep.subr.mxu0 0.0
        %1489 = vmatpush1.msra.mxu0 0.0
        %1490 = vmatprep.subr.mxu0 0.0
        %1491 = vmatpush1.msra.mxu0 0.0
        %1492 = vmatprep.subr.mxu0 0.0
        %1493 = vmatpush1.msra.mxu0 0.0
        %1494 = vmatprep.subr.mxu0 0.0
        %1495 = vmatpush1.msra.mxu0 0.0
        %1496 = vmatprep.subr.mxu0 0.0
        %1497 = vmatpush1.msra.mxu0 0.0
        %1498 = vmatprep.subr.mxu0 0.0
        %1499 = vmatpush1.msra.mxu0 0.0
        %1500 = vmatprep.subr.mxu0 0.0
        %1501 = vmatpush1.msra.mxu0 0.0
        %1502 = vmatprep.subr.mxu0 0.0
        %1503 = vmatpush1.msra.mxu0 0.0
        %1504 = vmatprep.subr.mxu0 0.0
        %1505 = vmatpush1.msra.mxu0 0.0
        %1506 = vmatprep.subr.mxu0 0.0
        %1507 = vmatpush1.msra.mxu0 0.0
        %1508 = vmatprep.subr.mxu0 0.0
        %1509 = vmatpush1.msra.mxu0 0.0
        %1510 = vmatprep.subr.mxu0 0.0
        %1511 = vmatpush1.msra.mxu0 0.0
        %1512 = vmatprep.subr.mxu0 0.0
        %1513 = vmatpush1.msra.mxu0 0.0
        %1514 = vmatprep.subr.mxu0 0.0
        %1515 = vmatpush1.msra.mxu0 0.0
        %1516 = vmatprep.subr.mxu0 0.0
        %1517 = vmatpush1.msra.mxu0 0.0
        %1518 = vmatprep.subr.mxu0 0.0
        %1519 = vmatpush1.msra.mxu0 0.0
        %1520 = vmatprep.subr.mxu0 0.0
        %1521 = vmatpush1.msra.mxu0 0.0
        %1522 = vmatprep.subr.mxu0 0.0
        %1523 = vmatpush1.msra.mxu0 0.0
        %1524 = vmatprep.subr.mxu0 0.0
        %1525 = vmatpush1.msra.mxu0 0.0
        %1526 = vmatprep.subr.mxu0 0.0
        %1527 = vmatpush1.msra.mxu0 0.0
        %1528 = vmatprep.subr.mxu0 0.0
        %1529 = vmatpush1.msra.mxu0 0.0
        %1530 = vmatprep.subr.mxu0 0.0
        %1531 = vmatpush1.msra.mxu0 0.0
        %1532 = vmatprep.subr.mxu0 0.0
        %1533 = vmatpush1.msra.mxu0 0.0
        %1534 = vmatprep.subr.mxu0 0.0
        %1535 = vmatpush1.msra.mxu0 0.0
        %1536 = vmatprep.subr.mxu0 0.0
        %1537 = vmatpush1.msra.mxu0 0.0
        %1538 = vmatprep.mubr.f32.mxu0 0.0
        %1539 = vmatmul.mubr.f32.gmra.mrb[0].mxu0 %v1457
        %v1540 = vpop.f32.mrb[0].mxu0
        %v1541 = vadd.f32 0.0, %v1540
        %v1542 = vpop.f32.mrb[0].mxu0
        %1543 = vmatprep.mubr.f32.mxu0 0.0
        %1544 = vmatmul.mubr.f32.gmra.mrb[0].mxu0 %v1460
        %v1545 = vpop.f32.mrb[0].mxu0
        %v1546 = vadd.f32 0.0, %v1545
        %v1547 = vpop.f32.mrb[0].mxu0
        %1548 = vmatprep.mubr.f32.mxu0 0.0
        %1549 = vmatmul.mubr.f32.gmra.mrb[0].mxu0 %v1463
        %v1550 = vpop.f32.mrb[0].mxu0
        %v1551 = vadd.f32 0.0, %v1550
        %v1552 = vpop.f32.mrb[0].mxu0
        %1553 = vmatprep.mubr.f32.mxu0 0.0
        %1554 = vmatmul.mubr.f32.gmra.mrb[0].mxu0 %v1466
        %v1555 = vpop.f32.mrb[0].mxu0
        %v1556 = vadd.f32 0.0, %v1555
        %v1557 = vpop.f32.mrb[0].mxu0
        %1558 = vmatprep.mubr.f32.mxu0 0.0
        %1559 = vmatmul.mubr.f32.gmra.mrb[0].mxu0 %v1469
        %v1560 = vpop.f32.mrb[0].mxu0
        %v1561 = vadd.f32 0.0, %v1560
        %v1562 = vpop.f32.mrb[0].mxu0
        %1563 = vmatprep.mubr.f32.mxu0 0.0
        %1564 = vmatmul.mubr.f32.gmra.mrb[0].mxu0 %v1472
        %v1565 = vpop.f32.mrb[0].mxu0
        %v1566 = vadd.f32 0.0, %v1565
        %v1567 = vpop.f32.mrb[0].mxu0
        %1568 = vdwg.mxu0
        %v1569 = vmax.f32 %v1541, 0.0
        %v1570 = vmax.f32 %v1546, 0.0
        %v1571 = vmax.f32 %v1551, 0.0
        %v1572 = vmax.f32 %v1556, 0.0
        %v1573 = vmax.f32 %v1561, 0.0
        %v1574 = vmax.f32 %v1566, 0.0
        %v1575 = vld [vmem:[#allocation12] sm:$0xff]
        %v1576 = vld [vmem:[#allocation12 + $0x8] sm:$0xff]
        %v1577 = vld [vmem:[#allocation12 + $0x10] sm:$0xff]
        %v1578 = vld [vmem:[#allocation12 + $0x18] sm:$0xff]
        %v1579 = vld [vmem:[#allocation13] sm:$0x1]
        %v1581 = vlaneseq
        %v1582 = vshrl.u32 %v1581, 7
        %v1583 = vsub.s32 0, %v1582
        %v1584 = vrot.slane %v1579, %v1583
        %v1587 = vsel %vm609, %v1569, 0
        %v1590 = vsel %vm609, %v1570, 0
        %v1593 = vsel %vm609, %v1571, 0
        %v1596 = vsel %vm609, %v1572, 0
        %v1599 = vsel %vm609, %v1573, 0
        %v1602 = vsel %vm609, %v1574, 0
        %1604 = vmatprep.subr.mxu0 0.0
        %1605 = vmatpush1.msra.mxu0 %v1575
        %1606 = vmatprep.subr.mxu0 0.0
        %1607 = vmatpush1.msra.mxu0 %v1576
        %1608 = vmatprep.subr.mxu0 0.0
        %1609 = vmatpush1.msra.mxu0 %v1577
        %1610 = vmatprep.subr.mxu0 0.0
        %1611 = vmatpush1.msra.mxu0 %v1578
        %1612 = vmatprep.subr.mxu0 0.0
        %1613 = vmatpush1.msra.mxu0 0.0
        %1614 = vmatprep.subr.mxu0 0.0
        %1615 = vmatpush1.msra.mxu0 0.0
        %1616 = vmatprep.subr.mxu0 0.0
        %1617 = vmatpush1.msra.mxu0 0.0
        %1618 = vmatprep.subr.mxu0 0.0
        %1619 = vmatpush1.msra.mxu0 0.0
        %1620 = vmatprep.subr.mxu0 0.0
        %1621 = vmatpush1.msra.mxu0 0.0
        %1622 = vmatprep.subr.mxu0 0.0
        %1623 = vmatpush1.msra.mxu0 0.0
        %1624 = vmatprep.subr.mxu0 0.0
        %1625 = vmatpush1.msra.mxu0 0.0
        %1626 = vmatprep.subr.mxu0 0.0
        %1627 = vmatpush1.msra.mxu0 0.0
        %1628 = vmatprep.subr.mxu0 0.0
        %1629 = vmatpush1.msra.mxu0 0.0
        %1630 = vmatprep.subr.mxu0 0.0
        %1631 = vmatpush1.msra.mxu0 0.0
        %1632 = vmatprep.subr.mxu0 0.0
        %1633 = vmatpush1.msra.mxu0 0.0
        %1634 = vmatprep.subr.mxu0 0.0
        %1635 = vmatpush1.msra.mxu0 0.0
        %1636 = vmatprep.subr.mxu0 0.0
        %1637 = vmatpush1.msra.mxu0 0.0
        %1638 = vmatprep.subr.mxu0 0.0
        %1639 = vmatpush1.msra.mxu0 0.0
        %1640 = vmatprep.subr.mxu0 0.0
        %1641 = vmatpush1.msra.mxu0 0.0
        %1642 = vmatprep.subr.mxu0 0.0
        %1643 = vmatpush1.msra.mxu0 0.0
        %1644 = vmatprep.subr.mxu0 0.0
        %1645 = vmatpush1.msra.mxu0 0.0
        %1646 = vmatprep.subr.mxu0 0.0
        %1647 = vmatpush1.msra.mxu0 0.0
        %1648 = vmatprep.subr.mxu0 0.0
        %1649 = vmatpush1.msra.mxu0 0.0
        %1650 = vmatprep.subr.mxu0 0.0
        %1651 = vmatpush1.msra.mxu0 0.0
        %1652 = vmatprep.subr.mxu0 0.0
        %1653 = vmatpush1.msra.mxu0 0.0
        %1654 = vmatprep.subr.mxu0 0.0
        %1655 = vmatpush1.msra.mxu0 0.0
        %1656 = vmatprep.subr.mxu0 0.0
        %1657 = vmatpush1.msra.mxu0 0.0
        %1658 = vmatprep.subr.mxu0 0.0
        %1659 = vmatpush1.msra.mxu0 0.0
        %1660 = vmatprep.subr.mxu0 0.0
        %1661 = vmatpush1.msra.mxu0 0.0
        %1662 = vmatprep.subr.mxu0 0.0
        %1663 = vmatpush1.msra.mxu0 0.0
        %1664 = vmatprep.subr.mxu0 0.0
        %1665 = vmatpush1.msra.mxu0 0.0
        %1666 = vmatprep.subr.mxu0 0.0
        %1667 = vmatpush1.msra.mxu0 0.0
        %1668 = vmatprep.mubr.f32.mxu0 0.0
        %1669 = vmatmul.mubr.f32.gmra.mrb[0].mxu0 %v1587
        %v1670 = vpop.f32.mrb[0].mxu0
        %v1671 = vadd.f32 %v1584, %v1670
        %v1672 = vpop.f32.mrb[0].mxu0
        %1673 = vmatprep.mubr.f32.mxu0 0.0
        %1674 = vmatmul.mubr.f32.gmra.mrb[0].mxu0 %v1590
        %v1675 = vpop.f32.mrb[0].mxu0
        %v1676 = vadd.f32 %v1584, %v1675
        %v1677 = vpop.f32.mrb[0].mxu0
        %1678 = vmatprep.mubr.f32.mxu0 0.0
        %1679 = vmatmul.mubr.f32.gmra.mrb[0].mxu0 %v1593
        %v1680 = vpop.f32.mrb[0].mxu0
        %v1681 = vadd.f32 %v1584, %v1680
        %v1682 = vpop.f32.mrb[0].mxu0
        %1683 = vmatprep.mubr.f32.mxu0 0.0
        %1684 = vmatmul.mubr.f32.gmra.mrb[0].mxu0 %v1596
        %v1685 = vpop.f32.mrb[0].mxu0
        %v1686 = vadd.f32 %v1584, %v1685
        %v1687 = vpop.f32.mrb[0].mxu0
        %1688 = vmatprep.mubr.f32.mxu0 0.0
        %1689 = vmatmul.mubr.f32.gmra.mrb[0].mxu0 %v1599
        %v1690 = vpop.f32.mrb[0].mxu0
        %v1691 = vadd.f32 %v1584, %v1690
        %v1692 = vpop.f32.mrb[0].mxu0
        %1693 = vmatprep.mubr.f32.mxu0 0.0
        %1694 = vmatmul.mubr.f32.gmra.mrb[0].mxu0 %v1602
        %v1695 = vpop.f32.mrb[0].mxu0
        %v1696 = vadd.f32 %v1584, %v1695
        %v1697 = vpop.f32.mrb[0].mxu0
        %1698 = vdwg.mxu0
        %1705 = vrot.lane.b32.xlu0 %v1671, 96
        %v1706 = vpop.permute.xlu0 %1705
        %1707 = vrot.lane.b32.xlu0 %v1676, 96
        %v1708 = vpop.permute.xlu0 %1707
        %1709 = vrot.lane.b32.xlu0 %v1681, 96
        %v1710 = vpop.permute.xlu0 %1709
        %1711 = vrot.lane.b32.xlu0 %v1686, 96
        %v1712 = vpop.permute.xlu0 %1711
        %1713 = vrot.lane.b32.xlu0 %v1691, 96
        %v1714 = vpop.permute.xlu0 %1713
        %1715 = vrot.lane.b32.xlu0 %v1696, 96
        %v1716 = vpop.permute.xlu0 %1715
        %v1717 = vsel %vm609, %v1671, 0
        %v1719 = vsel %vm609, %v1676, 0
        %v1721 = vsel %vm609, %v1681, 0
        %v1723 = vsel %vm609, %v1686, 0
        %v1725 = vsel %vm609, %v1691, 0
        %v1727 = vsel %vm609, %v1696, 0
        %v1729 = vsel %vm609, %v1706, 0
        %v1731 = vsel %vm609, %v1708, 0
        %v1733 = vsel %vm609, %v1710, 0
        %v1735 = vsel %vm609, %v1712, 0
        %v1737 = vsel %vm609, %v1714, 0
        %v1739 = vsel %vm609, %v1716, 0
        %1741 = vmatprep.subr.mxu0 0.0
        %1742 = vmatpush1.xpose.msra.mxu0 %v1729
        %1743 = vmatprep.subr.mxu0 0.0
        %1744 = vmatpush1.xpose.msra.mxu0 %v1731
        %1745 = vmatprep.subr.mxu0 0.0
        %1746 = vmatpush1.xpose.msra.mxu0 %v1733
        %1747 = vmatprep.subr.mxu0 0.0
        %1748 = vmatpush1.xpose.msra.mxu0 %v1735
        %1749 = vmatprep.subr.mxu0 0.0
        %1750 = vmatpush1.xpose.msra.mxu0 %v1737
        %1751 = vmatprep.subr.mxu0 0.0
        %1752 = vmatpush1.xpose.msra.mxu0 %v1739
        %1753 = vmatprep.subr.mxu0 0.0
        %1754 = vmatpush1.xpose.msra.mxu0 0.0
        %1755 = vmatprep.subr.mxu0 0.0
        %1756 = vmatpush1.xpose.msra.mxu0 0.0
        %1757 = vmatprep.subr.mxu0 0.0
        %1758 = vmatpush1.xpose.msra.mxu0 0.0
        %1759 = vmatprep.subr.mxu0 0.0
        %1760 = vmatpush1.xpose.msra.mxu0 0.0
        %1761 = vmatprep.subr.mxu0 0.0
        %1762 = vmatpush1.xpose.msra.mxu0 0.0
        %1763 = vmatprep.subr.mxu0 0.0
        %1764 = vmatpush1.xpose.msra.mxu0 0.0
        %1765 = vmatprep.subr.mxu0 0.0
        %1766 = vmatpush1.xpose.msra.mxu0 0.0
        %1767 = vmatprep.subr.mxu0 0.0
        %1768 = vmatpush1.xpose.msra.mxu0 0.0
        %1769 = vmatprep.subr.mxu0 0.0
        %1770 = vmatpush1.xpose.msra.mxu0 0.0
        %1771 = vmatprep.subr.mxu0 0.0
        %1772 = vmatpush1.xpose.msra.mxu0 0.0
        %1773 = vmatprep.subr.mxu0 0.0
        %1774 = vmatpush1.xpose.msra.mxu0 0.0
        %1775 = vmatprep.subr.mxu0 0.0
        %1776 = vmatpush1.xpose.msra.mxu0 0.0
        %1777 = vmatprep.subr.mxu0 0.0
        %1778 = vmatpush1.xpose.msra.mxu0 0.0
        %1779 = vmatprep.subr.mxu0 0.0
        %1780 = vmatpush1.xpose.msra.mxu0 0.0
        %1781 = vmatprep.subr.mxu0 0.0
        %1782 = vmatpush1.xpose.msra.mxu0 0.0
        %1783 = vmatprep.subr.mxu0 0.0
        %1784 = vmatpush1.xpose.msra.mxu0 0.0
        %1785 = vmatprep.subr.mxu0 0.0
        %1786 = vmatpush1.xpose.msra.mxu0 0.0
        %1787 = vmatprep.subr.mxu0 0.0
        %1788 = vmatpush1.xpose.msra.mxu0 0.0
        %1789 = vmatprep.subr.mxu0 0.0
        %1790 = vmatpush1.xpose.msra.mxu0 0.0
        %1791 = vmatprep.subr.mxu0 0.0
        %1792 = vmatpush1.xpose.msra.mxu0 0.0
        %1793 = vmatprep.subr.mxu0 0.0
        %1794 = vmatpush1.xpose.msra.mxu0 0.0
        %1795 = vmatprep.subr.mxu0 0.0
        %1796 = vmatpush1.xpose.msra.mxu0 0.0
        %1797 = vmatprep.subr.mxu0 0.0
        %1798 = vmatpush1.xpose.msra.mxu0 0.0
        %1799 = vmatprep.subr.mxu0 0.0
        %1800 = vmatpush1.xpose.msra.mxu0 0.0
        %1801 = vmatprep.subr.mxu0 0.0
        %1802 = vmatpush1.xpose.msra.mxu0 0.0
        %1803 = vmatprep.subr.mxu0 0.0
        %1804 = vmatpush1.xpose.msra.mxu0 0.0
        %1805 = vmatprep.mubr.f32.mxu0 0.0
        %1806 = vmatmul.mubr.f32.gmra.mrb[0].mxu0 %v1717
        %v1807 = vpop.f32.mrb[0].mxu0
        %v1808 = vadd.f32 0.0, %v1807
        %v1809 = vpop.f32.mrb[0].mxu0
        %1810 = vmatprep.mubr.f32.mxu0 0.0
        %1811 = vmatmul.mubr.f32.gmra.mrb[0].mxu0 %v1719
        %v1812 = vpop.f32.mrb[0].mxu0
        %v1813 = vadd.f32 0.0, %v1812
        %v1814 = vpop.f32.mrb[0].mxu0
        %1815 = vmatprep.mubr.f32.mxu0 0.0
        %1816 = vmatmul.mubr.f32.gmra.mrb[0].mxu0 %v1721
        %v1817 = vpop.f32.mrb[0].mxu0
        %v1818 = vadd.f32 0.0, %v1817
        %v1819 = vpop.f32.mrb[0].mxu0
        %1820 = vmatprep.mubr.f32.mxu0 0.0
        %1821 = vmatmul.mubr.f32.gmra.mrb[0].mxu0 %v1723
        %v1822 = vpop.f32.mrb[0].mxu0
        %v1823 = vadd.f32 0.0, %v1822
        %v1824 = vpop.f32.mrb[0].mxu0
        %1825 = vmatprep.mubr.f32.mxu0 0.0
        %1826 = vmatmul.mubr.f32.gmra.mrb[0].mxu0 %v1725
        %v1827 = vpop.f32.mrb[0].mxu0
        %v1828 = vadd.f32 0.0, %v1827
        %v1829 = vpop.f32.mrb[0].mxu0
        %1830 = vmatprep.mubr.f32.mxu0 0.0
        %1831 = vmatmul.mubr.f32.gmra.mrb[0].mxu0 %v1727
        %v1832 = vpop.f32.mrb[0].mxu0
        %v1833 = vadd.f32 0.0, %v1832
        %v1834 = vpop.f32.mrb[0].mxu0
        %1835 = vdwg.mxu0
        %v1836 = vmul.f32 %v1808, 0.17677669
        %v1837 = vmul.f32 %v1813, 0.17677669
        %v1838 = vmul.f32 %v1818, 0.17677669
        %v1839 = vmul.f32 %v1823, 0.17677669
        %v1840 = vmul.f32 %v1828, 0.17677669
        %v1841 = vmul.f32 %v1833, 0.17677669
        %v1842 = vadd.f32 %v1836, %v1092
        %v1843 = vadd.f32 %v1837, %v1093
        %v1844 = vadd.f32 %v1838, %v1094
        %v1845 = vadd.f32 %v1839, %v1095
        %v1846 = vadd.f32 %v1840, %v1096
        %v1847 = vadd.f32 %v1841, %v1097
        %v1848 = vsel %vm1371, %v1842, -inf
        %1849 = vmax.xlane.f32.xlu0 %v1848
        %v1850 = vpop.xlane.xlu0 %1849
        %v1851 = vsel %vm1371, %v1843, -inf
        %1852 = vmax.xlane.f32.xlu0 %v1851
        %v1853 = vpop.xlane.xlu0 %1852
        %v1854 = vsel %vm1371, %v1844, -inf
        %1855 = vmax.xlane.f32.xlu0 %v1854
        %v1856 = vpop.xlane.xlu0 %1855
        %v1857 = vsel %vm1371, %v1845, -inf
        %1858 = vmax.xlane.f32.xlu0 %v1857
        %v1859 = vpop.xlane.xlu0 %1858
        %v1860 = vsel %vm1371, %v1846, -inf
        %1861 = vmax.xlane.f32.xlu0 %v1860
        %v1862 = vpop.xlane.xlu0 %1861
        %v1863 = vsel %vm1371, %v1847, -inf
        %1864 = vmax.xlane.f32.xlu0 %v1863
        %v1865 = vpop.xlane.xlu0 %1864
        %v1866 = vsub.f32 %v1842, %v1850
        %v1867 = vsub.f32 %v1843, %v1853
        %v1868 = vsub.f32 %v1844, %v1856
        %v1869 = vsub.f32 %v1845, %v1859
        %v1870 = vsub.f32 %v1846, %v1862
        %v1871 = vsub.f32 %v1847, %v1865
        %v1872 = vmul.f32 %v1866, 1.442695
        %v1873 = vpow.pop %v1872
        %v1874 = vmul.f32 %v1867, 1.442695
        %v1875 = vpow.pop %v1874
        %v1876 = vmul.f32 %v1868, 1.442695
        %v1877 = vpow.pop %v1876
        %v1878 = vmul.f32 %v1869, 1.442695
        %v1879 = vpow.pop %v1878
        %v1880 = vmul.f32 %v1870, 1.442695
        %v1881 = vpow.pop %v1880
        %v1882 = vmul.f32 %v1871, 1.442695
        %v1883 = vpow.pop %v1882
        %v1884 = vsel %vm1371, %v1873, 0.0
        %1885 = vadd.xlane.f32.xlu0 %v1884
        %v1886 = vpop.xlane.xlu0 %1885
        %v1887 = vsel %vm1371, %v1875, 0.0
        %1888 = vadd.xlane.f32.xlu0 %v1887
        %v1889 = vpop.xlane.xlu0 %1888
        %v1890 = vsel %vm1371, %v1877, 0.0
        %1891 = vadd.xlane.f32.xlu0 %v1890
        %v1892 = vpop.xlane.xlu0 %1891
        %v1893 = vsel %vm1371, %v1879, 0.0
        %1894 = vadd.xlane.f32.xlu0 %v1893
        %v1895 = vpop.xlane.xlu0 %1894
        %v1896 = vsel %vm1371, %v1881, 0.0
        %1897 = vadd.xlane.f32.xlu0 %v1896
        %v1898 = vpop.xlane.xlu0 %1897
        %v1899 = vsel %vm1371, %v1883, 0.0
        %1900 = vadd.xlane.f32.xlu0 %v1899
        %v1901 = vpop.xlane.xlu0 %1900
        %v1902 = vrcp.pop %v1886
        %v1903 = vrcp.pop %v1889
        %v1904 = vrcp.pop %v1892
        %v1905 = vrcp.pop %v1895
        %v1906 = vrcp.pop %v1898
        %v1907 = vrcp.pop %v1901
        %v1908 = vmul.f32 %v1873, %v1902
        %v1909 = vmul.f32 %v1875, %v1903
        %v1910 = vmul.f32 %v1877, %v1904
        %v1911 = vmul.f32 %v1879, %v1905
        %v1912 = vmul.f32 %v1881, %v1906
        %v1913 = vmul.f32 %v1883, %v1907
        %1914 = vrot.lane.b32.xlu0 %v1671, 64
        %v1915 = vpop.permute.xlu0 %1914
        %1916 = vrot.lane.b32.xlu0 %v1676, 64
        %v1917 = vpop.permute.xlu0 %1916
        %1918 = vrot.lane.b32.xlu0 %v1681, 64
        %v1919 = vpop.permute.xlu0 %1918
        %1920 = vrot.lane.b32.xlu0 %v1686, 64
        %v1921 = vpop.permute.xlu0 %1920
        %1922 = vrot.lane.b32.xlu0 %v1691, 64
        %v1923 = vpop.permute.xlu0 %1922
        %1924 = vrot.lane.b32.xlu0 %v1696, 64
        %v1925 = vpop.permute.xlu0 %1924
        %v1933 = vsel %vm1371, %v1908, 0
        %v1936 = vsel %vm1371, %v1909, 0
        %v1939 = vsel %vm1371, %v1910, 0
        %v1942 = vsel %vm1371, %v1911, 0
        %v1945 = vsel %vm1371, %v1912, 0
        %v1948 = vsel %vm1371, %v1913, 0
        %1950 = vmatprep.subr.mxu0 0.0
        %1951 = vmatpush1.msra.mxu0 %v1915
        %1952 = vmatprep.subr.mxu0 0.0
        %1953 = vmatpush1.msra.mxu0 %v1917
        %1954 = vmatprep.subr.mxu0 0.0
        %1955 = vmatpush1.msra.mxu0 %v1919
        %1956 = vmatprep.subr.mxu0 0.0
        %1957 = vmatpush1.msra.mxu0 %v1921
        %1958 = vmatprep.subr.mxu0 0.0
        %1959 = vmatpush1.msra.mxu0 %v1923
        %1960 = vmatprep.subr.mxu0 0.0
        %1961 = vmatpush1.msra.mxu0 %v1925
        %1962 = vmatprep.subr.mxu0 0.0
        %1963 = vmatpush1.msra.mxu0 0.0
        %1964 = vmatprep.subr.mxu0 0.0
        %1965 = vmatpush1.msra.mxu0 0.0
        %1966 = vmatprep.subr.mxu0 0.0
        %1967 = vmatpush1.msra.mxu0 0.0
        %1968 = vmatprep.subr.mxu0 0.0
        %1969 = vmatpush1.msra.mxu0 0.0
        %1970 = vmatprep.subr.mxu0 0.0
        %1971 = vmatpush1.msra.mxu0 0.0
        %1972 = vmatprep.subr.mxu0 0.0
        %1973 = vmatpush1.msra.mxu0 0.0
        %1974 = vmatprep.subr.mxu0 0.0
        %1975 = vmatpush1.msra.mxu0 0.0
        %1976 = vmatprep.subr.mxu0 0.0
        %1977 = vmatpush1.msra.mxu0 0.0
        %1978 = vmatprep.subr.mxu0 0.0
        %1979 = vmatpush1.msra.mxu0 0.0
        %1980 = vmatprep.subr.mxu0 0.0
        %1981 = vmatpush1.msra.mxu0 0.0
        %1982 = vmatprep.subr.mxu0 0.0
        %1983 = vmatpush1.msra.mxu0 0.0
        %1984 = vmatprep.subr.mxu0 0.0
        %1985 = vmatpush1.msra.mxu0 0.0
        %1986 = vmatprep.subr.mxu0 0.0
        %1987 = vmatpush1.msra.mxu0 0.0
        %1988 = vmatprep.subr.mxu0 0.0
        %1989 = vmatpush1.msra.mxu0 0.0
        %1990 = vmatprep.subr.mxu0 0.0
        %1991 = vmatpush1.msra.mxu0 0.0
        %1992 = vmatprep.subr.mxu0 0.0
        %1993 = vmatpush1.msra.mxu0 0.0
        %1994 = vmatprep.subr.mxu0 0.0
        %1995 = vmatpush1.msra.mxu0 0.0
        %1996 = vmatprep.subr.mxu0 0.0
        %1997 = vmatpush1.msra.mxu0 0.0
        %1998 = vmatprep.subr.mxu0 0.0
        %1999 = vmatpush1.msra.mxu0 0.0
        %2000 = vmatprep.subr.mxu0 0.0
        %2001 = vmatpush1.msra.mxu0 0.0
        %2002 = vmatprep.subr.mxu0 0.0
        %2003 = vmatpush1.msra.mxu0 0.0
        %2004 = vmatprep.subr.mxu0 0.0
        %2005 = vmatpush1.msra.mxu0 0.0
        %2006 = vmatprep.subr.mxu0 0.0
        %2007 = vmatpush1.msra.mxu0 0.0
        %2008 = vmatprep.subr.mxu0 0.0
        %2009 = vmatpush1.msra.mxu0 0.0
        %2010 = vmatprep.subr.mxu0 0.0
        %2011 = vmatpush1.msra.mxu0 0.0
        %2012 = vmatprep.subr.mxu0 0.0
        %2013 = vmatpush1.msra.mxu0 0.0
        %2014 = vmatprep.mubr.f32.mxu0 0.0
        %2015 = vmatmul.mubr.f32.gmra.mrb[0].mxu0 %v1933
        %v2016 = vpop.f32.mrb[0].mxu0
        %v2017 = vadd.f32 0.0, %v2016
        %v2018 = vpop.f32.mrb[0].mxu0
        %2019 = vmatprep.mubr.f32.mxu0 0.0
        %2020 = vmatmul.mubr.f32.gmra.mrb[0].mxu0 %v1936
        %v2021 = vpop.f32.mrb[0].mxu0
        %v2022 = vadd.f32 0.0, %v2021
        %v2023 = vpop.f32.mrb[0].mxu0
        %2024 = vmatprep.mubr.f32.mxu0 0.0
        %2025 = vmatmul.mubr.f32.gmra.mrb[0].mxu0 %v1939
        %v2026 = vpop.f32.mrb[0].mxu0
        %v2027 = vadd.f32 0.0, %v2026
        %v2028 = vpop.f32.mrb[0].mxu0
        %2029 = vmatprep.mubr.f32.mxu0 0.0
        %2030 = vmatmul.mubr.f32.gmra.mrb[0].mxu0 %v1942
        %v2031 = vpop.f32.mrb[0].mxu0
        %v2032 = vadd.f32 0.0, %v2031
        %v2033 = vpop.f32.mrb[0].mxu0
        %2034 = vmatprep.mubr.f32.mxu0 0.0
        %2035 = vmatmul.mubr.f32.gmra.mrb[0].mxu0 %v1945
        %v2036 = vpop.f32.mrb[0].mxu0
        %v2037 = vadd.f32 0.0, %v2036
        %v2038 = vpop.f32.mrb[0].mxu0
        %2039 = vmatprep.mubr.f32.mxu0 0.0
        %2040 = vmatmul.mubr.f32.gmra.mrb[0].mxu0 %v1948
        %v2041 = vpop.f32.mrb[0].mxu0
        %v2042 = vadd.f32 0.0, %v2041
        %v2043 = vpop.f32.mrb[0].mxu0
        %2044 = vdwg.mxu0
        %v2045 = vmax.f32 %v2017, 0.0
        %v2046 = vmax.f32 %v2022, 0.0
        %v2047 = vmax.f32 %v2027, 0.0
        %v2048 = vmax.f32 %v2032, 0.0
        %v2049 = vmax.f32 %v2037, 0.0
        %v2050 = vmax.f32 %v2042, 0.0
        %v2051 = vld [vmem:[%s12] sm:$0x3f]
        %v2053 = vsel %vm1371, %v2051, 0
        %2055 = vmatprep.subr.mxu0 0.0
        %2056 = vmatpush1.msra.mxu0 %v2045
        %2057 = vmatprep.subr.mxu0 0.0
        %2058 = vmatpush1.msra.mxu0 %v2046
        %2059 = vmatprep.subr.mxu0 0.0
        %2060 = vmatpush1.msra.mxu0 %v2047
        %2061 = vmatprep.subr.mxu0 0.0
        %2062 = vmatpush1.msra.mxu0 %v2048
        %2063 = vmatprep.subr.mxu0 0.0
        %2064 = vmatpush1.msra.mxu0 %v2049
        %2065 = vmatprep.subr.mxu0 0.0
        %2066 = vmatpush1.msra.mxu0 %v2050
        %2067 = vmatprep.subr.mxu0 0.0
        %2068 = vmatpush1.msra.mxu0 0.0
        %2069 = vmatprep.subr.mxu0 0.0
        %2070 = vmatpush1.msra.mxu0 0.0
        %2071 = vmatprep.subr.mxu0 0.0
        %2072 = vmatpush1.msra.mxu0 0.0
        %2073 = vmatprep.subr.mxu0 0.0
        %2074 = vmatpush1.msra.mxu0 0.0
        %2075 = vmatprep.subr.mxu0 0.0
        %2076 = vmatpush1.msra.mxu0 0.0
        %2077 = vmatprep.subr.mxu0 0.0
        %2078 = vmatpush1.msra.mxu0 0.0
        %2079 = vmatprep.subr.mxu0 0.0
        %2080 = vmatpush1.msra.mxu0 0.0
        %2081 = vmatprep.subr.mxu0 0.0
        %2082 = vmatpush1.msra.mxu0 0.0
        %2083 = vmatprep.subr.mxu0 0.0
        %2084 = vmatpush1.msra.mxu0 0.0
        %2085 = vmatprep.subr.mxu0 0.0
        %2086 = vmatpush1.msra.mxu0 0.0
        %2087 = vmatprep.subr.mxu0 0.0
        %2088 = vmatpush1.msra.mxu0 0.0
        %2089 = vmatprep.subr.mxu0 0.0
        %2090 = vmatpush1.msra.mxu0 0.0
        %2091 = vmatprep.subr.mxu0 0.0
        %2092 = vmatpush1.msra.mxu0 0.0
        %2093 = vmatprep.subr.mxu0 0.0
        %2094 = vmatpush1.msra.mxu0 0.0
        %2095 = vmatprep.subr.mxu0 0.0
        %2096 = vmatpush1.msra.mxu0 0.0
        %2097 = vmatprep.subr.mxu0 0.0
        %2098 = vmatpush1.msra.mxu0 0.0
        %2099 = vmatprep.subr.mxu0 0.0
        %2100 = vmatpush1.msra.mxu0 0.0
        %2101 = vmatprep.subr.mxu0 0.0
        %2102 = vmatpush1.msra.mxu0 0.0
        %2103 = vmatprep.subr.mxu0 0.0
        %2104 = vmatpush1.msra.mxu0 0.0
        %2105 = vmatprep.subr.mxu0 0.0
        %2106 = vmatpush1.msra.mxu0 0.0
        %2107 = vmatprep.subr.mxu0 0.0
        %2108 = vmatpush1.msra.mxu0 0.0
        %2109 = vmatprep.subr.mxu0 0.0
        %2110 = vmatpush1.msra.mxu0 0.0
        %2111 = vmatprep.subr.mxu0 0.0
        %2112 = vmatpush1.msra.mxu0 0.0
        %2113 = vmatprep.subr.mxu0 0.0
        %2114 = vmatpush1.msra.mxu0 0.0
        %2115 = vmatprep.subr.mxu0 0.0
        %2116 = vmatpush1.msra.mxu0 0.0
        %2117 = vmatprep.subr.mxu0 0.0
        %2118 = vmatpush1.msra.mxu0 0.0
        %2119 = vmatprep.mubr.f32.mxu0 0.0
        %2120 = vmatmul.mubr.f32.gmra.mrb[0].mxu0 %v2053
        %v2121 = vpop.f32.mrb[0].mxu0
        %v2122 = vadd.f32 0.0, %v2121
        %v2123 = vpop.f32.mrb[0].mxu0
        %2124 = vdwg.mxu0
        %v2125 = vld [vmem:[%s9] sm:$0xff]
        %v2126 = vld [vmem:[%s9 + $0x8] sm:$0xff]
        %v2127 = vld [vmem:[%s9 + $0x10] sm:$0xff]
        %v2128 = vld [vmem:[%s9 + $0x18] sm:$0xff]
        %v2129 = vld [vmem:[#allocation15] sm:$0x1]
        %v2131 = vlaneseq
        %v2132 = vshrl.u32 %v2131, 7
        %v2133 = vsub.s32 0, %v2132
        %v2134 = vrot.slane %v2129, %v2133
        %v2137 = vsel %vm609, %v2122, 0
        %2139 = vmatprep.subr.mxu0 0.0
        %2140 = vmatpush1.msra.mxu0 %v2125
        %2141 = vmatprep.subr.mxu0 0.0
        %2142 = vmatpush1.msra.mxu0 %v2126
        %2143 = vmatprep.subr.mxu0 0.0
        %2144 = vmatpush1.msra.mxu0 %v2127
        %2145 = vmatprep.subr.mxu0 0.0
        %2146 = vmatpush1.msra.mxu0 %v2128
        %2147 = vmatprep.subr.mxu0 0.0
        %2148 = vmatpush1.msra.mxu0 0.0
        %2149 = vmatprep.subr.mxu0 0.0
        %2150 = vmatpush1.msra.mxu0 0.0
        %2151 = vmatprep.subr.mxu0 0.0
        %2152 = vmatpush1.msra.mxu0 0.0
        %2153 = vmatprep.subr.mxu0 0.0
        %2154 = vmatpush1.msra.mxu0 0.0
        %2155 = vmatprep.subr.mxu0 0.0
        %2156 = vmatpush1.msra.mxu0 0.0
        %2157 = vmatprep.subr.mxu0 0.0
        %2158 = vmatpush1.msra.mxu0 0.0
        %2159 = vmatprep.subr.mxu0 0.0
        %2160 = vmatpush1.msra.mxu0 0.0
        %2161 = vmatprep.subr.mxu0 0.0
        %2162 = vmatpush1.msra.mxu0 0.0
        %2163 = vmatprep.subr.mxu0 0.0
        %2164 = vmatpush1.msra.mxu0 0.0
        %2165 = vmatprep.subr.mxu0 0.0
        %2166 = vmatpush1.msra.mxu0 0.0
        %2167 = vmatprep.subr.mxu0 0.0
        %2168 = vmatpush1.msra.mxu0 0.0
        %2169 = vmatprep.subr.mxu0 0.0
        %2170 = vmatpush1.msra.mxu0 0.0
        %2171 = vmatprep.subr.mxu0 0.0
        %2172 = vmatpush1.msra.mxu0 0.0
        %2173 = vmatprep.subr.mxu0 0.0
        %2174 = vmatpush1.msra.mxu0 0.0
        %2175 = vmatprep.subr.mxu0 0.0
        %2176 = vmatpush1.msra.mxu0 0.0
        %2177 = vmatprep.subr.mxu0 0.0
        %2178 = vmatpush1.msra.mxu0 0.0
        %2179 = vmatprep.subr.mxu0 0.0
        %2180 = vmatpush1.msra.mxu0 0.0
        %2181 = vmatprep.subr.mxu0 0.0
        %2182 = vmatpush1.msra.mxu0 0.0
        %2183 = vmatprep.subr.mxu0 0.0
        %2184 = vmatpush1.msra.mxu0 0.0
        %2185 = vmatprep.subr.mxu0 0.0
        %2186 = vmatpush1.msra.mxu0 0.0
        %2187 = vmatprep.subr.mxu0 0.0
        %2188 = vmatpush1.msra.mxu0 0.0
        %2189 = vmatprep.subr.mxu0 0.0
        %2190 = vmatpush1.msra.mxu0 0.0
        %2191 = vmatprep.subr.mxu0 0.0
        %2192 = vmatpush1.msra.mxu0 0.0
        %2193 = vmatprep.subr.mxu0 0.0
        %2194 = vmatpush1.msra.mxu0 0.0
        %2195 = vmatprep.subr.mxu0 0.0
        %2196 = vmatpush1.msra.mxu0 0.0
        %2197 = vmatprep.subr.mxu0 0.0
        %2198 = vmatpush1.msra.mxu0 0.0
        %2199 = vmatprep.subr.mxu0 0.0
        %2200 = vmatpush1.msra.mxu0 0.0
        %2201 = vmatprep.subr.mxu0 0.0
        %2202 = vmatpush1.msra.mxu0 0.0
        %2203 = vmatprep.mubr.f32.mxu0 0.0
        %2204 = vmatmul.mubr.f32.gmra.mrb[0].mxu0 %v2137
        %v2205 = vpop.f32.mrb[0].mxu0
        %v2206 = vadd.f32 %v2134, %v2205
        %v2207 = vpop.f32.mrb[0].mxu0
        %2208 = vdwg.mxu0
        %2209 = vst [vmem:[%s582] sm:$0x3f] %v2206
        %p2210 = scmp.lt.s32.totalorder %s32, 1
        %s2211 = scalar_select %p2210, %s32, 1
        %s2212 = smul.addr %s2211, 8
        %s2213 = scalar_lea.vmem %s13, %s2212
        // Predicated region
        $region113: #{tpu_custom_call.1} parent=71 // pred_check
          %p2214 = pneg %p328
        $region114: #{tpu_custom_call.1} parent=71 // pred_check_branch
          %2216 = sbr.rel (%p2214) target = $region116
        $region115: #{tpu_custom_call.1} parent=71 // pred_region
          _
        $region116: #{tpu_custom_call.1} parent=71 // pred_fallthru
          _
      $region72: #{tpu_custom_call.1} parent=5 // pred_fallthru
        _
      %p2217 = scmp.le.s32.totalorder 2, %s27
      // Predicated region
      $region117: #{tpu_custom_call.1} parent=5 // pred_check
        %p2218 = pneg %p2217
      $region118: #{tpu_custom_call.1} parent=5 // pred_check_branch
        %2220 = sbr.rel (%p2218) target = $region120
      $region119: #{tpu_custom_call.1} parent=5 // pred_region
        %s2221 = ssub.s32 %s27, 2
        // Predicated region
        $region121: #{tpu_custom_call.1} parent=119 // pred_check
          %p2222 = pneg %p334
        $region122: #{tpu_custom_call.1} parent=119 // pred_check_branch
          %2224 = sbr.rel (%p2222) target = $region124
        $region123: #{tpu_custom_call.1} parent=119 // pred_region
          %p2225 = scmp.lt.s32.totalorder %s33, 1
          %s2226 = scalar_select %p2225, %s33, 1
          %s2227 = smul.addr %s2226, 8
          %s2228 = scalar_lea.vmem %s13, %s2227
        $region124: #{tpu_custom_call.1} parent=119 // pred_fallthru
          _
      $region120: #{tpu_custom_call.1} parent=5 // pred_fallthru
        _
    $region6: #{tpu_custom_call.1} parent=1 // loop_footer
      %s31 = sadd.s32 1, %s27
    $region7: #{tpu_custom_call.1} parent=1 // loop_footer_branch
      %26 = sbr.rel target = $region3
    $region8: #{tpu_custom_call.1} parent=1 // loop_exit
      _
    %2229 = vsyncpa [#allocation3], 1
    %s2230 = scalar_lea.sflag [#allocation3], 1
    %2231 = vsyncpa %s2230, 1
    %2232 = vsyncpa [#allocation5], 1
    %2233 = vsyncpa [#allocation8], 1
    %2234 = vsyncpa [#allocation11], 1
    %2235 = vsyncpa [#allocation14], 1
    %2236 = vsyncpa [#allocation17], 1

// kernel: tpu_custom_call.1
$region0: #{tpu_custom_call.1}
  #allocation0 [shape = 'u32[]', space=smem, size = 0x4, offset = 0x4, fixed_abs, tag = 'smem constant byte address 0x4 - core index']
  #allocation1 [shape = 'u32[144,128]{1,0:T(1,128)}', space=vmem, size = 0x12000, scoped, tag = 'internal scratch']
  %s0 = inlined_call_operand.hbm [shape: f32[12,8,32], index: 0, kind: input, shape index: {}]
  %s1 = inlined_call_operand.hbm [shape: f32[32,256], index: 1, kind: input, shape index: {}]
  %s2 = inlined_call_operand.hbm [shape: f32[1,256], index: 2, kind: input, shape index: {}]
  %s3 = inlined_call_operand.hbm [shape: f32[256,256], index: 3, kind: input, shape index: {}]
  %s4 = inlined_call_operand.hbm [shape: f32[1,256], index: 4, kind: input, shape index: {}]
  %s5 = inlined_call_operand.hbm [shape: f32[32,96], index: 5, kind: input, shape index: {}]
  %s6 = inlined_call_operand.vmem [shape: f32[1,96], index: 6, kind: input, shape index: {}]
  %s7 = inlined_call_operand.hbm [shape: f32[32,96], index: 7, kind: input, shape index: {}]
  %s8 = inlined_call_operand.hbm [shape: f32[1,96], index: 8, kind: input, shape index: {}]
  %s9 = inlined_call_operand.vmem [shape: f32[32,128], index: 9, kind: input, shape index: {}]
  %s10 = inlined_call_operand.hbm [shape: f32[1,128], index: 10, kind: input, shape index: {}]
  %s11 = inlined_call_operand.hbm [shape: f32[48,48], index: 11, kind: input, shape index: {}]
  %s12 = inlined_call_operand.vmem [shape: f32[6,48], index: 12, kind: input, shape index: {}]
  %s13 = inlined_call_operand.vmem [shape: f32[2,6,128], index: 13, kind: output, shape index: {}]
  %s14 = sld [smem:[#allocation0]]
  $region125: #{tpu_custom_call.1} parent=0
    _
  %s16 = ssub.s32 1, %s14
  %s17 = scalar_select 0, %s16, %s14
  $region1: #{tpu_custom_call.1} parent=0
    #allocation2 [shape = 'u8[49152]{0}', space=vmem, size = 0xc000, scoped, tag = 'input window, operand 0']
    #allocation3 [shape = 's32[2]{0}', space=sflag, size = 0x8, scoped, tag = 'scoped memory for tpu_custom_call.1']
    #allocation4 [shape = 'u8[32768]{0}', space=vmem, size = 0x8000, scoped, tag = 'input window, operand 1, single buffered']
    #allocation5 [shape = 's32[1]{0}', space=sflag, size = 0x4, scoped, tag = 'scoped memory for tpu_custom_call.1']
    #allocation6 [shape = 'u8[1024]{0}', space=vmem, size = 0x400, scoped, tag = 'input window, operand 2, single buffered']
    #allocation7 [shape = 'u8[262144]{0}', space=vmem, size = 0x40000, scoped, tag = 'input window, operand 3, single buffered']
    #allocation8 [shape = 's32[1]{0}', space=sflag, size = 0x4, scoped, tag = 'scoped memory for tpu_custom_call.1']
    #allocation9 [shape = 'u8[1024]{0}', space=vmem, size = 0x400, scoped, tag = 'input window, operand 4, single buffered']
    #allocation10 [shape = 'u8[16384]{0}', space=vmem, size = 0x4000, scoped, tag = 'input window, operand 5, single buffered']
    #allocation11 [shape = 's32[1]{0}', space=sflag, size = 0x4, scoped, tag = 'scoped memory for tpu_custom_call.1']
    #allocation12 [shape = 'u8[16384]{0}', space=vmem, size = 0x4000, scoped, tag = 'input window, operand 7, single buffered']
    #allocation13 [shape = 'u8[512]{0}', space=vmem, size = 0x400, scoped, tag = 'input window, operand 8, single buffered']
    #allocation14 [shape = 's32[1]{0}', space=sflag, size = 0x4, scoped, tag = 'scoped memory for tpu_custom_call.1']
    #allocation15 [shape = 'u8[512]{0}', space=vmem, size = 0x400, scoped, tag = 'input window, operand 10, single buffered']
    #allocation16 [shape = 'u8[24576]{0}', space=vmem, size = 0x6000, scoped, tag = 'input window, operand 11, single buffered']
    #allocation17 [shape = 's32[1]{0}', space=sflag, size = 0x4, scoped, tag = 'scoped memory for tpu_custom_call.1']
    %18 = vsyncpa [#allocation3], 0
    %s19 = scalar_lea.sflag [#allocation3], 1
    %20 = vsyncpa %s19, 0
    %21 = vsyncpa [#allocation5], 0
    %22 = vsyncpa [#allocation8], 0
    %23 = vsyncpa [#allocation11], 0
    %24 = vsyncpa [#allocation14], 0
    %25 = vsyncpa [#allocation17], 0
    loop: start=0, step=1, limit=4
    $region2: #{tpu_custom_call.1} parent=1 // loop_pre_header
      _
    $region3: #{tpu_custom_call.1} parent=1 // loop_header
      %s27 = sphi 0, %s31
      %p28 = scmp.ge.s32.totalorder %s27, 4
      %s37 = sphi 0, %s39
      %s40 = sphi 0, %s37
      %s41 = sphi 0, %s40
      %s57 = sphi 0, %s41
      %s61 = sphi 0, %s61
      %s63 = sphi 0, %s61
      %s64 = sphi 0, %s63
      %s78 = sphi 0, %s64
      %s82 = sphi 0, %s82
      %s84 = sphi 0, %s82
      %s85 = sphi 0, %s84
      %s99 = sphi 0, %s85
      %s103 = sphi 0, %s103
      %s105 = sphi 0, %s103
      %s106 = sphi 0, %s105
      %s120 = sphi 0, %s106
      %s124 = sphi 0, %s124
      %s126 = sphi 0, %s124
      %s127 = sphi 0, %s126
      %s141 = sphi 0, %s127
      %s145 = sphi 0, %s145
      %s147 = sphi 0, %s145
      %s148 = sphi 0, %s147
      %s162 = sphi 0, %s148
      %s166 = sphi 0, %s166
      %s168 = sphi 0, %s166
      %s169 = sphi 0, %s168
      %s183 = sphi 0, %s169
      %s187 = sphi 0, %s187
      %s189 = sphi 0, %s187
      %s190 = sphi 0, %s189
      %s204 = sphi 0, %s190
      %s208 = sphi 0, %s208
      %s210 = sphi 0, %s208
      %s211 = sphi 0, %s210
      %s225 = sphi 0, %s211
      %s229 = sphi 0, %s229
      %s231 = sphi 0, %s229
      %s232 = sphi 0, %s231
      %s246 = sphi 0, %s232
      %s250 = sphi 0, %s250
      %s252 = sphi 0, %s250
      %s253 = sphi 0, %s252
      %s267 = sphi 0, %s253
      %s271 = sphi 0, %s271
      %s273 = sphi 0, %s271
      %s274 = sphi 0, %s273
      %s288 = sphi 0, %s274
      %s292 = sphi 0, %s292
      %s294 = sphi 0, %s292
      %s295 = sphi 0, %s294
      %s309 = sphi 0, %s295
      %s315 = sphi 0, %s317
      %s318 = sphi 0, %s315
      %s319 = sphi 0, %s318
      %s335 = sphi 0, %s319
    $region4: #{tpu_custom_call.1} parent=1 // loop_header_branch
      %30 = sbr.rel (%p28) target = $region8
    $region5: #{tpu_custom_call.1} parent=1 // loop_body
      %s32 = ssub.s32 %s27, 1
      %s33 = ssub.s32 %s27, 2
      %s34 = sadd.s32 %s27, 1
      %s35 = ssub.s32 %s27, %s34
      %p36 = scmp.eq.s32.totalorder %s35, 0
      %s38 = sadd.s32 %s37, 1
      %s39 = scalar_select %p36, %s37, %s38
      %p42 = pneg %p36
      %p43 = scmp.eq.s32.totalorder %s27, 1
      %p44 = por %p42, %p43
      %p45 = scmp.ne.s32.totalorder %s37, %s40
      %p46 = scmp.eq.s32.totalorder %s27, 0
      %p47 = por %p45, %p46
      %p48 = scmp.ne.s32.totalorder %s37, %s40
      %p49 = scmp.eq.s32.totalorder %s32, 1
      %p50 = por %p48, %p49
      %p51 = scmp.ne.s32.totalorder %s40, %s41
      %p52 = scmp.eq.s32.totalorder %s32, 0
      %p53 = por %p51, %p52
      %p54 = scmp.ne.s32.totalorder %s40, %s41
      %p55 = scmp.eq.s32.totalorder %s33, 1
      %p56 = por %p54, %p55
      %p58 = scmp.ne.s32.totalorder %s41, %s57
      %p59 = scmp.eq.s32.totalorder %s33, 0
      %p60 = por %p58, %p59
      %s62 = sadd.s32 %s61, 1
      %p65 = scmp.eq.s32.totalorder %s27, 1
      %p66 = scmp.ne.s32.totalorder %s61, %s63
      %p67 = scmp.eq.s32.totalorder %s27, 0
      %p68 = por %p66, %p67
      %p69 = scmp.ne.s32.totalorder %s61, %s63
      %p70 = scmp.eq.s32.totalorder %s32, 1
      %p71 = por %p69, %p70
      %p72 = scmp.ne.s32.totalorder %s63, %s64
      %p73 = scmp.eq.s32.totalorder %s32, 0
      %p74 = por %p72, %p73
      %p75 = scmp.ne.s32.totalorder %s63, %s64
      %p76 = scmp.eq.s32.totalorder %s33, 1
      %p77 = por %p75, %p76
      %p79 = scmp.ne.s32.totalorder %s64, %s78
      %p80 = scmp.eq.s32.totalorder %s33, 0
      %p81 = por %p79, %p80
      %s83 = sadd.s32 %s82, 1
      %p86 = scmp.eq.s32.totalorder %s27, 1
      %p87 = scmp.ne.s32.totalorder %s82, %s84
      %p88 = scmp.eq.s32.totalorder %s27, 0
      %p89 = por %p87, %p88
      %p90 = scmp.ne.s32.totalorder %s82, %s84
      %p91 = scmp.eq.s32.totalorder %s32, 1
      %p92 = por %p90, %p91
      %p93 = scmp.ne.s32.totalorder %s84, %s85
      %p94 = scmp.eq.s32.totalorder %s32, 0
      %p95 = por %p93, %p94
      %p96 = scmp.ne.s32.totalorder %s84, %s85
      %p97 = scmp.eq.s32.totalorder %s33, 1
      %p98 = por %p96, %p97
      %p100 = scmp.ne.s32.totalorder %s85, %s99
      %p101 = scmp.eq.s32.totalorder %s33, 0
      %p102 = por %p100, %p101
      %s104 = sadd.s32 %s103, 1
      %p107 = scmp.eq.s32.totalorder %s27, 1
      %p108 = scmp.ne.s32.totalorder %s103, %s105
      %p109 = scmp.eq.s32.totalorder %s27, 0
      %p110 = por %p108, %p109
      %p111 = scmp.ne.s32.totalorder %s103, %s105
      %p112 = scmp.eq.s32.totalorder %s32, 1
      %p113 = por %p111, %p112
      %p114 = scmp.ne.s32.totalorder %s105, %s106
      %p115 = scmp.eq.s32.totalorder %s32, 0
      %p116 = por %p114, %p115
      %p117 = scmp.ne.s32.totalorder %s105, %s106
      %p118 = scmp.eq.s32.totalorder %s33, 1
      %p119 = por %p117, %p118
      %p121 = scmp.ne.s32.totalorder %s106, %s120
      %p122 = scmp.eq.s32.totalorder %s33, 0
      %p123 = por %p121, %p122
      %s125 = sadd.s32 %s124, 1
      %p128 = scmp.eq.s32.totalorder %s27, 1
      %p129 = scmp.ne.s32.totalorder %s124, %s126
      %p130 = scmp.eq.s32.totalorder %s27, 0
      %p131 = por %p129, %p130
      %p132 = scmp.ne.s32.totalorder %s124, %s126
      %p133 = scmp.eq.s32.totalorder %s32, 1
      %p134 = por %p132, %p133
      %p135 = scmp.ne.s32.totalorder %s126, %s127
      %p136 = scmp.eq.s32.totalorder %s32, 0
      %p137 = por %p135, %p136
      %p138 = scmp.ne.s32.totalorder %s126, %s127
      %p139 = scmp.eq.s32.totalorder %s33, 1
      %p140 = por %p138, %p139
      %p142 = scmp.ne.s32.totalorder %s127, %s141
      %p143 = scmp.eq.s32.totalorder %s33, 0
      %p144 = por %p142, %p143
      %s146 = sadd.s32 %s145, 1
      %p149 = scmp.eq.s32.totalorder %s27, 1
      %p150 = scmp.ne.s32.totalorder %s145, %s147
      %p151 = scmp.eq.s32.totalorder %s27, 0
      %p152 = por %p150, %p151
      %p153 = scmp.ne.s32.totalorder %s145, %s147
      %p154 = scmp.eq.s32.totalorder %s32, 1
      %p155 = por %p153, %p154
      %p156 = scmp.ne.s32.totalorder %s147, %s148
      %p157 = scmp.eq.s32.totalorder %s32, 0
      %p158 = por %p156, %p157
      %p159 = scmp.ne.s32.totalorder %s147, %s148
      %p160 = scmp.eq.s32.totalorder %s33, 1
      %p161 = por %p159, %p160
      %p163 = scmp.ne.s32.totalorder %s148, %s162
      %p164 = scmp.eq.s32.totalorder %s33, 0
      %p165 = por %p163, %p164
      %s167 = sadd.s32 %s166, 1
      %p170 = scmp.eq.s32.totalorder %s27, 1
      %p171 = scmp.ne.s32.totalorder %s166, %s168
      %p172 = scmp.eq.s32.totalorder %s27, 0
      %p173 = por %p171, %p172
      %p174 = scmp.ne.s32.totalorder %s166, %s168
      %p175 = scmp.eq.s32.totalorder %s32, 1
      %p176 = por %p174, %p175
      %p177 = scmp.ne.s32.totalorder %s168, %s169
      %p178 = scmp.eq.s32.totalorder %s32, 0
      %p179 = por %p177, %p178
      %p180 = scmp.ne.s32.totalorder %s168, %s169
      %p181 = scmp.eq.s32.totalorder %s33, 1
      %p182 = por %p180, %p181
      %p184 = scmp.ne.s32.totalorder %s169, %s183
      %p185 = scmp.eq.s32.totalorder %s33, 0
      %p186 = por %p184, %p185
      %s188 = sadd.s32 %s187, 1
      %p191 = scmp.eq.s32.totalorder %s27, 1
      %p192 = scmp.ne.s32.totalorder %s187, %s189
      %p193 = scmp.eq.s32.totalorder %s27, 0
      %p194 = por %p192, %p193
      %p195 = scmp.ne.s32.totalorder %s187, %s189
      %p196 = scmp.eq.s32.totalorder %s32, 1
      %p197 = por %p195, %p196
      %p198 = scmp.ne.s32.totalorder %s189, %s190
      %p199 = scmp.eq.s32.totalorder %s32, 0
      %p200 = por %p198, %p199
      %p201 = scmp.ne.s32.totalorder %s189, %s190
      %p202 = scmp.eq.s32.totalorder %s33, 1
      %p203 = por %p201, %p202
      %p205 = scmp.ne.s32.totalorder %s190, %s204
      %p206 = scmp.eq.s32.totalorder %s33, 0
      %p207 = por %p205, %p206
      %s209 = sadd.s32 %s208, 1
      %p212 = scmp.eq.s32.totalorder %s27, 1
      %p213 = scmp.ne.s32.totalorder %s208, %s210
      %p214 = scmp.eq.s32.totalorder %s27, 0
      %p215 = por %p213, %p214
      %p216 = scmp.ne.s32.totalorder %s208, %s210
      %p217 = scmp.eq.s32.totalorder %s32, 1
      %p218 = por %p216, %p217
      %p219 = scmp.ne.s32.totalorder %s210, %s211
      %p220 = scmp.eq.s32.totalorder %s32, 0
      %p221 = por %p219, %p220
      %p222 = scmp.ne.s32.totalorder %s210, %s211
      %p223 = scmp.eq.s32.totalorder %s33, 1
      %p224 = por %p222, %p223
      %p226 = scmp.ne.s32.totalorder %s211, %s225
      %p227 = scmp.eq.s32.totalorder %s33, 0
      %p228 = por %p226, %p227
      %s230 = sadd.s32 %s229, 1
      %p233 = scmp.eq.s32.totalorder %s27, 1
      %p234 = scmp.ne.s32.totalorder %s229, %s231
      %p235 = scmp.eq.s32.totalorder %s27, 0
      %p236 = por %p234, %p235
      %p237 = scmp.ne.s32.totalorder %s229, %s231
      %p238 = scmp.eq.s32.totalorder %s32, 1
      %p239 = por %p237, %p238
      %p240 = scmp.ne.s32.totalorder %s231, %s232
      %p241 = scmp.eq.s32.totalorder %s32, 0
      %p242 = por %p240, %p241
      %p243 = scmp.ne.s32.totalorder %s231, %s232
      %p244 = scmp.eq.s32.totalorder %s33, 1
      %p245 = por %p243, %p244
      %p247 = scmp.ne.s32.totalorder %s232, %s246
      %p248 = scmp.eq.s32.totalorder %s33, 0
      %p249 = por %p247, %p248
      %s251 = sadd.s32 %s250, 1
      %p254 = scmp.eq.s32.totalorder %s27, 1
      %p255 = scmp.ne.s32.totalorder %s250, %s252
      %p256 = scmp.eq.s32.totalorder %s27, 0
      %p257 = por %p255, %p256
      %p258 = scmp.ne.s32.totalorder %s250, %s252
      %p259 = scmp.eq.s32.totalorder %s32, 1
      %p260 = por %p258, %p259
      %p261 = scmp.ne.s32.totalorder %s252, %s253
      %p262 = scmp.eq.s32.totalorder %s32, 0
      %p263 = por %p261, %p262
      %p264 = scmp.ne.s32.totalorder %s252, %s253
      %p265 = scmp.eq.s32.totalorder %s33, 1
      %p266 = por %p264, %p265
      %p268 = scmp.ne.s32.totalorder %s253, %s267
      %p269 = scmp.eq.s32.totalorder %s33, 0
      %p270 = por %p268, %p269
      %s272 = sadd.s32 %s271, 1
      %p275 = scmp.eq.s32.totalorder %s27, 1
      %p276 = scmp.ne.s32.totalorder %s271, %s273
      %p277 = scmp.eq.s32.totalorder %s27, 0
      %p278 = por %p276, %p277
      %p279 = scmp.ne.s32.totalorder %s271, %s273
      %p280 = scmp.eq.s32.totalorder %s32, 1
      %p281 = por %p279, %p280
      %p282 = scmp.ne.s32.totalorder %s273, %s274
      %p283 = scmp.eq.s32.totalorder %s32, 0
      %p284 = por %p282, %p283
      %p285 = scmp.ne.s32.totalorder %s273, %s274
      %p286 = scmp.eq.s32.totalorder %s33, 1
      %p287 = por %p285, %p286
      %p289 = scmp.ne.s32.totalorder %s274, %s288
      %p290 = scmp.eq.s32.totalorder %s33, 0
      %p291 = por %p289, %p290
      %s293 = sadd.s32 %s292, 1
      %p296 = scmp.eq.s32.totalorder %s27, 1
      %p297 = scmp.ne.s32.totalorder %s292, %s294
      %p298 = scmp.eq.s32.totalorder %s27, 0
      %p299 = por %p297, %p298
      %p300 = scmp.ne.s32.totalorder %s292, %s294
      %p301 = scmp.eq.s32.totalorder %s32, 1
      %p302 = por %p300, %p301
      %p303 = scmp.ne.s32.totalorder %s294, %s295
      %p304 = scmp.eq.s32.totalorder %s32, 0
      %p305 = por %p303, %p304
      %p306 = scmp.ne.s32.totalorder %s294, %s295
      %p307 = scmp.eq.s32.totalorder %s33, 1
      %p308 = por %p306, %p307
      %p310 = scmp.ne.s32.totalorder %s295, %s309
      %p311 = scmp.eq.s32.totalorder %s33, 0
      %p312 = por %p310, %p311
      %s313 = ssub.s32 %s27, %s34
      %p314 = scmp.eq.s32.totalorder %s313, 0
      %s316 = sadd.s32 %s315, 1
      %s317 = scalar_select %p314, %s315, %s316
      %p320 = pneg %p314
      %p321 = scmp.eq.s32.totalorder %s27, 1
      %p322 = por %p320, %p321
      %p323 = scmp.ne.s32.totalorder %s315, %s318
      %p324 = scmp.eq.s32.totalorder %s27, 0
      %p325 = por %p323, %p324
      %p326 = scmp.ne.s32.totalorder %s315, %s318
      %p327 = scmp.eq.s32.totalorder %s32, 1
      %p328 = por %p326, %p327
      %p329 = scmp.ne.s32.totalorder %s318, %s319
      %p330 = scmp.eq.s32.totalorder %s32, 0
      %p331 = por %p329, %p330
      %p332 = scmp.ne.s32.totalorder %s318, %s319
      %p333 = scmp.eq.s32.totalorder %s33, 1
      %p334 = por %p332, %p333
      %p336 = scmp.ne.s32.totalorder %s319, %s335
      %p337 = scmp.eq.s32.totalorder %s33, 0
      %p338 = por %p336, %p337
      %p339 = scmp.le.s32.totalorder 1, %s27
      %p340 = scmp.lt.s32.totalorder %s27, 3
      %p341 = pnand %p339, %p340
      %p342 = pneg %p341
      // Predicated region
      $region9: #{tpu_custom_call.1} parent=5 // pred_check
        _
      $region10: #{tpu_custom_call.1} parent=5 // pred_check_branch
        %344 = sbr.rel (%p341) target = $region12
      $region11: #{tpu_custom_call.1} parent=5 // pred_region
        %s345 = ssub.s32 %s27, 1
        // Predicated region
        $region13: #{tpu_custom_call.1} parent=11 // pred_check
          %p346 = pneg %p74
        $region14: #{tpu_custom_call.1} parent=11 // pred_check_branch
          %348 = sbr.rel (%p346) target = $region16
        $region15: #{tpu_custom_call.1} parent=11 // pred_region
          %s350 = ssub.s32 1024, 1024
          %351 = vsyncadd [#allocation5], %s350
          %s352 = sshll.u32 [#allocation4], 4
          %s353 = int_to_ptr.vmem [resolvable:$true] %s352
          %358 = dma.hbm_to_vmem [thread:$0]  %s1, 1024, %s353, [#allocation5], 256, 256, 16
        $region16: #{tpu_custom_call.1} parent=11 // pred_fallthru
          _
        // Predicated region
        $region17: #{tpu_custom_call.1} parent=11 // pred_check
          %p359 = pneg %p95
        $region18: #{tpu_custom_call.1} parent=11 // pred_check_branch
          %361 = sbr.rel (%p359) target = $region20
        $region19: #{tpu_custom_call.1} parent=11 // pred_region
          %s363 = ssub.s32 32, 32
          %364 = vsyncadd [#allocation5], %s363
          %s366 = sshll.u32 [#allocation6], 4
          %s367 = int_to_ptr.vmem [resolvable:$true] %s366
          %369 = dma.hbm_to_vmem [thread:$0]  %s2, 32, %s367, [#allocation5]
        $region20: #{tpu_custom_call.1} parent=11 // pred_fallthru
          _
        // Predicated region
        $region21: #{tpu_custom_call.1} parent=11 // pred_check
          %p370 = pneg %p116
        $region22: #{tpu_custom_call.1} parent=11 // pred_check_branch
          %372 = sbr.rel (%p370) target = $region24
        $region23: #{tpu_custom_call.1} parent=11 // pred_region
          %s374 = ssub.s32 8192, 8192
          %375 = vsyncadd [#allocation8], %s374
          %s376 = sshll.u32 [#allocation7], 4
          %s377 = int_to_ptr.vmem [resolvable:$true] %s376
          %382 = dma.hbm_to_vmem [thread:$0]  %s3, 8192, %s377, [#allocation8], 256, 256, 16
        $region24: #{tpu_custom_call.1} parent=11 // pred_fallthru
          _
        // Predicated region
        $region25: #{tpu_custom_call.1} parent=11 // pred_check
          %p383 = pneg %p137
        $region26: #{tpu_custom_call.1} parent=11 // pred_check_branch
          %385 = sbr.rel (%p383) target = $region28
        $region27: #{tpu_custom_call.1} parent=11 // pred_region
          %s387 = ssub.s32 32, 32
          %388 = vsyncadd [#allocation8], %s387
          %s390 = sshll.u32 [#allocation9], 4
          %s391 = int_to_ptr.vmem [resolvable:$true] %s390
          %393 = dma.hbm_to_vmem [thread:$0]  %s4, 32, %s391, [#allocation8]
        $region28: #{tpu_custom_call.1} parent=11 // pred_fallthru
          _
        // Predicated region
        $region29: #{tpu_custom_call.1} parent=11 // pred_check
          %p394 = pneg %p158
        $region30: #{tpu_custom_call.1} parent=11 // pred_check_branch
          %396 = sbr.rel (%p394) target = $region32
        $region31: #{tpu_custom_call.1} parent=11 // pred_region
          %s398 = ssub.s32 512, 512
          %399 = vsyncadd [#allocation11], %s398
          %s400 = sshll.u32 [#allocation10], 4
          %s401 = int_to_ptr.vmem [resolvable:$true] %s400
          %406 = dma.hbm_to_vmem [thread:$0]  %s5, 512, %s401, [#allocation11], 128, 128, 8
        $region32: #{tpu_custom_call.1} parent=11 // pred_fallthru
          _
        // Predicated region
        $region33: #{tpu_custom_call.1} parent=11 // pred_check
          %p407 = pneg %p179
        $region34: #{tpu_custom_call.1} parent=11 // pred_check_branch
          %409 = sbr.rel (%p407) target = $region36
        $region35: #{tpu_custom_call.1} parent=11 // pred_region
          _
        $region36: #{tpu_custom_call.1} parent=11 // pred_fallthru
          _
        // Predicated region
        $region37: #{tpu_custom_call.1} parent=11 // pred_check
          %p410 = pneg %p200
        $region38: #{tpu_custom_call.1} parent=11 // pred_check_branch
          %412 = sbr.rel (%p410) target = $region40
        $region39: #{tpu_custom_call.1} parent=11 // pred_region
          %s414 = ssub.s32 512, 512
          %415 = vsyncadd [#allocation11], %s414
          %s416 = sshll.u32 [#allocation12], 4
          %s417 = int_to_ptr.vmem [resolvable:$true] %s416
          %422 = dma.hbm_to_vmem [thread:$0]  %s7, 512, %s417, [#allocation11], 128, 128, 8
        $region40: #{tpu_custom_call.1} parent=11 // pred_fallthru
          _
        // Predicated region
        $region41: #{tpu_custom_call.1} parent=11 // pred_check
          %p423 = pneg %p221
        $region42: #{tpu_custom_call.1} parent=11 // pred_check_branch
          %425 = sbr.rel (%p423) target = $region44
        $region43: #{tpu_custom_call.1} parent=11 // pred_region
          %s427 = ssub.s32 16, 16
          %428 = vsyncadd [#allocation14], %s427
          %s430 = sshll.u32 [#allocation13], 4
          %s431 = int_to_ptr.vmem [resolvable:$true] %s430
          %433 = dma.hbm_to_vmem [thread:$0]  %s8, 16, %s431, [#allocation14]
        $region44: #{tpu_custom_call.1} parent=11 // pred_fallthru
          _
        // Predicated region
        $region45: #{tpu_custom_call.1} parent=11 // pred_check
          %p434 = pneg %p242
        $region46: #{tpu_custom_call.1} parent=11 // pred_check_branch
          %436 = sbr.rel (%p434) target = $region48
        $region47: #{tpu_custom_call.1} parent=11 // pred_region
          _
        $region48: #{tpu_custom_call.1} parent=11 // pred_fallthru
          _
        // Predicated region
        $region49: #{tpu_custom_call.1} parent=11 // pred_check
          %p437 = pneg %p263
        $region50: #{tpu_custom_call.1} parent=11 // pred_check_branch
          %439 = sbr.rel (%p437) target = $region52
        $region51: #{tpu_custom_call.1} parent=11 // pred_region
          %s441 = ssub.s32 16, 16
          %442 = vsyncadd [#allocation14], %s441
          %s444 = sshll.u32 [#allocation15], 4
          %s445 = int_to_ptr.vmem [resolvable:$true] %s444
          %447 = dma.hbm_to_vmem [thread:$0]  %s10, 16, %s445, [#allocation14]
        $region52: #{tpu_custom_call.1} parent=11 // pred_fallthru
          _
        // Predicated region
        $region53: #{tpu_custom_call.1} parent=11 // pred_check
          %p448 = pneg %p284
        $region54: #{tpu_custom_call.1} parent=11 // pred_check_branch
          %450 = sbr.rel (%p448) target = $region56
        $region55: #{tpu_custom_call.1} parent=11 // pred_region
          %s452 = ssub.s32 768, 768
          %453 = vsyncadd [#allocation17], %s452
          %s454 = sshll.u32 [#allocation16], 4
          %s455 = int_to_ptr.vmem [resolvable:$true] %s454
          %460 = dma.hbm_to_vmem [thread:$0]  %s11, 768, %s455, [#allocation17], 128, 128, 8
        $region56: #{tpu_custom_call.1} parent=11 // pred_fallthru
          _
        // Predicated region
        $region57: #{tpu_custom_call.1} parent=11 // pred_check
          %p461 = pneg %p305
        $region58: #{tpu_custom_call.1} parent=11 // pred_check_branch
          %463 = sbr.rel (%p461) target = $region60
        $region59: #{tpu_custom_call.1} parent=11 // pred_region
          _
        $region60: #{tpu_custom_call.1} parent=11 // pred_fallthru
          _
      $region12: #{tpu_custom_call.1} parent=5 // pred_fallthru
        _
      %p464 = scmp.lt.s32.totalorder %s27, 2
      // Predicated region
      $region61: #{tpu_custom_call.1} parent=5 // pred_check
        %p465 = pneg %p464
      $region62: #{tpu_custom_call.1} parent=5 // pred_check_branch
        %467 = sbr.rel (%p465) target = $region64
      $region63: #{tpu_custom_call.1} parent=5 // pred_region
        // Predicated region
        $region65: #{tpu_custom_call.1} parent=63 // pred_check
          %p468 = pneg %p47
        $region66: #{tpu_custom_call.1} parent=63 // pred_check_branch
          %470 = sbr.rel (%p468) target = $region68
        $region67: #{tpu_custom_call.1} parent=63 // pred_region
          %s471 = sand.u32 %s37, 1
          %s472 = scalar_lea.sflag [#allocation3], %s471
          %s473 = sand.u32 %s37, 1
          %s474 = smul.addr %s473, 48
          %s475 = scalar_lea.vmem [#allocation2], %s474
          %s476 = smul.u32 6, %s27
          %s478 = ssub.s32 768, 768
          %479 = vsyncadd %s472, %s478
          %s480 = smul.addr %s476, 128
          %s481 = scalar_lea.hbm %s0, %s480
          %s482 = sshll.u32 %s475, 4
          %s483 = int_to_ptr.vmem [resolvable:$true] %s482
          %488 = dma.hbm_to_vmem [thread:$0]  %s481, 768, %s483, %s472, 128, 128, 8
        $region68: #{tpu_custom_call.1} parent=63 // pred_fallthru
          _
      $region64: #{tpu_custom_call.1} parent=5 // pred_fallthru
        _
      %p489 = scmp.le.s32.totalorder 1, %s27
      %p490 = scmp.lt.s32.totalorder %s27, 3
      %p491 = pnand %p489, %p490
      %p492 = pneg %p491
      // Predicated region
      $region69: #{tpu_custom_call.1} parent=5 // pred_check
        _
      $region70: #{tpu_custom_call.1} parent=5 // pred_check_branch
        %494 = sbr.rel (%p491) target = $region72
      $region71: #{tpu_custom_call.1} parent=5 // pred_region
        %s495 = ssub.s32 %s27, 1
        %s496 = sand.u32 %s40, 1
        %s497 = scalar_lea.sflag [#allocation3], %s496
        %s498 = sand.u32 %s40, 1
        %s499 = smul.addr %s498, 48
        %s500 = scalar_lea.vmem [#allocation2], %s499
        // Predicated region
        $region73: #{tpu_custom_call.1} parent=71 // pred_check
          %p501 = pneg %p53
        $region74: #{tpu_custom_call.1} parent=71 // pred_check_branch
          %503 = sbr.rel (%p501) target = $region76
        $region75: #{tpu_custom_call.1} parent=71 // pred_region
          %504 = dma.done %s497, 768
        $region76: #{tpu_custom_call.1} parent=71 // pred_fallthru
          _
        // Predicated region
        $region77: #{tpu_custom_call.1} parent=71 // pred_check
          %p505 = pneg %p74
        $region78: #{tpu_custom_call.1} parent=71 // pred_check_branch
          %507 = sbr.rel (%p505) target = $region80
        $region79: #{tpu_custom_call.1} parent=71 // pred_region
          %508 = dma.done [#allocation5], 1024
        $region80: #{tpu_custom_call.1} parent=71 // pred_fallthru
          _
        // Predicated region
        $region81: #{tpu_custom_call.1} parent=71 // pred_check
          %p509 = pneg %p95
        $region82: #{tpu_custom_call.1} parent=71 // pred_check_branch
          %511 = sbr.rel (%p509) target = $region84
        $region83: #{tpu_custom_call.1} parent=71 // pred_region
          %512 = dma.done [#allocation5], 32
        $region84: #{tpu_custom_call.1} parent=71 // pred_fallthru
          _
        // Predicated region
        $region85: #{tpu_custom_call.1} parent=71 // pred_check
          %p513 = pneg %p116
        $region86: #{tpu_custom_call.1} parent=71 // pred_check_branch
          %515 = sbr.rel (%p513) target = $region88
        $region87: #{tpu_custom_call.1} parent=71 // pred_region
          %516 = dma.done [#allocation8], 8192
        $region88: #{tpu_custom_call.1} parent=71 // pred_fallthru
          _
        // Predicated region
        $region89: #{tpu_custom_call.1} parent=71 // pred_check
          %p517 = pneg %p137
        $region90: #{tpu_custom_call.1} parent=71 // pred_check_branch
          %519 = sbr.rel (%p517) target = $region92
        $region91: #{tpu_custom_call.1} parent=71 // pred_region
          %520 = dma.done [#allocation8], 32
        $region92: #{tpu_custom_call.1} parent=71 // pred_fallthru
          _
        // Predicated region
        $region93: #{tpu_custom_call.1} parent=71 // pred_check
          %p521 = pneg %p158
        $region94: #{tpu_custom_call.1} parent=71 // pred_check_branch
          %523 = sbr.rel (%p521) target = $region96
        $region95: #{tpu_custom_call.1} parent=71 // pred_region
          %524 = dma.done [#allocation11], 512
        $region96: #{tpu_custom_call.1} parent=71 // pred_fallthru
          _
        // Predicated region
        $region97: #{tpu_custom_call.1} parent=71 // pred_check
          %p525 = pneg %p200
        $region98: #{tpu_custom_call.1} parent=71 // pred_check_branch
          %527 = sbr.rel (%p525) target = $region100
        $region99: #{tpu_custom_call.1} parent=71 // pred_region
          %528 = dma.done [#allocation11], 512
        $region100: #{tpu_custom_call.1} parent=71 // pred_fallthru
          _
        // Predicated region
        $region101: #{tpu_custom_call.1} parent=71 // pred_check
          %p529 = pneg %p221
        $region102: #{tpu_custom_call.1} parent=71 // pred_check_branch
          %531 = sbr.rel (%p529) target = $region104
        $region103: #{tpu_custom_call.1} parent=71 // pred_region
          %532 = dma.done [#allocation14], 16
        $region104: #{tpu_custom_call.1} parent=71 // pred_fallthru
          _
        // Predicated region
        $region105: #{tpu_custom_call.1} parent=71 // pred_check
          %p533 = pneg %p263
        $region106: #{tpu_custom_call.1} parent=71 // pred_check_branch
          %535 = sbr.rel (%p533) target = $region108
        $region107: #{tpu_custom_call.1} parent=71 // pred_region
          %536 = dma.done [#allocation14], 16
        $region108: #{tpu_custom_call.1} parent=71 // pred_fallthru
          _
        // Predicated region
        $region109: #{tpu_custom_call.1} parent=71 // pred_check
          %p537 = pneg %p284
        $region110: #{tpu_custom_call.1} parent=71 // pred_check_branch
          %539 = sbr.rel (%p537) target = $region112
        $region111: #{tpu_custom_call.1} parent=71 // pred_region
          %540 = dma.done [#allocation17], 768
        $region112: #{tpu_custom_call.1} parent=71 // pred_fallthru
          _
        %s541 = sand.u32 %s40, 1
        %s542 = scalar_lea.sflag [#allocation3], %s541
        %s543 = sand.u32 %s40, 1
        %s544 = smul.addr %s543, 48
        %s545 = scalar_lea.vmem [#allocation2], %s544
        %p546 = pneg %p53
        %p547 = pneg %p50
        %p548 = pneg %p74
        %p549 = pneg %p71
        %p550 = pneg %p95
        %p551 = pneg %p92
        %p552 = pneg %p116
        %p553 = pneg %p113
        %p554 = pneg %p137
        %p555 = pneg %p134
        %p556 = pneg %p158
        %p557 = pneg %p155
        %p558 = pneg %p179
        %p559 = pneg %p176
        %p560 = pneg %p200
        %p561 = pneg %p197
        %p562 = pneg %p221
        %p563 = pneg %p218
        %p564 = pneg %p242
        %p565 = pneg %p239
        %p566 = pneg %p263
        %p567 = pneg %p260
        %p568 = pneg %p284
        %p569 = pneg %p281
        %p570 = pneg %p305
        %p571 = pneg %p302
        %p572 = pneg %p331
        %p573 = pneg %p328
        %p574 = scmp.lt.s32.totalorder %s32, 1
        %s575 = scalar_select %p574, %s32, 1
        %s576 = smul.addr %s575, 8
        %s577 = scalar_lea.vmem %s13, %s576
        %s578 = smul.u32 6, %s32
        %p579 = scmp.lt.s32.totalorder %s32, 1
        %s580 = scalar_select %p579, %s32, 1
        %s581 = smul.addr %s580, 8
        %s582 = scalar_lea.vmem %s13, %s581
        %v583 = vld [vmem:[%s500] sm:$0xff]
        %v584 = vld [vmem:[%s500 + $0x8] sm:$0xff]
        %v585 = vld [vmem:[%s500 + $0x10] sm:$0xff]
        %v586 = vld [vmem:[%s500 + $0x18] sm:$0xff]
        %v587 = vld [vmem:[%s500 + $0x20] sm:$0xff]
        %v588 = vld [vmem:[%s500 + $0x28] sm:$0xff]
        %v589 = vld [vmem:[#allocation4] sm:$0xff]
        %v590 = vld [vmem:[#allocation4 + $0x8] sm:$0xff]
        %v591 = vld [vmem:[#allocation4 + $0x10] sm:$0xff]
        %v592 = vld [vmem:[#allocation4 + $0x18] sm:$0xff]
        %v593 = vld [vmem:[#allocation4 + $0x20] sm:$0xff]
        %v594 = vld [vmem:[#allocation4 + $0x28] sm:$0xff]
        %v595 = vld [vmem:[#allocation4 + $0x30] sm:$0xff]
        %v596 = vld [vmem:[#allocation4 + $0x38] sm:$0xff]
        %v597 = vld [vmem:[#allocation6] sm:$0x3]
        %v599 = vlaneseq
        %v600 = vshrl.u32 %v599, 7
        %v601 = vsub.s32 0, %v600
        %v602 = vrot.slane %v597, %v601
        %v603 = vlaneseq
        %v604 = vshrl.u32 %v603, 7
        %v605 = vsub.s32 1, %v604
        %v606 = vrot.slane %v597, %v605
        %vm609 = vcmask 261120
        %v611 = vsel %vm609, %v583, 0
        %v614 = vsel %vm609, %v584, 0
        %v617 = vsel %vm609, %v585, 0
        %v620 = vsel %vm609, %v586, 0
        %v623 = vsel %vm609, %v587, 0
        %v626 = vsel %vm609, %v588, 0
        %628 = vmatprep.subr.mxu0 %v590
        %629 = vmatpush1.msra.mxu0 %v589
        %630 = vmatprep.subr.mxu0 %v592
        %631 = vmatpush1.msra.mxu0 %v591
        %632 = vmatprep.subr.mxu0 %v594
        %633 = vmatpush1.msra.mxu0 %v593
        %634 = vmatprep.subr.mxu0 %v596
        %635 = vmatpush1.msra.mxu0 %v595
        %636 = vmatprep.subr.mxu0 0.0
        %637 = vmatpush1.msra.mxu0 0.0
        %638 = vmatprep.subr.mxu0 0.0
        %639 = vmatpush1.msra.mxu0 0.0
        %640 = vmatprep.subr.mxu0 0.0
        %641 = vmatpush1.msra.mxu0 0.0
        %642 = vmatprep.subr.mxu0 0.0
        %643 = vmatpush1.msra.mxu0 0.0
        %644 = vmatprep.subr.mxu0 0.0
        %645 = vmatpush1.msra.mxu0 0.0
        %646 = vmatprep.subr.mxu0 0.0
        %647 = vmatpush1.msra.mxu0 0.0
        %648 = vmatprep.subr.mxu0 0.0
        %649 = vmatpush1.msra.mxu0 0.0
        %650 = vmatprep.subr.mxu0 0.0
        %651 = vmatpush1.msra.mxu0 0.0
        %652 = vmatprep.subr.mxu0 0.0
        %653 = vmatpush1.msra.mxu0 0.0
        %654 = vmatprep.subr.mxu0 0.0
        %655 = vmatpush1.msra.mxu0 0.0
        %656 = vmatprep.subr.mxu0 0.0
        %657 = vmatpush1.msra.mxu0 0.0
        %658 = vmatprep.subr.mxu0 0.0
        %659 = vmatpush1.msra.mxu0 0.0
        %660 = vmatprep.subr.mxu0 0.0
        %661 = vmatpush1.msra.mxu0 0.0
        %662 = vmatprep.subr.mxu0 0.0
        %663 = vmatpush1.msra.mxu0 0.0
        %664 = vmatprep.subr.mxu0 0.0
        %665 = vmatpush1.msra.mxu0 0.0
        %666 = vmatprep.subr.mxu0 0.0
        %667 = vmatpush1.msra.mxu0 0.0
        %668 = vmatprep.subr.mxu0 0.0
        %669 = vmatpush1.msra.mxu0 0.0
        %670 = vmatprep.subr.mxu0 0.0
        %671 = vmatpush1.msra.mxu0 0.0
        %672 = vmatprep.subr.mxu0 0.0
        %673 = vmatpush1.msra.mxu0 0.0
        %674 = vmatprep.subr.mxu0 0.0
        %675 = vmatpush1.msra.mxu0 0.0
        %676 = vmatprep.subr.mxu0 0.0
        %677 = vmatpush1.msra.mxu0 0.0
        %678 = vmatprep.subr.mxu0 0.0
        %679 = vmatpush1.msra.mxu0 0.0
        %680 = vmatprep.subr.mxu0 0.0
        %681 = vmatpush1.msra.mxu0 0.0
        %682 = vmatprep.subr.mxu0 0.0
        %683 = vmatpush1.msra.mxu0 0.0
        %684 = vmatprep.subr.mxu0 0.0
        %685 = vmatpush1.msra.mxu0 0.0
        %686 = vmatprep.subr.mxu0 0.0
        %687 = vmatpush1.msra.mxu0 0.0
        %688 = vmatprep.subr.mxu0 0.0
        %689 = vmatpush1.msra.mxu0 0.0
        %690 = vmatprep.subr.mxu0 0.0
        %691 = vmatpush1.msra.mxu0 0.0
        %692 = vmatprep.mubr.f32.mxu0 0.0
        %693 = vmatmul.mubr.f32.gmra.mrb[0].mxu0 %v611
        %v694 = vpop.f32.mrb[0].mxu0
        %v695 = vadd.f32 %v602, %v694
        %v696 = vpop.f32.mrb[0].mxu0
        %v697 = vadd.f32 %v606, %v696
        %698 = vmatprep.mubr.f32.mxu0 0.0
        %699 = vmatmul.mubr.f32.gmra.mrb[0].mxu0 %v614
        %v700 = vpop.f32.mrb[0].mxu0
        %v701 = vadd.f32 %v602, %v700
        %v702 = vpop.f32.mrb[0].mxu0
        %v703 = vadd.f32 %v606, %v702
        %704 = vmatprep.mubr.f32.mxu0 0.0
        %705 = vmatmul.mubr.f32.gmra.mrb[0].mxu0 %v617
        %v706 = vpop.f32.mrb[0].mxu0
        %v707 = vadd.f32 %v602, %v706
        %v708 = vpop.f32.mrb[0].mxu0
        %v709 = vadd.f32 %v606, %v708
        %710 = vmatprep.mubr.f32.mxu0 0.0
        %711 = vmatmul.mubr.f32.gmra.mrb[0].mxu0 %v620
        %v712 = vpop.f32.mrb[0].mxu0
        %v713 = vadd.f32 %v602, %v712
        %v714 = vpop.f32.mrb[0].mxu0
        %v715 = vadd.f32 %v606, %v714
        %716 = vmatprep.mubr.f32.mxu0 0.0
        %717 = vmatmul.mubr.f32.gmra.mrb[0].mxu0 %v623
        %v718 = vpop.f32.mrb[0].mxu0
        %v719 = vadd.f32 %v602, %v718
        %v720 = vpop.f32.mrb[0].mxu0
        %v721 = vadd.f32 %v606, %v720
        %722 = vmatprep.mubr.f32.mxu0 0.0
        %723 = vmatmul.mubr.f32.gmra.mrb[0].mxu0 %v626
        %v724 = vpop.f32.mrb[0].mxu0
        %v725 = vadd.f32 %v602, %v724
        %v726 = vpop.f32.mrb[0].mxu0
        %v727 = vadd.f32 %v606, %v726
        %728 = vdwg.mxu0
        %v729 = vmax.f32 %v695, 0.0
        %v730 = vmax.f32 %v697, 0.0
        %v731 = vmax.f32 %v701, 0.0
        %v732 = vmax.f32 %v703, 0.0
        %v733 = vmax.f32 %v707, 0.0
        %v734 = vmax.f32 %v709, 0.0
        %v735 = vmax.f32 %v713, 0.0
        %v736 = vmax.f32 %v715, 0.0
        %v737 = vmax.f32 %v719, 0.0
        %v738 = vmax.f32 %v721, 0.0
        %v739 = vmax.f32 %v725, 0.0
        %v740 = vmax.f32 %v727, 0.0
        %v741 = vld [vmem:[#allocation7] sm:$0xff]
        %v742 = vld [vmem:[#allocation7 + $0x8] sm:$0xff]
        %v743 = vld [vmem:[#allocation7 + $0x10] sm:$0xff]
        %v744 = vld [vmem:[#allocation7 + $0x18] sm:$0xff]
        %v745 = vld [vmem:[#allocation7 + $0x20] sm:$0xff]
        %v746 = vld [vmem:[#allocation7 + $0x28] sm:$0xff]
        %v747 = vld [vmem:[#allocation7 + $0x30] sm:$0xff]
        %v748 = vld [vmem:[#allocation7 + $0x38] sm:$0xff]
        %v749 = vld [vmem:[#allocation7 + $0x40] sm:$0xff]
        %v750 = vld [vmem:[#allocation7 + $0x48] sm:$0xff]
        %v751 = vld [vmem:[#allocation7 + $0x50] sm:$0xff]
        %v752 = vld [vmem:[#allocation7 + $0x58] sm:$0xff]
        %v753 = vld [vmem:[#allocation7 + $0x60] sm:$0xff]
        %v754 = vld [vmem:[#allocation7 + $0x68] sm:$0xff]
        %v755 = vld [vmem:[#allocation7 + $0x70] sm:$0xff]
        %v756 = vld [vmem:[#allocation7 + $0x78] sm:$0xff]
        %v757 = vld [vmem:[#allocation7 + $0x80] sm:$0xff]
        %v758 = vld [vmem:[#allocation7 + $0x88] sm:$0xff]
        %v759 = vld [vmem:[#allocation7 + $0x90] sm:$0xff]
        %v760 = vld [vmem:[#allocation7 + $0x98] sm:$0xff]
        %v761 = vld [vmem:[#allocation7 + $0xa0] sm:$0xff]
        %v762 = vld [vmem:[#allocation7 + $0xa8] sm:$0xff]
        %v763 = vld [vmem:[#allocation7 + $0xb0] sm:$0xff]
        %v764 = vld [vmem:[#allocation7 + $0xb8] sm:$0xff]
        %v765 = vld [vmem:[#allocation7 + $0xc0] sm:$0xff]
        %v766 = vld [vmem:[#allocation7 + $0xc8] sm:$0xff]
        %v767 = vld [vmem:[#allocation7 + $0xd0] sm:$0xff]
        %v768 = vld [vmem:[#allocation7 + $0xd8] sm:$0xff]
        %v769 = vld [vmem:[#allocation7 + $0xe0] sm:$0xff]
        %v770 = vld [vmem:[#allocation7 + $0xe8] sm:$0xff]
        %v771 = vld [vmem:[#allocation7 + $0xf0] sm:$0xff]
        %v772 = vld [vmem:[#allocation7 + $0xf8] sm:$0xff]
        %v773 = vld [vmem:[#allocation7 + $0x100] sm:$0xff]
        %v774 = vld [vmem:[#allocation7 + $0x108] sm:$0xff]
        %v775 = vld [vmem:[#allocation7 + $0x110] sm:$0xff]
        %v776 = vld [vmem:[#allocation7 + $0x118] sm:$0xff]
        %v777 = vld [vmem:[#allocation7 + $0x120] sm:$0xff]
        %v778 = vld [vmem:[#allocation7 + $0x128] sm:$0xff]
        %v779 = vld [vmem:[#allocation7 + $0x130] sm:$0xff]
        %v780 = vld [vmem:[#allocation7 + $0x138] sm:$0xff]
        %v781 = vld [vmem:[#allocation7 + $0x140] sm:$0xff]
        %v782 = vld [vmem:[#allocation7 + $0x148] sm:$0xff]
        %v783 = vld [vmem:[#allocation7 + $0x150] sm:$0xff]
        %v784 = vld [vmem:[#allocation7 + $0x158] sm:$0xff]
        %v785 = vld [vmem:[#allocation7 + $0x160] sm:$0xff]
        %v786 = vld [vmem:[#allocation7 + $0x168] sm:$0xff]
        %v787 = vld [vmem:[#allocation7 + $0x170] sm:$0xff]
        %v788 = vld [vmem:[#allocation7 + $0x178] sm:$0xff]
        %v789 = vld [vmem:[#allocation7 + $0x180] sm:$0xff]
        %v790 = vld [vmem:[#allocation7 + $0x188] sm:$0xff]
        %v791 = vld [vmem:[#allocation7 + $0x190] sm:$0xff]
        %v792 = vld [vmem:[#allocation7 + $0x198] sm:$0xff]
        %v793 = vld [vmem:[#allocation7 + $0x1a0] sm:$0xff]
        %v794 = vld [vmem:[#allocation7 + $0x1a8] sm:$0xff]
        %v795 = vld [vmem:[#allocation7 + $0x1b0] sm:$0xff]
        %v796 = vld [vmem:[#allocation7 + $0x1b8] sm:$0xff]
        %v797 = vld [vmem:[#allocation7 + $0x1c0] sm:$0xff]
        %v798 = vld [vmem:[#allocation7 + $0x1c8] sm:$0xff]
        %v799 = vld [vmem:[#allocation7 + $0x1d0] sm:$0xff]
        %v800 = vld [vmem:[#allocation7 + $0x1d8] sm:$0xff]
        %v801 = vld [vmem:[#allocation7 + $0x1e0] sm:$0xff]
        %v802 = vld [vmem:[#allocation7 + $0x1e8] sm:$0xff]
        %v803 = vld [vmem:[#allocation7 + $0x1f0] sm:$0xff]
        %v804 = vld [vmem:[#allocation7 + $0x1f8] sm:$0xff]
        %v805 = vld [vmem:[#allocation9] sm:$0x3]
        %v807 = vlaneseq
        %v808 = vshrl.u32 %v807, 7
        %v809 = vsub.s32 0, %v808
        %v810 = vrot.slane %v805, %v809
        %v811 = vlaneseq
        %v812 = vshrl.u32 %v811, 7
        %v813 = vsub.s32 1, %v812
        %v814 = vrot.slane %v805, %v813
        %817 = vmatprep.subr.mxu0 %v742
        %818 = vmatpush1.msra.mxu0 %v741
        %819 = vmatprep.subr.mxu0 %v744
        %820 = vmatpush1.msra.mxu0 %v743
        %821 = vmatprep.subr.mxu0 %v746
        %822 = vmatpush1.msra.mxu0 %v745
        %823 = vmatprep.subr.mxu0 %v748
        %824 = vmatpush1.msra.mxu0 %v747
        %825 = vmatprep.subr.mxu0 %v750
        %826 = vmatpush1.msra.mxu0 %v749
        %827 = vmatprep.subr.mxu0 %v752
        %828 = vmatpush1.msra.mxu0 %v751
        %829 = vmatprep.subr.mxu0 %v754
        %830 = vmatpush1.msra.mxu0 %v753
        %831 = vmatprep.subr.mxu0 %v756
        %832 = vmatpush1.msra.mxu0 %v755
        %833 = vmatprep.subr.mxu0 %v758
        %834 = vmatpush1.msra.mxu0 %v757
        %835 = vmatprep.subr.mxu0 %v760
        %836 = vmatpush1.msra.mxu0 %v759
        %837 = vmatprep.subr.mxu0 %v762
        %838 = vmatpush1.msra.mxu0 %v761
        %839 = vmatprep.subr.mxu0 %v764
        %840 = vmatpush1.msra.mxu0 %v763
        %841 = vmatprep.subr.mxu0 %v766
        %842 = vmatpush1.msra.mxu0 %v765
        %843 = vmatprep.subr.mxu0 %v768
        %844 = vmatpush1.msra.mxu0 %v767
        %845 = vmatprep.subr.mxu0 %v770
        %846 = vmatpush1.msra.mxu0 %v769
        %847 = vmatprep.subr.mxu0 %v772
        %848 = vmatpush1.msra.mxu0 %v771
        %849 = vmatprep.subr.mxu0 %v774
        %850 = vmatpush1.msra.mxu0 %v773
        %851 = vmatprep.subr.mxu0 %v776
        %852 = vmatpush1.msra.mxu0 %v775
        %853 = vmatprep.subr.mxu0 %v778
        %854 = vmatpush1.msra.mxu0 %v777
        %855 = vmatprep.subr.mxu0 %v780
        %856 = vmatpush1.msra.mxu0 %v779
        %857 = vmatprep.subr.mxu0 %v782
        %858 = vmatpush1.msra.mxu0 %v781
        %859 = vmatprep.subr.mxu0 %v784
        %860 = vmatpush1.msra.mxu0 %v783
        %861 = vmatprep.subr.mxu0 %v786
        %862 = vmatpush1.msra.mxu0 %v785
        %863 = vmatprep.subr.mxu0 %v788
        %864 = vmatpush1.msra.mxu0 %v787
        %865 = vmatprep.subr.mxu0 %v790
        %866 = vmatpush1.msra.mxu0 %v789
        %867 = vmatprep.subr.mxu0 %v792
        %868 = vmatpush1.msra.mxu0 %v791
        %869 = vmatprep.subr.mxu0 %v794
        %870 = vmatpush1.msra.mxu0 %v793
        %871 = vmatprep.subr.mxu0 %v796
        %872 = vmatpush1.msra.mxu0 %v795
        %873 = vmatprep.subr.mxu0 %v798
        %874 = vmatpush1.msra.mxu0 %v797
        %875 = vmatprep.subr.mxu0 %v800
        %876 = vmatpush1.msra.mxu0 %v799
        %877 = vmatprep.subr.mxu0 %v802
        %878 = vmatpush1.msra.mxu0 %v801
        %879 = vmatprep.subr.mxu0 %v804
        %880 = vmatpush1.msra.mxu0 %v803
        %881 = vmatprep.mubr.f32.mxu0 %v730
        %882 = vmatmul.mubr.f32.gmra.mrb[0].mxu0 %v729
        %v883 = vpop.f32.mrb[0].mxu0
        %v884 = vadd.f32 %v810, %v883
        %v885 = vpop.f32.mrb[0].mxu0
        %v886 = vadd.f32 %v814, %v885
        %887 = vmatprep.mubr.f32.mxu0 %v732
        %888 = vmatmul.mubr.f32.gmra.mrb[0].mxu0 %v731
        %v889 = vpop.f32.mrb[0].mxu0
        %v890 = vadd.f32 %v810, %v889
        %v891 = vpop.f32.mrb[0].mxu0
        %v892 = vadd.f32 %v814, %v891
        %893 = vmatprep.mubr.f32.mxu0 %v734
        %894 = vmatmul.mubr.f32.gmra.mrb[0].mxu0 %v733
        %v895 = vpop.f32.mrb[0].mxu0
        %v896 = vadd.f32 %v810, %v895
        %v897 = vpop.f32.mrb[0].mxu0
        %v898 = vadd.f32 %v814, %v897
        %899 = vmatprep.mubr.f32.mxu0 %v736
        %900 = vmatmul.mubr.f32.gmra.mrb[0].mxu0 %v735
        %v901 = vpop.f32.mrb[0].mxu0
        %v902 = vadd.f32 %v810, %v901
        %v903 = vpop.f32.mrb[0].mxu0
        %v904 = vadd.f32 %v814, %v903
        %905 = vmatprep.mubr.f32.mxu0 %v738
        %906 = vmatmul.mubr.f32.gmra.mrb[0].mxu0 %v737
        %v907 = vpop.f32.mrb[0].mxu0
        %v908 = vadd.f32 %v810, %v907
        %v909 = vpop.f32.mrb[0].mxu0
        %v910 = vadd.f32 %v814, %v909
        %911 = vmatprep.mubr.f32.mxu0 %v740
        %912 = vmatmul.mubr.f32.gmra.mrb[0].mxu0 %v739
        %v913 = vpop.f32.mrb[0].mxu0
        %v914 = vadd.f32 %v810, %v913
        %v915 = vpop.f32.mrb[0].mxu0
        %v916 = vadd.f32 %v814, %v915
        %917 = vdwg.mxu0
        %v918 = vmax.f32 %v884, 0.0
        %v919 = vmax.f32 %v886, 0.0
        %v920 = vmax.f32 %v890, 0.0
        %v921 = vmax.f32 %v892, 0.0
        %v922 = vmax.f32 %v896, 0.0
        %v923 = vmax.f32 %v898, 0.0
        %v924 = vmax.f32 %v902, 0.0
        %v925 = vmax.f32 %v904, 0.0
        %v926 = vmax.f32 %v908, 0.0
        %v927 = vmax.f32 %v910, 0.0
        %v928 = vmax.f32 %v914, 0.0
        %v929 = vmax.f32 %v916, 0.0
        %936 = vrot.lane.b32.xlu0 %v918, 96
        %v937 = vpop.permute.xlu0 %936
        %938 = vrot.lane.b32.xlu0 %v920, 96
        %v939 = vpop.permute.xlu0 %938
        %940 = vrot.lane.b32.xlu0 %v922, 96
        %v941 = vpop.permute.xlu0 %940
        %942 = vrot.lane.b32.xlu0 %v924, 96
        %v943 = vpop.permute.xlu0 %942
        %944 = vrot.lane.b32.xlu0 %v926, 96
        %v945 = vpop.permute.xlu0 %944
        %946 = vrot.lane.b32.xlu0 %v928, 96
        %v947 = vpop.permute.xlu0 %946
        %v954 = vmax.f32 %v918, %v937
        %v955 = vmax.f32 %v920, %v939
        %v956 = vmax.f32 %v922, %v941
        %v957 = vmax.f32 %v924, %v943
        %v958 = vmax.f32 %v926, %v945
        %v959 = vmax.f32 %v928, %v947
        %960 = vrot.lane.b32.xlu0 %v918, 64
        %v961 = vpop.permute.xlu0 %960
        %962 = vrot.lane.b32.xlu0 %v920, 64
        %v963 = vpop.permute.xlu0 %962
        %964 = vrot.lane.b32.xlu0 %v922, 64
        %v965 = vpop.permute.xlu0 %964
        %966 = vrot.lane.b32.xlu0 %v924, 64
        %v967 = vpop.permute.xlu0 %966
        %968 = vrot.lane.b32.xlu0 %v926, 64
        %v969 = vpop.permute.xlu0 %968
        %970 = vrot.lane.b32.xlu0 %v928, 64
        %v971 = vpop.permute.xlu0 %970
        %v978 = vmax.f32 %v954, %v961
        %v979 = vmax.f32 %v955, %v963
        %v980 = vmax.f32 %v956, %v965
        %v981 = vmax.f32 %v957, %v967
        %v982 = vmax.f32 %v958, %v969
        %v983 = vmax.f32 %v959, %v971
        %984 = vrot.lane.b32.xlu0 %v918, 32
        %v985 = vpop.permute.xlu0 %984
        %986 = vrot.lane.b32.xlu0 %v920, 32
        %v987 = vpop.permute.xlu0 %986
        %988 = vrot.lane.b32.xlu0 %v922, 32
        %v989 = vpop.permute.xlu0 %988
        %990 = vrot.lane.b32.xlu0 %v924, 32
        %v991 = vpop.permute.xlu0 %990
        %992 = vrot.lane.b32.xlu0 %v926, 32
        %v993 = vpop.permute.xlu0 %992
        %994 = vrot.lane.b32.xlu0 %v928, 32
        %v995 = vpop.permute.xlu0 %994
        %v1002 = vmax.f32 %v978, %v985
        %v1003 = vmax.f32 %v979, %v987
        %v1004 = vmax.f32 %v980, %v989
        %v1005 = vmax.f32 %v981, %v991
        %v1006 = vmax.f32 %v982, %v993
        %v1007 = vmax.f32 %v983, %v995
        %v1008 = vmax.f32 %v1002, %v919
        %v1009 = vmax.f32 %v1003, %v921
        %v1010 = vmax.f32 %v1004, %v923
        %v1011 = vmax.f32 %v1005, %v925
        %v1012 = vmax.f32 %v1006, %v927
        %v1013 = vmax.f32 %v1007, %v929
        %1020 = vrot.lane.b32.xlu0 %v919, 96
        %v1021 = vpop.permute.xlu0 %1020
        %1022 = vrot.lane.b32.xlu0 %v921, 96
        %v1023 = vpop.permute.xlu0 %1022
        %1024 = vrot.lane.b32.xlu0 %v923, 96
        %v1025 = vpop.permute.xlu0 %1024
        %1026 = vrot.lane.b32.xlu0 %v925, 96
        %v1027 = vpop.permute.xlu0 %1026
        %1028 = vrot.lane.b32.xlu0 %v927, 96
        %v1029 = vpop.permute.xlu0 %1028
        %1030 = vrot.lane.b32.xlu0 %v929, 96
        %v1031 = vpop.permute.xlu0 %1030
        %v1038 = vmax.f32 %v1008, %v1021
        %v1039 = vmax.f32 %v1009, %v1023
        %v1040 = vmax.f32 %v1010, %v1025
        %v1041 = vmax.f32 %v1011, %v1027
        %v1042 = vmax.f32 %v1012, %v1029
        %v1043 = vmax.f32 %v1013, %v1031
        %1044 = vrot.lane.b32.xlu0 %v919, 64
        %v1045 = vpop.permute.xlu0 %1044
        %1046 = vrot.lane.b32.xlu0 %v921, 64
        %v1047 = vpop.permute.xlu0 %1046
        %1048 = vrot.lane.b32.xlu0 %v923, 64
        %v1049 = vpop.permute.xlu0 %1048
        %1050 = vrot.lane.b32.xlu0 %v925, 64
        %v1051 = vpop.permute.xlu0 %1050
        %1052 = vrot.lane.b32.xlu0 %v927, 64
        %v1053 = vpop.permute.xlu0 %1052
        %1054 = vrot.lane.b32.xlu0 %v929, 64
        %v1055 = vpop.permute.xlu0 %1054
        %v1062 = vmax.f32 %v1038, %v1045
        %v1063 = vmax.f32 %v1039, %v1047
        %v1064 = vmax.f32 %v1040, %v1049
        %v1065 = vmax.f32 %v1041, %v1051
        %v1066 = vmax.f32 %v1042, %v1053
        %v1067 = vmax.f32 %v1043, %v1055
        %1068 = vrot.lane.b32.xlu0 %v919, 32
        %v1069 = vpop.permute.xlu0 %1068
        %1070 = vrot.lane.b32.xlu0 %v921, 32
        %v1071 = vpop.permute.xlu0 %1070
        %1072 = vrot.lane.b32.xlu0 %v923, 32
        %v1073 = vpop.permute.xlu0 %1072
        %1074 = vrot.lane.b32.xlu0 %v925, 32
        %v1075 = vpop.permute.xlu0 %1074
        %1076 = vrot.lane.b32.xlu0 %v927, 32
        %v1077 = vpop.permute.xlu0 %1076
        %1078 = vrot.lane.b32.xlu0 %v929, 32
        %v1079 = vpop.permute.xlu0 %1078
        %v1086 = vmax.f32 %v1062, %v1069
        %v1087 = vmax.f32 %v1063, %v1071
        %v1088 = vmax.f32 %v1064, %v1073
        %v1089 = vmax.f32 %v1065, %v1075
        %v1090 = vmax.f32 %v1066, %v1077
        %v1091 = vmax.f32 %v1067, %v1079
        %v1092 = vld [vmem:[#allocation16] sm:$0xff]
        %v1093 = vld [vmem:[#allocation16 + $0x8] sm:$0xff]
        %v1094 = vld [vmem:[#allocation16 + $0x10] sm:$0xff]
        %v1095 = vld [vmem:[#allocation16 + $0x18] sm:$0xff]
        %v1096 = vld [vmem:[#allocation16 + $0x20] sm:$0xff]
        %v1097 = vld [vmem:[#allocation16 + $0x28] sm:$0xff]
        %v1098 = vld [vmem:[#allocation10] sm:$0xff]
        %v1099 = vld [vmem:[#allocation10 + $0x8] sm:$0xff]
        %v1100 = vld [vmem:[#allocation10 + $0x10] sm:$0xff]
        %v1101 = vld [vmem:[#allocation10 + $0x18] sm:$0xff]
        %v1102 = vld [vmem:[%s6] sm:$0x1]
        %v1104 = vlaneseq
        %v1105 = vshrl.u32 %v1104, 7
        %v1106 = vsub.s32 0, %v1105
        %v1107 = vrot.slane %v1102, %v1106
        %v1110 = vsel %vm609, %v1086, 0
        %v1113 = vsel %vm609, %v1087, 0
        %v1116 = vsel %vm609, %v1088, 0
        %v1119 = vsel %vm609, %v1089, 0
        %v1122 = vsel %vm609, %v1090, 0
        %v1125 = vsel %vm609, %v1091, 0
        %1127 = vmatprep.subr.mxu0 0.0
        %1128 = vmatpush1.msra.mxu0 %v1098
        %1129 = vmatprep.subr.mxu0 0.0
        %1130 = vmatpush1.msra.mxu0 %v1099
        %1131 = vmatprep.subr.mxu0 0.0
        %1132 = vmatpush1.msra.mxu0 %v1100
        %1133 = vmatprep.subr.mxu0 0.0
        %1134 = vmatpush1.msra.mxu0 %v1101
        %1135 = vmatprep.subr.mxu0 0.0
        %1136 = vmatpush1.msra.mxu0 0.0
        %1137 = vmatprep.subr.mxu0 0.0
        %1138 = vmatpush1.msra.mxu0 0.0
        %1139 = vmatprep.subr.mxu0 0.0
        %1140 = vmatpush1.msra.mxu0 0.0
        %1141 = vmatprep.subr.mxu0 0.0
        %1142 = vmatpush1.msra.mxu0 0.0
        %1143 = vmatprep.subr.mxu0 0.0
        %1144 = vmatpush1.msra.mxu0 0.0
        %1145 = vmatprep.subr.mxu0 0.0
        %1146 = vmatpush1.msra.mxu0 0.0
        %1147 = vmatprep.subr.mxu0 0.0
        %1148 = vmatpush1.msra.mxu0 0.0
        %1149 = vmatprep.subr.mxu0 0.0
        %1150 = vmatpush1.msra.mxu0 0.0
        %1151 = vmatprep.subr.mxu0 0.0
        %1152 = vmatpush1.msra.mxu0 0.0
        %1153 = vmatprep.subr.mxu0 0.0
        %1154 = vmatpush1.msra.mxu0 0.0
        %1155 = vmatprep.subr.mxu0 0.0
        %1156 = vmatpush1.msra.mxu0 0.0
        %1157 = vmatprep.subr.mxu0 0.0
        %1158 = vmatpush1.msra.mxu0 0.0
        %1159 = vmatprep.subr.mxu0 0.0
        %1160 = vmatpush1.msra.mxu0 0.0
        %1161 = vmatprep.subr.mxu0 0.0
        %1162 = vmatpush1.msra.mxu0 0.0
        %1163 = vmatprep.subr.mxu0 0.0
        %1164 = vmatpush1.msra.mxu0 0.0
        %1165 = vmatprep.subr.mxu0 0.0
        %1166 = vmatpush1.msra.mxu0 0.0
        %1167 = vmatprep.subr.mxu0 0.0
        %1168 = vmatpush1.msra.mxu0 0.0
        %1169 = vmatprep.subr.mxu0 0.0
        %1170 = vmatpush1.msra.mxu0 0.0
        %1171 = vmatprep.subr.mxu0 0.0
        %1172 = vmatpush1.msra.mxu0 0.0
        %1173 = vmatprep.subr.mxu0 0.0
        %1174 = vmatpush1.msra.mxu0 0.0
        %1175 = vmatprep.subr.mxu0 0.0
        %1176 = vmatpush1.msra.mxu0 0.0
        %1177 = vmatprep.subr.mxu0 0.0
        %1178 = vmatpush1.msra.mxu0 0.0
        %1179 = vmatprep.subr.mxu0 0.0
        %1180 = vmatpush1.msra.mxu0 0.0
        %1181 = vmatprep.subr.mxu0 0.0
        %1182 = vmatpush1.msra.mxu0 0.0
        %1183 = vmatprep.subr.mxu0 0.0
        %1184 = vmatpush1.msra.mxu0 0.0
        %1185 = vmatprep.subr.mxu0 0.0
        %1186 = vmatpush1.msra.mxu0 0.0
        %1187 = vmatprep.subr.mxu0 0.0
        %1188 = vmatpush1.msra.mxu0 0.0
        %1189 = vmatprep.subr.mxu0 0.0
        %1190 = vmatpush1.msra.mxu0 0.0
        %1191 = vmatprep.mubr.f32.mxu0 0.0
        %1192 = vmatmul.mubr.f32.gmra.mrb[0].mxu0 %v1110
        %v1193 = vpop.f32.mrb[0].mxu0
        %v1194 = vadd.f32 %v1107, %v1193
        %v1195 = vpop.f32.mrb[0].mxu0
        %1196 = vmatprep.mubr.f32.mxu0 0.0
        %1197 = vmatmul.mubr.f32.gmra.mrb[0].mxu0 %v1113
        %v1198 = vpop.f32.mrb[0].mxu0
        %v1199 = vadd.f32 %v1107, %v1198
        %v1200 = vpop.f32.mrb[0].mxu0
        %1201 = vmatprep.mubr.f32.mxu0 0.0
        %1202 = vmatmul.mubr.f32.gmra.mrb[0].mxu0 %v1116
        %v1203 = vpop.f32.mrb[0].mxu0
        %v1204 = vadd.f32 %v1107, %v1203
        %v1205 = vpop.f32.mrb[0].mxu0
        %1206 = vmatprep.mubr.f32.mxu0 0.0
        %1207 = vmatmul.mubr.f32.gmra.mrb[0].mxu0 %v1119
        %v1208 = vpop.f32.mrb[0].mxu0
        %v1209 = vadd.f32 %v1107, %v1208
        %v1210 = vpop.f32.mrb[0].mxu0
        %1211 = vmatprep.mubr.f32.mxu0 0.0
        %1212 = vmatmul.mubr.f32.gmra.mrb[0].mxu0 %v1122
        %v1213 = vpop.f32.mrb[0].mxu0
        %v1214 = vadd.f32 %v1107, %v1213
        %v1215 = vpop.f32.mrb[0].mxu0
        %1216 = vmatprep.mubr.f32.mxu0 0.0
        %1217 = vmatmul.mubr.f32.gmra.mrb[0].mxu0 %v1125
        %v1218 = vpop.f32.mrb[0].mxu0
        %v1219 = vadd.f32 %v1107, %v1218
        %v1220 = vpop.f32.mrb[0].mxu0
        %1221 = vdwg.mxu0
        %1228 = vrot.lane.b32.xlu0 %v1194, 96
        %v1229 = vpop.permute.xlu0 %1228
        %1230 = vrot.lane.b32.xlu0 %v1199, 96
        %v1231 = vpop.permute.xlu0 %1230
        %1232 = vrot.lane.b32.xlu0 %v1204, 96
        %v1233 = vpop.permute.xlu0 %1232
        %1234 = vrot.lane.b32.xlu0 %v1209, 96
        %v1235 = vpop.permute.xlu0 %1234
        %1236 = vrot.lane.b32.xlu0 %v1214, 96
        %v1237 = vpop.permute.xlu0 %1236
        %1238 = vrot.lane.b32.xlu0 %v1219, 96
        %v1239 = vpop.permute.xlu0 %1238
        %v1240 = vsel %vm609, %v1194, 0
        %v1242 = vsel %vm609, %v1199, 0
        %v1244 = vsel %vm609, %v1204, 0
        %v1246 = vsel %vm609, %v1209, 0
        %v1248 = vsel %vm609, %v1214, 0
        %v1250 = vsel %vm609, %v1219, 0
        %v1252 = vsel %vm609, %v1229, 0
        %v1254 = vsel %vm609, %v1231, 0
        %v1256 = vsel %vm609, %v1233, 0
        %v1258 = vsel %vm609, %v1235, 0
        %v1260 = vsel %vm609, %v1237, 0
        %v1262 = vsel %vm609, %v1239, 0
        %1264 = vmatprep.subr.mxu0 0.0
        %1265 = vmatpush1.xpose.msra.mxu0 %v1252
        %1266 = vmatprep.subr.mxu0 0.0
        %1267 = vmatpush1.xpose.msra.mxu0 %v1254
        %1268 = vmatprep.subr.mxu0 0.0
        %1269 = vmatpush1.xpose.msra.mxu0 %v1256
        %1270 = vmatprep.subr.mxu0 0.0
        %1271 = vmatpush1.xpose.msra.mxu0 %v1258
        %1272 = vmatprep.subr.mxu0 0.0
        %1273 = vmatpush1.xpose.msra.mxu0 %v1260
        %1274 = vmatprep.subr.mxu0 0.0
        %1275 = vmatpush1.xpose.msra.mxu0 %v1262
        %1276 = vmatprep.subr.mxu0 0.0
        %1277 = vmatpush1.xpose.msra.mxu0 0.0
        %1278 = vmatprep.subr.mxu0 0.0
        %1279 = vmatpush1.xpose.msra.mxu0 0.0
        %1280 = vmatprep.subr.mxu0 0.0
        %1281 = vmatpush1.xpose.msra.mxu0 0.0
        %1282 = vmatprep.subr.mxu0 0.0
        %1283 = vmatpush1.xpose.msra.mxu0 0.0
        %1284 = vmatprep.subr.mxu0 0.0
        %1285 = vmatpush1.xpose.msra.mxu0 0.0
        %1286 = vmatprep.subr.mxu0 0.0
        %1287 = vmatpush1.xpose.msra.mxu0 0.0
        %1288 = vmatprep.subr.mxu0 0.0
        %1289 = vmatpush1.xpose.msra.mxu0 0.0
        %1290 = vmatprep.subr.mxu0 0.0
        %1291 = vmatpush1.xpose.msra.mxu0 0.0
        %1292 = vmatprep.subr.mxu0 0.0
        %1293 = vmatpush1.xpose.msra.mxu0 0.0
        %1294 = vmatprep.subr.mxu0 0.0
        %1295 = vmatpush1.xpose.msra.mxu0 0.0
        %1296 = vmatprep.subr.mxu0 0.0
        %1297 = vmatpush1.xpose.msra.mxu0 0.0
        %1298 = vmatprep.subr.mxu0 0.0
        %1299 = vmatpush1.xpose.msra.mxu0 0.0
        %1300 = vmatprep.subr.mxu0 0.0
        %1301 = vmatpush1.xpose.msra.mxu0 0.0
        %1302 = vmatprep.subr.mxu0 0.0
        %1303 = vmatpush1.xpose.msra.mxu0 0.0
        %1304 = vmatprep.subr.mxu0 0.0
        %1305 = vmatpush1.xpose.msra.mxu0 0.0
        %1306 = vmatprep.subr.mxu0 0.0
        %1307 = vmatpush1.xpose.msra.mxu0 0.0
        %1308 = vmatprep.subr.mxu0 0.0
        %1309 = vmatpush1.xpose.msra.mxu0 0.0
        %1310 = vmatprep.subr.mxu0 0.0
        %1311 = vmatpush1.xpose.msra.mxu0 0.0
        %1312 = vmatprep.subr.mxu0 0.0
        %1313 = vmatpush1.xpose.msra.mxu0 0.0
        %1314 = vmatprep.subr.mxu0 0.0
        %1315 = vmatpush1.xpose.msra.mxu0 0.0
        %1316 = vmatprep.subr.mxu0 0.0
        %1317 = vmatpush1.xpose.msra.mxu0 0.0
        %1318 = vmatprep.subr.mxu0 0.0
        %1319 = vmatpush1.xpose.msra.mxu0 0.0
        %1320 = vmatprep.subr.mxu0 0.0
        %1321 = vmatpush1.xpose.msra.mxu0 0.0
        %1322 = vmatprep.subr.mxu0 0.0
        %1323 = vmatpush1.xpose.msra.mxu0 0.0
        %1324 = vmatprep.subr.mxu0 0.0
        %1325 = vmatpush1.xpose.msra.mxu0 0.0
        %1326 = vmatprep.subr.mxu0 0.0
        %1327 = vmatpush1.xpose.msra.mxu0 0.0
        %1328 = vmatprep.mubr.f32.mxu0 0.0
        %1329 = vmatmul.mubr.f32.gmra.mrb[0].mxu0 %v1240
        %v1330 = vpop.f32.mrb[0].mxu0
        %v1331 = vadd.f32 0.0, %v1330
        %v1332 = vpop.f32.mrb[0].mxu0
        %1333 = vmatprep.mubr.f32.mxu0 0.0
        %1334 = vmatmul.mubr.f32.gmra.mrb[0].mxu0 %v1242
        %v1335 = vpop.f32.mrb[0].mxu0
        %v1336 = vadd.f32 0.0, %v1335
        %v1337 = vpop.f32.mrb[0].mxu0
        %1338 = vmatprep.mubr.f32.mxu0 0.0
        %1339 = vmatmul.mubr.f32.gmra.mrb[0].mxu0 %v1244
        %v1340 = vpop.f32.mrb[0].mxu0
        %v1341 = vadd.f32 0.0, %v1340
        %v1342 = vpop.f32.mrb[0].mxu0
        %1343 = vmatprep.mubr.f32.mxu0 0.0
        %1344 = vmatmul.mubr.f32.gmra.mrb[0].mxu0 %v1246
        %v1345 = vpop.f32.mrb[0].mxu0
        %v1346 = vadd.f32 0.0, %v1345
        %v1347 = vpop.f32.mrb[0].mxu0
        %1348 = vmatprep.mubr.f32.mxu0 0.0
        %1349 = vmatmul.mubr.f32.gmra.mrb[0].mxu0 %v1248
        %v1350 = vpop.f32.mrb[0].mxu0
        %v1351 = vadd.f32 0.0, %v1350
        %v1352 = vpop.f32.mrb[0].mxu0
        %1353 = vmatprep.mubr.f32.mxu0 0.0
        %1354 = vmatmul.mubr.f32.gmra.mrb[0].mxu0 %v1250
        %v1355 = vpop.f32.mrb[0].mxu0
        %v1356 = vadd.f32 0.0, %v1355
        %v1357 = vpop.f32.mrb[0].mxu0
        %1358 = vdwg.mxu0
        %v1359 = vmul.f32 %v1331, 0.17677669
        %v1360 = vmul.f32 %v1336, 0.17677669
        %v1361 = vmul.f32 %v1341, 0.17677669
        %v1362 = vmul.f32 %v1346, 0.17677669
        %v1363 = vmul.f32 %v1351, 0.17677669
        %v1364 = vmul.f32 %v1356, 0.17677669
        %v1365 = vadd.f32 %v1359, %v1092
        %v1366 = vadd.f32 %v1360, %v1093
        %v1367 = vadd.f32 %v1361, %v1094
        %v1368 = vadd.f32 %v1362, %v1095
        %v1369 = vadd.f32 %v1363, %v1096
        %v1370 = vadd.f32 %v1364, %v1097
        %vm1371 = vcmask 392192
        %v1372 = vsel %vm1371, %v1365, -inf
        %1373 = vmax.xlane.f32.xlu0 %v1372
        %v1374 = vpop.xlane.xlu0 %1373
        %v1375 = vsel %vm1371, %v1366, -inf
        %1376 = vmax.xlane.f32.xlu0 %v1375
        %v1377 = vpop.xlane.xlu0 %1376
        %v1378 = vsel %vm1371, %v1367, -inf
        %1379 = vmax.xlane.f32.xlu0 %v1378
        %v1380 = vpop.xlane.xlu0 %1379
        %v1381 = vsel %vm1371, %v1368, -inf
        %1382 = vmax.xlane.f32.xlu0 %v1381
        %v1383 = vpop.xlane.xlu0 %1382
        %v1384 = vsel %vm1371, %v1369, -inf
        %1385 = vmax.xlane.f32.xlu0 %v1384
        %v1386 = vpop.xlane.xlu0 %1385
        %v1387 = vsel %vm1371, %v1370, -inf
        %1388 = vmax.xlane.f32.xlu0 %v1387
        %v1389 = vpop.xlane.xlu0 %1388
        %v1390 = vsub.f32 %v1365, %v1374
        %v1391 = vsub.f32 %v1366, %v1377
        %v1392 = vsub.f32 %v1367, %v1380
        %v1393 = vsub.f32 %v1368, %v1383
        %v1394 = vsub.f32 %v1369, %v1386
        %v1395 = vsub.f32 %v1370, %v1389
        %v1396 = vmul.f32 %v1390, 1.442695
        %v1397 = vpow.pop %v1396
        %v1398 = vmul.f32 %v1391, 1.442695
        %v1399 = vpow.pop %v1398
        %v1400 = vmul.f32 %v1392, 1.442695
        %v1401 = vpow.pop %v1400
        %v1402 = vmul.f32 %v1393, 1.442695
        %v1403 = vpow.pop %v1402
        %v1404 = vmul.f32 %v1394, 1.442695
        %v1405 = vpow.pop %v1404
        %v1406 = vmul.f32 %v1395, 1.442695
        %v1407 = vpow.pop %v1406
        %v1408 = vsel %vm1371, %v1397, 0.0
        %1409 = vadd.xlane.f32.xlu0 %v1408
        %v1410 = vpop.xlane.xlu0 %1409
        %v1411 = vsel %vm1371, %v1399, 0.0
        %1412 = vadd.xlane.f32.xlu0 %v1411
        %v1413 = vpop.xlane.xlu0 %1412
        %v1414 = vsel %vm1371, %v1401, 0.0
        %1415 = vadd.xlane.f32.xlu0 %v1414
        %v1416 = vpop.xlane.xlu0 %1415
        %v1417 = vsel %vm1371, %v1403, 0.0
        %1418 = vadd.xlane.f32.xlu0 %v1417
        %v1419 = vpop.xlane.xlu0 %1418
        %v1420 = vsel %vm1371, %v1405, 0.0
        %1421 = vadd.xlane.f32.xlu0 %v1420
        %v1422 = vpop.xlane.xlu0 %1421
        %v1423 = vsel %vm1371, %v1407, 0.0
        %1424 = vadd.xlane.f32.xlu0 %v1423
        %v1425 = vpop.xlane.xlu0 %1424
        %v1426 = vrcp.pop %v1410
        %v1427 = vrcp.pop %v1413
        %v1428 = vrcp.pop %v1416
        %v1429 = vrcp.pop %v1419
        %v1430 = vrcp.pop %v1422
        %v1431 = vrcp.pop %v1425
        %v1432 = vmul.f32 %v1397, %v1426
        %v1433 = vmul.f32 %v1399, %v1427
        %v1434 = vmul.f32 %v1401, %v1428
        %v1435 = vmul.f32 %v1403, %v1429
        %v1436 = vmul.f32 %v1405, %v1430
        %v1437 = vmul.f32 %v1407, %v1431
        %1438 = vrot.lane.b32.xlu0 %v1194, 64
        %v1439 = vpop.permute.xlu0 %1438
        %1440 = vrot.lane.b32.xlu0 %v1199, 64
        %v1441 = vpop.permute.xlu0 %1440
        %1442 = vrot.lane.b32.xlu0 %v1204, 64
        %v1443 = vpop.permute.xlu0 %1442
        %1444 = vrot.lane.b32.xlu0 %v1209, 64
        %v1445 = vpop.permute.xlu0 %1444
        %1446 = vrot.lane.b32.xlu0 %v1214, 64
        %v1447 = vpop.permute.xlu0 %1446
        %1448 = vrot.lane.b32.xlu0 %v1219, 64
        %v1449 = vpop.permute.xlu0 %1448
        %v1457 = vsel %vm1371, %v1432, 0
        %v1460 = vsel %vm1371, %v1433, 0
        %v1463 = vsel %vm1371, %v1434, 0
        %v1466 = vsel %vm1371, %v1435, 0
        %v1469 = vsel %vm1371, %v1436, 0
        %v1472 = vsel %vm1371, %v1437, 0
        %1474 = vmatprep.subr.mxu0 0.0
        %1475 = vmatpush1.msra.mxu0 %v1439
        %1476 = vmatprep.subr.mxu0 0.0
        %1477 = vmatpush1.msra.mxu0 %v1441
        %1478 = vmatprep.subr.mxu0 0.0
        %1479 = vmatpush1.msra.mxu0 %v1443
        %1480 = vmatprep.subr.mxu0 0.0
        %1481 = vmatpush1.msra.mxu0 %v1445
        %1482 = vmatprep.subr.mxu0 0.0
        %1483 = vmatpush1.msra.mxu0 %v1447
        %1484 = vmatprep.subr.mxu0 0.0
        %1485 = vmatpush1.msra.mxu0 %v1449
        %1486 = vmatprep.subr.mxu0 0.0
        %1487 = vmatpush1.msra.mxu0 0.0
        %1488 = vmatprep.subr.mxu0 0.0
        %1489 = vmatpush1.msra.mxu0 0.0
        %1490 = vmatprep.subr.mxu0 0.0
        %1491 = vmatpush1.msra.mxu0 0.0
        %1492 = vmatprep.subr.mxu0 0.0
        %1493 = vmatpush1.msra.mxu0 0.0
        %1494 = vmatprep.subr.mxu0 0.0
        %1495 = vmatpush1.msra.mxu0 0.0
        %1496 = vmatprep.subr.mxu0 0.0
        %1497 = vmatpush1.msra.mxu0 0.0
        %1498 = vmatprep.subr.mxu0 0.0
        %1499 = vmatpush1.msra.mxu0 0.0
        %1500 = vmatprep.subr.mxu0 0.0
        %1501 = vmatpush1.msra.mxu0 0.0
        %1502 = vmatprep.subr.mxu0 0.0
        %1503 = vmatpush1.msra.mxu0 0.0
        %1504 = vmatprep.subr.mxu0 0.0
        %1505 = vmatpush1.msra.mxu0 0.0
        %1506 = vmatprep.subr.mxu0 0.0
        %1507 = vmatpush1.msra.mxu0 0.0
        %1508 = vmatprep.subr.mxu0 0.0
        %1509 = vmatpush1.msra.mxu0 0.0
        %1510 = vmatprep.subr.mxu0 0.0
        %1511 = vmatpush1.msra.mxu0 0.0
        %1512 = vmatprep.subr.mxu0 0.0
        %1513 = vmatpush1.msra.mxu0 0.0
        %1514 = vmatprep.subr.mxu0 0.0
        %1515 = vmatpush1.msra.mxu0 0.0
        %1516 = vmatprep.subr.mxu0 0.0
        %1517 = vmatpush1.msra.mxu0 0.0
        %1518 = vmatprep.subr.mxu0 0.0
        %1519 = vmatpush1.msra.mxu0 0.0
        %1520 = vmatprep.subr.mxu0 0.0
        %1521 = vmatpush1.msra.mxu0 0.0
        %1522 = vmatprep.subr.mxu0 0.0
        %1523 = vmatpush1.msra.mxu0 0.0
        %1524 = vmatprep.subr.mxu0 0.0
        %1525 = vmatpush1.msra.mxu0 0.0
        %1526 = vmatprep.subr.mxu0 0.0
        %1527 = vmatpush1.msra.mxu0 0.0
        %1528 = vmatprep.subr.mxu0 0.0
        %1529 = vmatpush1.msra.mxu0 0.0
        %1530 = vmatprep.subr.mxu0 0.0
        %1531 = vmatpush1.msra.mxu0 0.0
        %1532 = vmatprep.subr.mxu0 0.0
        %1533 = vmatpush1.msra.mxu0 0.0
        %1534 = vmatprep.subr.mxu0 0.0
        %1535 = vmatpush1.msra.mxu0 0.0
        %1536 = vmatprep.subr.mxu0 0.0
        %1537 = vmatpush1.msra.mxu0 0.0
        %1538 = vmatprep.mubr.f32.mxu0 0.0
        %1539 = vmatmul.mubr.f32.gmra.mrb[0].mxu0 %v1457
        %v1540 = vpop.f32.mrb[0].mxu0
        %v1541 = vadd.f32 0.0, %v1540
        %v1542 = vpop.f32.mrb[0].mxu0
        %1543 = vmatprep.mubr.f32.mxu0 0.0
        %1544 = vmatmul.mubr.f32.gmra.mrb[0].mxu0 %v1460
        %v1545 = vpop.f32.mrb[0].mxu0
        %v1546 = vadd.f32 0.0, %v1545
        %v1547 = vpop.f32.mrb[0].mxu0
        %1548 = vmatprep.mubr.f32.mxu0 0.0
        %1549 = vmatmul.mubr.f32.gmra.mrb[0].mxu0 %v1463
        %v1550 = vpop.f32.mrb[0].mxu0
        %v1551 = vadd.f32 0.0, %v1550
        %v1552 = vpop.f32.mrb[0].mxu0
        %1553 = vmatprep.mubr.f32.mxu0 0.0
        %1554 = vmatmul.mubr.f32.gmra.mrb[0].mxu0 %v1466
        %v1555 = vpop.f32.mrb[0].mxu0
        %v1556 = vadd.f32 0.0, %v1555
        %v1557 = vpop.f32.mrb[0].mxu0
        %1558 = vmatprep.mubr.f32.mxu0 0.0
        %1559 = vmatmul.mubr.f32.gmra.mrb[0].mxu0 %v1469
        %v1560 = vpop.f32.mrb[0].mxu0
        %v1561 = vadd.f32 0.0, %v1560
        %v1562 = vpop.f32.mrb[0].mxu0
        %1563 = vmatprep.mubr.f32.mxu0 0.0
        %1564 = vmatmul.mubr.f32.gmra.mrb[0].mxu0 %v1472
        %v1565 = vpop.f32.mrb[0].mxu0
        %v1566 = vadd.f32 0.0, %v1565
        %v1567 = vpop.f32.mrb[0].mxu0
        %1568 = vdwg.mxu0
        %v1569 = vmax.f32 %v1541, 0.0
        %v1570 = vmax.f32 %v1546, 0.0
        %v1571 = vmax.f32 %v1551, 0.0
        %v1572 = vmax.f32 %v1556, 0.0
        %v1573 = vmax.f32 %v1561, 0.0
        %v1574 = vmax.f32 %v1566, 0.0
        %v1575 = vld [vmem:[#allocation12] sm:$0xff]
        %v1576 = vld [vmem:[#allocation12 + $0x8] sm:$0xff]
        %v1577 = vld [vmem:[#allocation12 + $0x10] sm:$0xff]
        %v1578 = vld [vmem:[#allocation12 + $0x18] sm:$0xff]
        %v1579 = vld [vmem:[#allocation13] sm:$0x1]
        %v1581 = vlaneseq
        %v1582 = vshrl.u32 %v1581, 7
        %v1583 = vsub.s32 0, %v1582
        %v1584 = vrot.slane %v1579, %v1583
        %v1587 = vsel %vm609, %v1569, 0
        %v1590 = vsel %vm609, %v1570, 0
        %v1593 = vsel %vm609, %v1571, 0
        %v1596 = vsel %vm609, %v1572, 0
        %v1599 = vsel %vm609, %v1573, 0
        %v1602 = vsel %vm609, %v1574, 0
        %1604 = vmatprep.subr.mxu0 0.0
        %1605 = vmatpush1.msra.mxu0 %v1575
        %1606 = vmatprep.subr.mxu0 0.0
        %1607 = vmatpush1.msra.mxu0 %v1576
        %1608 = vmatprep.subr.mxu0 0.0
        %1609 = vmatpush1.msra.mxu0 %v1577
        %1610 = vmatprep.subr.mxu0 0.0
        %1611 = vmatpush1.msra.mxu0 %v1578
        %1612 = vmatprep.subr.mxu0 0.0
        %1613 = vmatpush1.msra.mxu0 0.0
        %1614 = vmatprep.subr.mxu0 0.0
        %1615 = vmatpush1.msra.mxu0 0.0
        %1616 = vmatprep.subr.mxu0 0.0
        %1617 = vmatpush1.msra.mxu0 0.0
        %1618 = vmatprep.subr.mxu0 0.0
        %1619 = vmatpush1.msra.mxu0 0.0
        %1620 = vmatprep.subr.mxu0 0.0
        %1621 = vmatpush1.msra.mxu0 0.0
        %1622 = vmatprep.subr.mxu0 0.0
        %1623 = vmatpush1.msra.mxu0 0.0
        %1624 = vmatprep.subr.mxu0 0.0
        %1625 = vmatpush1.msra.mxu0 0.0
        %1626 = vmatprep.subr.mxu0 0.0
        %1627 = vmatpush1.msra.mxu0 0.0
        %1628 = vmatprep.subr.mxu0 0.0
        %1629 = vmatpush1.msra.mxu0 0.0
        %1630 = vmatprep.subr.mxu0 0.0
        %1631 = vmatpush1.msra.mxu0 0.0
        %1632 = vmatprep.subr.mxu0 0.0
        %1633 = vmatpush1.msra.mxu0 0.0
        %1634 = vmatprep.subr.mxu0 0.0
        %1635 = vmatpush1.msra.mxu0 0.0
        %1636 = vmatprep.subr.mxu0 0.0
        %1637 = vmatpush1.msra.mxu0 0.0
        %1638 = vmatprep.subr.mxu0 0.0
        %1639 = vmatpush1.msra.mxu0 0.0
        %1640 = vmatprep.subr.mxu0 0.0
        %1641 = vmatpush1.msra.mxu0 0.0
        %1642 = vmatprep.subr.mxu0 0.0
        %1643 = vmatpush1.msra.mxu0 0.0
        %1644 = vmatprep.subr.mxu0 0.0
        %1645 = vmatpush1.msra.mxu0 0.0
        %1646 = vmatprep.subr.mxu0 0.0
        %1647 = vmatpush1.msra.mxu0 0.0
        %1648 = vmatprep.subr.mxu0 0.0
        %1649 = vmatpush1.msra.mxu0 0.0
        %1650 = vmatprep.subr.mxu0 0.0
        %1651 = vmatpush1.msra.mxu0 0.0
        %1652 = vmatprep.subr.mxu0 0.0
        %1653 = vmatpush1.msra.mxu0 0.0
        %1654 = vmatprep.subr.mxu0 0.0
        %1655 = vmatpush1.msra.mxu0 0.0
        %1656 = vmatprep.subr.mxu0 0.0
        %1657 = vmatpush1.msra.mxu0 0.0
        %1658 = vmatprep.subr.mxu0 0.0
        %1659 = vmatpush1.msra.mxu0 0.0
        %1660 = vmatprep.subr.mxu0 0.0
        %1661 = vmatpush1.msra.mxu0 0.0
        %1662 = vmatprep.subr.mxu0 0.0
        %1663 = vmatpush1.msra.mxu0 0.0
        %1664 = vmatprep.subr.mxu0 0.0
        %1665 = vmatpush1.msra.mxu0 0.0
        %1666 = vmatprep.subr.mxu0 0.0
        %1667 = vmatpush1.msra.mxu0 0.0
        %1668 = vmatprep.mubr.f32.mxu0 0.0
        %1669 = vmatmul.mubr.f32.gmra.mrb[0].mxu0 %v1587
        %v1670 = vpop.f32.mrb[0].mxu0
        %v1671 = vadd.f32 %v1584, %v1670
        %v1672 = vpop.f32.mrb[0].mxu0
        %1673 = vmatprep.mubr.f32.mxu0 0.0
        %1674 = vmatmul.mubr.f32.gmra.mrb[0].mxu0 %v1590
        %v1675 = vpop.f32.mrb[0].mxu0
        %v1676 = vadd.f32 %v1584, %v1675
        %v1677 = vpop.f32.mrb[0].mxu0
        %1678 = vmatprep.mubr.f32.mxu0 0.0
        %1679 = vmatmul.mubr.f32.gmra.mrb[0].mxu0 %v1593
        %v1680 = vpop.f32.mrb[0].mxu0
        %v1681 = vadd.f32 %v1584, %v1680
        %v1682 = vpop.f32.mrb[0].mxu0
        %1683 = vmatprep.mubr.f32.mxu0 0.0
        %1684 = vmatmul.mubr.f32.gmra.mrb[0].mxu0 %v1596
        %v1685 = vpop.f32.mrb[0].mxu0
        %v1686 = vadd.f32 %v1584, %v1685
        %v1687 = vpop.f32.mrb[0].mxu0
        %1688 = vmatprep.mubr.f32.mxu0 0.0
        %1689 = vmatmul.mubr.f32.gmra.mrb[0].mxu0 %v1599
        %v1690 = vpop.f32.mrb[0].mxu0
        %v1691 = vadd.f32 %v1584, %v1690
        %v1692 = vpop.f32.mrb[0].mxu0
        %1693 = vmatprep.mubr.f32.mxu0 0.0
        %1694 = vmatmul.mubr.f32.gmra.mrb[0].mxu0 %v1602
        %v1695 = vpop.f32.mrb[0].mxu0
        %v1696 = vadd.f32 %v1584, %v1695
        %v1697 = vpop.f32.mrb[0].mxu0
        %1698 = vdwg.mxu0
        %1705 = vrot.lane.b32.xlu0 %v1671, 96
        %v1706 = vpop.permute.xlu0 %1705
        %1707 = vrot.lane.b32.xlu0 %v1676, 96
        %v1708 = vpop.permute.xlu0 %1707
        %1709 = vrot.lane.b32.xlu0 %v1681, 96
        %v1710 = vpop.permute.xlu0 %1709
        %1711 = vrot.lane.b32.xlu0 %v1686, 96
        %v1712 = vpop.permute.xlu0 %1711
        %1713 = vrot.lane.b32.xlu0 %v1691, 96
        %v1714 = vpop.permute.xlu0 %1713
        %1715 = vrot.lane.b32.xlu0 %v1696, 96
        %v1716 = vpop.permute.xlu0 %1715
        %v1717 = vsel %vm609, %v1671, 0
        %v1719 = vsel %vm609, %v1676, 0
        %v1721 = vsel %vm609, %v1681, 0
        %v1723 = vsel %vm609, %v1686, 0
        %v1725 = vsel %vm609, %v1691, 0
        %v1727 = vsel %vm609, %v1696, 0
        %v1729 = vsel %vm609, %v1706, 0
        %v1731 = vsel %vm609, %v1708, 0
        %v1733 = vsel %vm609, %v1710, 0
        %v1735 = vsel %vm609, %v1712, 0
        %v1737 = vsel %vm609, %v1714, 0
        %v1739 = vsel %vm609, %v1716, 0
        %1741 = vmatprep.subr.mxu0 0.0
        %1742 = vmatpush1.xpose.msra.mxu0 %v1729
        %1743 = vmatprep.subr.mxu0 0.0
        %1744 = vmatpush1.xpose.msra.mxu0 %v1731
        %1745 = vmatprep.subr.mxu0 0.0
        %1746 = vmatpush1.xpose.msra.mxu0 %v1733
        %1747 = vmatprep.subr.mxu0 0.0
        %1748 = vmatpush1.xpose.msra.mxu0 %v1735
        %1749 = vmatprep.subr.mxu0 0.0
        %1750 = vmatpush1.xpose.msra.mxu0 %v1737
        %1751 = vmatprep.subr.mxu0 0.0
        %1752 = vmatpush1.xpose.msra.mxu0 %v1739
        %1753 = vmatprep.subr.mxu0 0.0
        %1754 = vmatpush1.xpose.msra.mxu0 0.0
        %1755 = vmatprep.subr.mxu0 0.0
        %1756 = vmatpush1.xpose.msra.mxu0 0.0
        %1757 = vmatprep.subr.mxu0 0.0
        %1758 = vmatpush1.xpose.msra.mxu0 0.0
        %1759 = vmatprep.subr.mxu0 0.0
        %1760 = vmatpush1.xpose.msra.mxu0 0.0
        %1761 = vmatprep.subr.mxu0 0.0
        %1762 = vmatpush1.xpose.msra.mxu0 0.0
        %1763 = vmatprep.subr.mxu0 0.0
        %1764 = vmatpush1.xpose.msra.mxu0 0.0
        %1765 = vmatprep.subr.mxu0 0.0
        %1766 = vmatpush1.xpose.msra.mxu0 0.0
        %1767 = vmatprep.subr.mxu0 0.0
        %1768 = vmatpush1.xpose.msra.mxu0 0.0
        %1769 = vmatprep.subr.mxu0 0.0
        %1770 = vmatpush1.xpose.msra.mxu0 0.0
        %1771 = vmatprep.subr.mxu0 0.0
        %1772 = vmatpush1.xpose.msra.mxu0 0.0
        %1773 = vmatprep.subr.mxu0 0.0
        %1774 = vmatpush1.xpose.msra.mxu0 0.0
        %1775 = vmatprep.subr.mxu0 0.0
        %1776 = vmatpush1.xpose.msra.mxu0 0.0
        %1777 = vmatprep.subr.mxu0 0.0
        %1778 = vmatpush1.xpose.msra.mxu0 0.0
        %1779 = vmatprep.subr.mxu0 0.0
        %1780 = vmatpush1.xpose.msra.mxu0 0.0
        %1781 = vmatprep.subr.mxu0 0.0
        %1782 = vmatpush1.xpose.msra.mxu0 0.0
        %1783 = vmatprep.subr.mxu0 0.0
        %1784 = vmatpush1.xpose.msra.mxu0 0.0
        %1785 = vmatprep.subr.mxu0 0.0
        %1786 = vmatpush1.xpose.msra.mxu0 0.0
        %1787 = vmatprep.subr.mxu0 0.0
        %1788 = vmatpush1.xpose.msra.mxu0 0.0
        %1789 = vmatprep.subr.mxu0 0.0
        %1790 = vmatpush1.xpose.msra.mxu0 0.0
        %1791 = vmatprep.subr.mxu0 0.0
        %1792 = vmatpush1.xpose.msra.mxu0 0.0
        %1793 = vmatprep.subr.mxu0 0.0
        %1794 = vmatpush1.xpose.msra.mxu0 0.0
        %1795 = vmatprep.subr.mxu0 0.0
        %1796 = vmatpush1.xpose.msra.mxu0 0.0
        %1797 = vmatprep.subr.mxu0 0.0
        %1798 = vmatpush1.xpose.msra.mxu0 0.0
        %1799 = vmatprep.subr.mxu0 0.0
        %1800 = vmatpush1.xpose.msra.mxu0 0.0
        %1801 = vmatprep.subr.mxu0 0.0
        %1802 = vmatpush1.xpose.msra.mxu0 0.0
        %1803 = vmatprep.subr.mxu0 0.0
        %1804 = vmatpush1.xpose.msra.mxu0 0.0
        %1805 = vmatprep.mubr.f32.mxu0 0.0
        %1806 = vmatmul.mubr.f32.gmra.mrb[0].mxu0 %v1717
        %v1807 = vpop.f32.mrb[0].mxu0
        %v1808 = vadd.f32 0.0, %v1807
        %v1809 = vpop.f32.mrb[0].mxu0
        %1810 = vmatprep.mubr.f32.mxu0 0.0
        %1811 = vmatmul.mubr.f32.gmra.mrb[0].mxu0 %v1719
        %v1812 = vpop.f32.mrb[0].mxu0
        %v1813 = vadd.f32 0.0, %v1812
        %v1814 = vpop.f32.mrb[0].mxu0
        %1815 = vmatprep.mubr.f32.mxu0 0.0
        %1816 = vmatmul.mubr.f32.gmra.mrb[0].mxu0 %v1721
        %v1817 = vpop.f32.mrb[0].mxu0
        %v1818 = vadd.f32 0.0, %v1817
        %v1819 = vpop.f32.mrb[0].mxu0
        %1820 = vmatprep.mubr.f32.mxu0 0.0
        %1821 = vmatmul.mubr.f32.gmra.mrb[0].mxu0 %v1723
        %v1822 = vpop.f32.mrb[0].mxu0
        %v1823 = vadd.f32 0.0, %v1822
        %v1824 = vpop.f32.mrb[0].mxu0
        %1825 = vmatprep.mubr.f32.mxu0 0.0
        %1826 = vmatmul.mubr.f32.gmra.mrb[0].mxu0 %v1725
        %v1827 = vpop.f32.mrb[0].mxu0
        %v1828 = vadd.f32 0.0, %v1827
        %v1829 = vpop.f32.mrb[0].mxu0
        %1830 = vmatprep.mubr.f32.mxu0 0.0
        %1831 = vmatmul.mubr.f32.gmra.mrb[0].mxu0 %v1727
        %v1832 = vpop.f32.mrb[0].mxu0
        %v1833 = vadd.f32 0.0, %v1832
        %v1834 = vpop.f32.mrb[0].mxu0
        %1835 = vdwg.mxu0
        %v1836 = vmul.f32 %v1808, 0.17677669
        %v1837 = vmul.f32 %v1813, 0.17677669
        %v1838 = vmul.f32 %v1818, 0.17677669
        %v1839 = vmul.f32 %v1823, 0.17677669
        %v1840 = vmul.f32 %v1828, 0.17677669
        %v1841 = vmul.f32 %v1833, 0.17677669
        %v1842 = vadd.f32 %v1836, %v1092
        %v1843 = vadd.f32 %v1837, %v1093
        %v1844 = vadd.f32 %v1838, %v1094
        %v1845 = vadd.f32 %v1839, %v1095
        %v1846 = vadd.f32 %v1840, %v1096
        %v1847 = vadd.f32 %v1841, %v1097
        %v1848 = vsel %vm1371, %v1842, -inf
        %1849 = vmax.xlane.f32.xlu0 %v1848
        %v1850 = vpop.xlane.xlu0 %1849
        %v1851 = vsel %vm1371, %v1843, -inf
        %1852 = vmax.xlane.f32.xlu0 %v1851
        %v1853 = vpop.xlane.xlu0 %1852
        %v1854 = vsel %vm1371, %v1844, -inf
        %1855 = vmax.xlane.f32.xlu0 %v1854
        %v1856 = vpop.xlane.xlu0 %1855
        %v1857 = vsel %vm1371, %v1845, -inf
        %1858 = vmax.xlane.f32.xlu0 %v1857
        %v1859 = vpop.xlane.xlu0 %1858
        %v1860 = vsel %vm1371, %v1846, -inf
        %1861 = vmax.xlane.f32.xlu0 %v1860
        %v1862 = vpop.xlane.xlu0 %1861
        %v1863 = vsel %vm1371, %v1847, -inf
        %1864 = vmax.xlane.f32.xlu0 %v1863
        %v1865 = vpop.xlane.xlu0 %1864
        %v1866 = vsub.f32 %v1842, %v1850
        %v1867 = vsub.f32 %v1843, %v1853
        %v1868 = vsub.f32 %v1844, %v1856
        %v1869 = vsub.f32 %v1845, %v1859
        %v1870 = vsub.f32 %v1846, %v1862
        %v1871 = vsub.f32 %v1847, %v1865
        %v1872 = vmul.f32 %v1866, 1.442695
        %v1873 = vpow.pop %v1872
        %v1874 = vmul.f32 %v1867, 1.442695
        %v1875 = vpow.pop %v1874
        %v1876 = vmul.f32 %v1868, 1.442695
        %v1877 = vpow.pop %v1876
        %v1878 = vmul.f32 %v1869, 1.442695
        %v1879 = vpow.pop %v1878
        %v1880 = vmul.f32 %v1870, 1.442695
        %v1881 = vpow.pop %v1880
        %v1882 = vmul.f32 %v1871, 1.442695
        %v1883 = vpow.pop %v1882
        %v1884 = vsel %vm1371, %v1873, 0.0
        %1885 = vadd.xlane.f32.xlu0 %v1884
        %v1886 = vpop.xlane.xlu0 %1885
        %v1887 = vsel %vm1371, %v1875, 0.0
        %1888 = vadd.xlane.f32.xlu0 %v1887
        %v1889 = vpop.xlane.xlu0 %1888
        %v1890 = vsel %vm1371, %v1877, 0.0
        %1891 = vadd.xlane.f32.xlu0 %v1890
        %v1892 = vpop.xlane.xlu0 %1891
        %v1893 = vsel %vm1371, %v1879, 0.0
        %1894 = vadd.xlane.f32.xlu0 %v1893
        %v1895 = vpop.xlane.xlu0 %1894
        %v1896 = vsel %vm1371, %v1881, 0.0
        %1897 = vadd.xlane.f32.xlu0 %v1896
        %v1898 = vpop.xlane.xlu0 %1897
        %v1899 = vsel %vm1371, %v1883, 0.0
        %1900 = vadd.xlane.f32.xlu0 %v1899
        %v1901 = vpop.xlane.xlu0 %1900
        %v1902 = vrcp.pop %v1886
        %v1903 = vrcp.pop %v1889
        %v1904 = vrcp.pop %v1892
        %v1905 = vrcp.pop %v1895
        %v1906 = vrcp.pop %v1898
        %v1907 = vrcp.pop %v1901
        %v1908 = vmul.f32 %v1873, %v1902
        %v1909 = vmul.f32 %v1875, %v1903
        %v1910 = vmul.f32 %v1877, %v1904
        %v1911 = vmul.f32 %v1879, %v1905
        %v1912 = vmul.f32 %v1881, %v1906
        %v1913 = vmul.f32 %v1883, %v1907
        %1914 = vrot.lane.b32.xlu0 %v1671, 64
        %v1915 = vpop.permute.xlu0 %1914
        %1916 = vrot.lane.b32.xlu0 %v1676, 64
        %v1917 = vpop.permute.xlu0 %1916
        %1918 = vrot.lane.b32.xlu0 %v1681, 64
        %v1919 = vpop.permute.xlu0 %1918
        %1920 = vrot.lane.b32.xlu0 %v1686, 64
        %v1921 = vpop.permute.xlu0 %1920
        %1922 = vrot.lane.b32.xlu0 %v1691, 64
        %v1923 = vpop.permute.xlu0 %1922
        %1924 = vrot.lane.b32.xlu0 %v1696, 64
        %v1925 = vpop.permute.xlu0 %1924
        %v1933 = vsel %vm1371, %v1908, 0
        %v1936 = vsel %vm1371, %v1909, 0
        %v1939 = vsel %vm1371, %v1910, 0
        %v1942 = vsel %vm1371, %v1911, 0
        %v1945 = vsel %vm1371, %v1912, 0
        %v1948 = vsel %vm1371, %v1913, 0
        %1950 = vmatprep.subr.mxu0 0.0
        %1951 = vmatpush1.msra.mxu0 %v1915
        %1952 = vmatprep.subr.mxu0 0.0
        %1953 = vmatpush1.msra.mxu0 %v1917
        %1954 = vmatprep.subr.mxu0 0.0
        %1955 = vmatpush1.msra.mxu0 %v1919
        %1956 = vmatprep.subr.mxu0 0.0
        %1957 = vmatpush1.msra.mxu0 %v1921
        %1958 = vmatprep.subr.mxu0 0.0
        %1959 = vmatpush1.msra.mxu0 %v1923
        %1960 = vmatprep.subr.mxu0 0.0
        %1961 = vmatpush1.msra.mxu0 %v1925
        %1962 = vmatprep.subr.mxu0 0.0
        %1963 = vmatpush1.msra.mxu0 0.0
        %1964 = vmatprep.subr.mxu0 0.0
        %1965 = vmatpush1.msra.mxu0 0.0
        %1966 = vmatprep.subr.mxu0 0.0
        %1967 = vmatpush1.msra.mxu0 0.0
        %1968 = vmatprep.subr.mxu0 0.0
        %1969 = vmatpush1.msra.mxu0 0.0
        %1970 = vmatprep.subr.mxu0 0.0
        %1971 = vmatpush1.msra.mxu0 0.0
        %1972 = vmatprep.subr.mxu0 0.0
        %1973 = vmatpush1.msra.mxu0 0.0
        %1974 = vmatprep.subr.mxu0 0.0
        %1975 = vmatpush1.msra.mxu0 0.0
        %1976 = vmatprep.subr.mxu0 0.0
        %1977 = vmatpush1.msra.mxu0 0.0
        %1978 = vmatprep.subr.mxu0 0.0
        %1979 = vmatpush1.msra.mxu0 0.0
        %1980 = vmatprep.subr.mxu0 0.0
        %1981 = vmatpush1.msra.mxu0 0.0
        %1982 = vmatprep.subr.mxu0 0.0
        %1983 = vmatpush1.msra.mxu0 0.0
        %1984 = vmatprep.subr.mxu0 0.0
        %1985 = vmatpush1.msra.mxu0 0.0
        %1986 = vmatprep.subr.mxu0 0.0
        %1987 = vmatpush1.msra.mxu0 0.0
        %1988 = vmatprep.subr.mxu0 0.0
        %1989 = vmatpush1.msra.mxu0 0.0
        %1990 = vmatprep.subr.mxu0 0.0
        %1991 = vmatpush1.msra.mxu0 0.0
        %1992 = vmatprep.subr.mxu0 0.0
        %1993 = vmatpush1.msra.mxu0 0.0
        %1994 = vmatprep.subr.mxu0 0.0
        %1995 = vmatpush1.msra.mxu0 0.0
        %1996 = vmatprep.subr.mxu0 0.0
        %1997 = vmatpush1.msra.mxu0 0.0
        %1998 = vmatprep.subr.mxu0 0.0
        %1999 = vmatpush1.msra.mxu0 0.0
        %2000 = vmatprep.subr.mxu0 0.0
        %2001 = vmatpush1.msra.mxu0 0.0
        %2002 = vmatprep.subr.mxu0 0.0
        %2003 = vmatpush1.msra.mxu0 0.0
        %2004 = vmatprep.subr.mxu0 0.0
        %2005 = vmatpush1.msra.mxu0 0.0
        %2006 = vmatprep.subr.mxu0 0.0
        %2007 = vmatpush1.msra.mxu0 0.0
        %2008 = vmatprep.subr.mxu0 0.0
        %2009 = vmatpush1.msra.mxu0 0.0
        %2010 = vmatprep.subr.mxu0 0.0
        %2011 = vmatpush1.msra.mxu0 0.0
        %2012 = vmatprep.subr.mxu0 0.0
        %2013 = vmatpush1.msra.mxu0 0.0
        %2014 = vmatprep.mubr.f32.mxu0 0.0
        %2015 = vmatmul.mubr.f32.gmra.mrb[0].mxu0 %v1933
        %v2016 = vpop.f32.mrb[0].mxu0
        %v2017 = vadd.f32 0.0, %v2016
        %v2018 = vpop.f32.mrb[0].mxu0
        %2019 = vmatprep.mubr.f32.mxu0 0.0
        %2020 = vmatmul.mubr.f32.gmra.mrb[0].mxu0 %v1936
        %v2021 = vpop.f32.mrb[0].mxu0
        %v2022 = vadd.f32 0.0, %v2021
        %v2023 = vpop.f32.mrb[0].mxu0
        %2024 = vmatprep.mubr.f32.mxu0 0.0
        %2025 = vmatmul.mubr.f32.gmra.mrb[0].mxu0 %v1939
        %v2026 = vpop.f32.mrb[0].mxu0
        %v2027 = vadd.f32 0.0, %v2026
        %v2028 = vpop.f32.mrb[0].mxu0
        %2029 = vmatprep.mubr.f32.mxu0 0.0
        %2030 = vmatmul.mubr.f32.gmra.mrb[0].mxu0 %v1942
        %v2031 = vpop.f32.mrb[0].mxu0
        %v2032 = vadd.f32 0.0, %v2031
        %v2033 = vpop.f32.mrb[0].mxu0
        %2034 = vmatprep.mubr.f32.mxu0 0.0
        %2035 = vmatmul.mubr.f32.gmra.mrb[0].mxu0 %v1945
        %v2036 = vpop.f32.mrb[0].mxu0
        %v2037 = vadd.f32 0.0, %v2036
        %v2038 = vpop.f32.mrb[0].mxu0
        %2039 = vmatprep.mubr.f32.mxu0 0.0
        %2040 = vmatmul.mubr.f32.gmra.mrb[0].mxu0 %v1948
        %v2041 = vpop.f32.mrb[0].mxu0
        %v2042 = vadd.f32 0.0, %v2041
        %v2043 = vpop.f32.mrb[0].mxu0
        %2044 = vdwg.mxu0
        %v2045 = vmax.f32 %v2017, 0.0
        %v2046 = vmax.f32 %v2022, 0.0
        %v2047 = vmax.f32 %v2027, 0.0
        %v2048 = vmax.f32 %v2032, 0.0
        %v2049 = vmax.f32 %v2037, 0.0
        %v2050 = vmax.f32 %v2042, 0.0
        %v2051 = vld [vmem:[%s12] sm:$0x3f]
        %v2053 = vsel %vm1371, %v2051, 0
        %2055 = vmatprep.subr.mxu0 0.0
        %2056 = vmatpush1.msra.mxu0 %v2045
        %2057 = vmatprep.subr.mxu0 0.0
        %2058 = vmatpush1.msra.mxu0 %v2046
        %2059 = vmatprep.subr.mxu0 0.0
        %2060 = vmatpush1.msra.mxu0 %v2047
        %2061 = vmatprep.subr.mxu0 0.0
        %2062 = vmatpush1.msra.mxu0 %v2048
        %2063 = vmatprep.subr.mxu0 0.0
        %2064 = vmatpush1.msra.mxu0 %v2049
        %2065 = vmatprep.subr.mxu0 0.0
        %2066 = vmatpush1.msra.mxu0 %v2050
        %2067 = vmatprep.subr.mxu0 0.0
        %2068 = vmatpush1.msra.mxu0 0.0
        %2069 = vmatprep.subr.mxu0 0.0
        %2070 = vmatpush1.msra.mxu0 0.0
        %2071 = vmatprep.subr.mxu0 0.0
        %2072 = vmatpush1.msra.mxu0 0.0
        %2073 = vmatprep.subr.mxu0 0.0
        %2074 = vmatpush1.msra.mxu0 0.0
        %2075 = vmatprep.subr.mxu0 0.0
        %2076 = vmatpush1.msra.mxu0 0.0
        %2077 = vmatprep.subr.mxu0 0.0
        %2078 = vmatpush1.msra.mxu0 0.0
        %2079 = vmatprep.subr.mxu0 0.0
        %2080 = vmatpush1.msra.mxu0 0.0
        %2081 = vmatprep.subr.mxu0 0.0
        %2082 = vmatpush1.msra.mxu0 0.0
        %2083 = vmatprep.subr.mxu0 0.0
        %2084 = vmatpush1.msra.mxu0 0.0
        %2085 = vmatprep.subr.mxu0 0.0
        %2086 = vmatpush1.msra.mxu0 0.0
        %2087 = vmatprep.subr.mxu0 0.0
        %2088 = vmatpush1.msra.mxu0 0.0
        %2089 = vmatprep.subr.mxu0 0.0
        %2090 = vmatpush1.msra.mxu0 0.0
        %2091 = vmatprep.subr.mxu0 0.0
        %2092 = vmatpush1.msra.mxu0 0.0
        %2093 = vmatprep.subr.mxu0 0.0
        %2094 = vmatpush1.msra.mxu0 0.0
        %2095 = vmatprep.subr.mxu0 0.0
        %2096 = vmatpush1.msra.mxu0 0.0
        %2097 = vmatprep.subr.mxu0 0.0
        %2098 = vmatpush1.msra.mxu0 0.0
        %2099 = vmatprep.subr.mxu0 0.0
        %2100 = vmatpush1.msra.mxu0 0.0
        %2101 = vmatprep.subr.mxu0 0.0
        %2102 = vmatpush1.msra.mxu0 0.0
        %2103 = vmatprep.subr.mxu0 0.0
        %2104 = vmatpush1.msra.mxu0 0.0
        %2105 = vmatprep.subr.mxu0 0.0
        %2106 = vmatpush1.msra.mxu0 0.0
        %2107 = vmatprep.subr.mxu0 0.0
        %2108 = vmatpush1.msra.mxu0 0.0
        %2109 = vmatprep.subr.mxu0 0.0
        %2110 = vmatpush1.msra.mxu0 0.0
        %2111 = vmatprep.subr.mxu0 0.0
        %2112 = vmatpush1.msra.mxu0 0.0
        %2113 = vmatprep.subr.mxu0 0.0
        %2114 = vmatpush1.msra.mxu0 0.0
        %2115 = vmatprep.subr.mxu0 0.0
        %2116 = vmatpush1.msra.mxu0 0.0
        %2117 = vmatprep.subr.mxu0 0.0
        %2118 = vmatpush1.msra.mxu0 0.0
        %2119 = vmatprep.mubr.f32.mxu0 0.0
        %2120 = vmatmul.mubr.f32.gmra.mrb[0].mxu0 %v2053
        %v2121 = vpop.f32.mrb[0].mxu0
        %v2122 = vadd.f32 0.0, %v2121
        %v2123 = vpop.f32.mrb[0].mxu0
        %2124 = vdwg.mxu0
        %v2125 = vld [vmem:[%s9] sm:$0xff]
        %v2126 = vld [vmem:[%s9 + $0x8] sm:$0xff]
        %v2127 = vld [vmem:[%s9 + $0x10] sm:$0xff]
        %v2128 = vld [vmem:[%s9 + $0x18] sm:$0xff]
        %v2129 = vld [vmem:[#allocation15] sm:$0x1]
        %v2131 = vlaneseq
        %v2132 = vshrl.u32 %v2131, 7
        %v2133 = vsub.s32 0, %v2132
        %v2134 = vrot.slane %v2129, %v2133
        %v2137 = vsel %vm609, %v2122, 0
        %2139 = vmatprep.subr.mxu0 0.0
        %2140 = vmatpush1.msra.mxu0 %v2125
        %2141 = vmatprep.subr.mxu0 0.0
        %2142 = vmatpush1.msra.mxu0 %v2126
        %2143 = vmatprep.subr.mxu0 0.0
        %2144 = vmatpush1.msra.mxu0 %v2127
        %2145 = vmatprep.subr.mxu0 0.0
        %2146 = vmatpush1.msra.mxu0 %v2128
        %2147 = vmatprep.subr.mxu0 0.0
        %2148 = vmatpush1.msra.mxu0 0.0
        %2149 = vmatprep.subr.mxu0 0.0
        %2150 = vmatpush1.msra.mxu0 0.0
        %2151 = vmatprep.subr.mxu0 0.0
        %2152 = vmatpush1.msra.mxu0 0.0
        %2153 = vmatprep.subr.mxu0 0.0
        %2154 = vmatpush1.msra.mxu0 0.0
        %2155 = vmatprep.subr.mxu0 0.0
        %2156 = vmatpush1.msra.mxu0 0.0
        %2157 = vmatprep.subr.mxu0 0.0
        %2158 = vmatpush1.msra.mxu0 0.0
        %2159 = vmatprep.subr.mxu0 0.0
        %2160 = vmatpush1.msra.mxu0 0.0
        %2161 = vmatprep.subr.mxu0 0.0
        %2162 = vmatpush1.msra.mxu0 0.0
        %2163 = vmatprep.subr.mxu0 0.0
        %2164 = vmatpush1.msra.mxu0 0.0
        %2165 = vmatprep.subr.mxu0 0.0
        %2166 = vmatpush1.msra.mxu0 0.0
        %2167 = vmatprep.subr.mxu0 0.0
        %2168 = vmatpush1.msra.mxu0 0.0
        %2169 = vmatprep.subr.mxu0 0.0
        %2170 = vmatpush1.msra.mxu0 0.0
        %2171 = vmatprep.subr.mxu0 0.0
        %2172 = vmatpush1.msra.mxu0 0.0
        %2173 = vmatprep.subr.mxu0 0.0
        %2174 = vmatpush1.msra.mxu0 0.0
        %2175 = vmatprep.subr.mxu0 0.0
        %2176 = vmatpush1.msra.mxu0 0.0
        %2177 = vmatprep.subr.mxu0 0.0
        %2178 = vmatpush1.msra.mxu0 0.0
        %2179 = vmatprep.subr.mxu0 0.0
        %2180 = vmatpush1.msra.mxu0 0.0
        %2181 = vmatprep.subr.mxu0 0.0
        %2182 = vmatpush1.msra.mxu0 0.0
        %2183 = vmatprep.subr.mxu0 0.0
        %2184 = vmatpush1.msra.mxu0 0.0
        %2185 = vmatprep.subr.mxu0 0.0
        %2186 = vmatpush1.msra.mxu0 0.0
        %2187 = vmatprep.subr.mxu0 0.0
        %2188 = vmatpush1.msra.mxu0 0.0
        %2189 = vmatprep.subr.mxu0 0.0
        %2190 = vmatpush1.msra.mxu0 0.0
        %2191 = vmatprep.subr.mxu0 0.0
        %2192 = vmatpush1.msra.mxu0 0.0
        %2193 = vmatprep.subr.mxu0 0.0
        %2194 = vmatpush1.msra.mxu0 0.0
        %2195 = vmatprep.subr.mxu0 0.0
        %2196 = vmatpush1.msra.mxu0 0.0
        %2197 = vmatprep.subr.mxu0 0.0
        %2198 = vmatpush1.msra.mxu0 0.0
        %2199 = vmatprep.subr.mxu0 0.0
        %2200 = vmatpush1.msra.mxu0 0.0
        %2201 = vmatprep.subr.mxu0 0.0
        %2202 = vmatpush1.msra.mxu0 0.0
        %2203 = vmatprep.mubr.f32.mxu0 0.0
        %2204 = vmatmul.mubr.f32.gmra.mrb[0].mxu0 %v2137
        %v2205 = vpop.f32.mrb[0].mxu0
        %v2206 = vadd.f32 %v2134, %v2205
        %v2207 = vpop.f32.mrb[0].mxu0
        %2208 = vdwg.mxu0
        %2209 = vst [vmem:[%s582] sm:$0x3f] %v2206
        %p2210 = scmp.lt.s32.totalorder %s32, 1
        %s2211 = scalar_select %p2210, %s32, 1
        %s2212 = smul.addr %s2211, 8
        %s2213 = scalar_lea.vmem %s13, %s2212
        // Predicated region
        $region113: #{tpu_custom_call.1} parent=71 // pred_check
          %p2214 = pneg %p328
        $region114: #{tpu_custom_call.1} parent=71 // pred_check_branch
          %2216 = sbr.rel (%p2214) target = $region116
        $region115: #{tpu_custom_call.1} parent=71 // pred_region
          _
        $region116: #{tpu_custom_call.1} parent=71 // pred_fallthru
          _
      $region72: #{tpu_custom_call.1} parent=5 // pred_fallthru
        _
      %p2217 = scmp.le.s32.totalorder 2, %s27
      // Predicated region
      $region117: #{tpu_custom_call.1} parent=5 // pred_check
        %p2218 = pneg %p2217
      $region118: #{tpu_custom_call.1} parent=5 // pred_check_branch
        %2220 = sbr.rel (%p2218) target = $region120
      $region119: #{tpu_custom_call.1} parent=5 // pred_region
        %s2221 = ssub.s32 %s27, 2
        // Predicated region
        $region121: #{tpu_custom_call.1} parent=119 // pred_check
          %p2222 = pneg %p334
        $region122: #{tpu_custom_call.1} parent=119 // pred_check_branch
          %2224 = sbr.rel (%p2222) target = $region124
        $region123: #{tpu_custom_call.1} parent=119 // pred_region
          %p2225 = scmp.lt.s32.totalorder %s33, 1
          %s2226 = scalar_select %p2225, %s33, 1
          %s2227 = smul.addr %s2226, 8
          %s2228 = scalar_lea.vmem %s13, %s2227
        $region124: #{tpu_custom_call.1} parent=119 // pred_fallthru
          _
      $region120: #{tpu_custom_call.1} parent=5 // pred_fallthru
        _
    $region6: #{tpu_custom_call.1} parent=1 // loop_footer
      %s31 = sadd.s32 1, %s27
    $region7: #{tpu_custom_call.1} parent=1 // loop_footer_branch
      %26 = sbr.rel target = $region3
    $region8: #{tpu_custom_call.1} parent=1 // loop_exit
      _
    %2229 = vsyncpa [#allocation3], 1
    %s2230 = scalar_lea.sflag [#allocation3], 1
    %2231 = vsyncpa %s2230, 1
    %2232 = vsyncpa [#allocation5], 1
    %2233 = vsyncpa [#allocation8], 1
    %2234 = vsyncpa [#allocation11], 1
    %2235 = vsyncpa [#allocation14], 1
    %2236 = vsyncpa [#allocation17], 1

</llo_original>
